<compile_context>
chip_gen: v6e
topology: v6e:2x2x1
jax: 0.10.0
libtpu: 0.0.40
codegen_flags: <defaults>
</compile_context>

<pallas_src>
import jax
import jax.numpy as jnp
from jax import lax
from jax.experimental import pallas as pl
from jax.experimental.pallas import tpu as pltpu

FEAT_C = 2208   # densenet161 feature channels (fixed by Linear(2208, 512))
HIDDEN = 512
NUM_CLS = 16    # args.num_cls for this synthetic example
BN_EPS = 1e-5
HW = 49         # 7 x 7 feature map
TK = 736        # K-tile: 2208 / 736 = 3; multiple of 16 (bf16 sublane packing)

# TODO(synk): densenet161(pretrained=True) backbone is a frozen feature
# extractor and is not reproduced here; the kernel starts from its output.


def head_kernel(x_ref, w1_ref, b1_ref, w2_ref, b2_ref, out_ref, acc_ref):
    k = pl.program_id(0)

    @pl.when(k == 0)
    def _():
        acc_ref[...] = jnp.zeros_like(acc_ref)

    # F.relu + F.avg_pool2d(kernel_size=7) over this K-chunk of channels.
    x = x_ref[...]                                           # (B, TK, 49) f32
    pooled = jnp.mean(jnp.maximum(x, 0.0), axis=-1)          # (B, TK)     f32

    # Partial Linear(2208, 512): bf16 operands, f32 MXU accumulation.
    acc_ref[...] += jnp.dot(pooled.astype(jnp.bfloat16), w1_ref[...],
                            preferred_element_type=jnp.float32)

    @pl.when(k == pl.num_programs(0) - 1)
    def _():
        # bias + ReLU; BatchNorm1d (eval mode) is already folded into w2/b2.
        h = jnp.maximum(acc_ref[...] + b1_ref[...], 0.0)     # (B, 512)
        y = jnp.dot(h, w2_ref[...], preferred_element_type=jnp.float32)
        y = y + b2_ref[...]                                  # (B, num_cls)
        out_ref[...] = jax.nn.sigmoid(y)


def net_head_forward(features_nchw, params):
    """features_nchw: (B, 2208, 7, 7) float32 — densenet161 backbone output."""
    B, C, H, W = features_nchw.shape
    assert C == FEAT_C and H * W == HW

    # Native NCHW layout, just a contiguous reshape (no transpose op).
    x = features_nchw.reshape(B, C, H * W)                   # (B, 2208, 49)

    # Fold eval-mode BatchNorm1d(512) into the second Linear:
    #   BN(h) = h*scale + (beta - rmean*scale),  scale = gamma * rsqrt(rvar+eps)
    #   BN(h) @ w2 + b2 = h @ (scale[:,None]*w2) + ((beta - rmean*scale) @ w2 + b2)
    scale = params["gamma"] * lax.rsqrt(params["rvar"] + BN_EPS)      # (1, 512)
    w2f = params["w2"] * scale.reshape(HIDDEN, 1)                     # (512, ncls)
    b2f = params["b2"] + (params["beta"] - params["rmean"] * scale) @ params["w2"]

    nk = C // TK
    grid_spec = pltpu.PrefetchScalarGridSpec(
        num_scalar_prefetch=0,
        grid=(nk,),
        in_specs=[
            pl.BlockSpec((B, TK, HW), lambda k: (0, k, 0)),       # x K-chunk (f32)
            pl.BlockSpec((TK, HIDDEN), lambda k: (k, 0)),         # w1 K-chunk (bf16)
            pl.BlockSpec((1, HIDDEN), lambda k: (0, 0)),          # b1
            pl.BlockSpec((HIDDEN, NUM_CLS), lambda k: (0, 0)),    # w2 (BN folded)
            pl.BlockSpec((1, NUM_CLS), lambda k: (0, 0)),         # b2 (BN folded)
        ],
        out_specs=pl.BlockSpec((B, NUM_CLS), lambda k: (0, 0)),
        scratch_shapes=[pltpu.VMEM((B, HIDDEN), jnp.float32)],
    )

    return pl.pallas_call(
        head_kernel,
        out_shape=jax.ShapeDtypeStruct((B, NUM_CLS), jnp.float32),
        grid_spec=grid_spec,
        compiler_params=pltpu.CompilerParams(
            dimension_semantics=("arbitrary",)),
    )(x, params["w1"], params["b1"], w2f, b2f)


def reference_forward_f32(features_nchw, params):
    """Full-f32, un-folded reference of the original forward."""
    B, C, H, W = features_nchw.shape
    x = jnp.maximum(features_nchw, 0.0)
    pooled = jnp.mean(x.reshape(B, C, H * W), axis=-1)               # (B, C)
    h = pooled @ params["w1"].astype(jnp.float32) + params["b1"]
    h = jnp.maximum(h, 0.0)
    h = (h - params["rmean"]) * lax.rsqrt(params["rvar"] + BN_EPS)
    h = h * params["gamma"] + params["beta"]
    y = h @ params["w2"] + params["b2"]
    return jax.nn.sigmoid(y)


def reference_forward_matched(features_nchw, params):
    """Reference matching the kernel's bf16 path (un-folded BN)."""
    B, C, H, W = features_nchw.shape
    x = jnp.maximum(features_nchw, 0.0)
    pooled = jnp.mean(x.reshape(B, C, H * W), axis=-1)               # (B, C) f32
    h = jnp.dot(pooled.astype(jnp.bfloat16), params["w1"],
                preferred_element_type=jnp.float32) + params["b1"]
    h = jnp.maximum(h, 0.0)
    h = (h - params["rmean"]) * lax.rsqrt(params["rvar"] + BN_EPS)
    h = h * params["gamma"] + params["beta"]
    y = h @ params["w2"] + params["b2"]
    return jax.nn.sigmoid(y)


def init_params(key):
    ks = jax.random.split(key, 8)
    return {
        # Linear(2208, 512) — dominant weight stored in bf16 (streamed as-is).
        "w1": (jax.random.normal(ks[0], (FEAT_C, HIDDEN), jnp.float32) * 0.02
               ).astype(jnp.bfloat16),
        "b1": jax.random.normal(ks[1], (1, HIDDEN), jnp.float32) * 0.02,
        # BatchNorm1d(512) — non-trivial running stats / affine to exercise folding.
        "gamma": 1.0 + 0.1 * jax.random.normal(ks[2], (1, HIDDEN), jnp.float32),
        "beta": 0.05 * jax.random.normal(ks[3], (1, HIDDEN), jnp.float32),
        "rmean": 0.1 * jax.random.normal(ks[4], (1, HIDDEN), jnp.float32),
        "rvar": jax.random.uniform(ks[5], (1, HIDDEN), jnp.float32, 0.5, 1.5),
        # Linear(512, num_cls)
        "w2": jax.random.normal(ks[6], (HIDDEN, NUM_CLS), jnp.float32) * 0.05,
        "b2": jax.random.normal(ks[7], (1, NUM_CLS), jnp.float32) * 0.05,
    }


if __name__ == "__main__":
    key = jax.random.PRNGKey(0)
    k_feat, k_params = jax.random.split(key)

    B = 2
    # densenet161 output feature map for 224x224 inputs: (B, 2208, 7, 7)
    features = jax.random.normal(k_feat, (B, FEAT_C, 7, 7), jnp.float32)
    params = init_params(k_params)

    out = jax.jit(net_head_forward)(features, params)
    out = jax.block_until_ready(out)
    assert out.shape == (B, NUM_CLS)

    # Tight check vs. a reference that uses the same bf16 w1 / bf16 matmul inputs
    # (verifies BN folding + K-chunked accumulation are exact up to fp order).
    ref_m = reference_forward_matched(features, params)
    assert jnp.allclose(out, ref_m, atol=1e-4, rtol=0), "mismatch vs bf16-matched ref"

    # Loose check vs. the full-f32 unfused reference (bf16 w1 quantization only).
    ref_f = reference_forward_f32(features, params)
    assert jnp.allclose(out, ref_f, atol=1e-2, rtol=0), "mismatch vs f32 reference"

    print("KERNEL_OK")
</pallas_src>

<mosaic_0001>
module attributes {stable_mosaic.version = 11 : i64} {
  func.func @head_kernel(%arg0: i32, %arg1: memref<2x736x49xf32, #tpu.memory_space<vmem>>, %arg2: memref<736x512xbf16, #tpu.memory_space<vmem>>, %arg3: memref<1x512xf32, #tpu.memory_space<vmem>>, %arg4: memref<512x16xf32, #tpu.memory_space<vmem>>, %arg5: memref<1x16xf32, #tpu.memory_space<vmem>>, %arg6: memref<2x16xf32, #tpu.memory_space<vmem>>, %arg7: memref<2x512xf32, #tpu.memory_space<vmem>>) attributes {dimension_semantics = [#tpu.dimension_semantics<arbitrary>], iteration_bounds = array<i64: 3>, scalar_prefetch = 0 : i64, scratch_operands = 1 : i64, tpu.core_type = #tpu.core_type<tc>, window_params = [{transform_indices = @transform_0, window_bounds = array<i64: 2, 736, 49>}, {transform_indices = @transform_1, window_bounds = array<i64: 736, 512>}, {pipeline_mode = #tpu.pipeline_mode<synchronous>, transform_indices = @transform_2, window_bounds = array<i64: 1, 512>}, {pipeline_mode = #tpu.pipeline_mode<synchronous>, transform_indices = @transform_3, window_bounds = array<i64: 512, 16>}, {pipeline_mode = #tpu.pipeline_mode<synchronous>, transform_indices = @transform_4, window_bounds = array<i64: 1, 16>}, {pipeline_mode = #tpu.pipeline_mode<synchronous>, transform_indices = @transform_5, window_bounds = array<i64: 2, 16>}]} {
    %c0_i32 = arith.constant 0 : i32
    %0 = arith.cmpi eq, %arg0, %c0_i32 : i32
    %1 = arith.extui %0 : i1 to i32
    %c0_i32_0 = arith.constant 0 : i32
    %2 = arith.cmpi ne, %1, %c0_i32_0 : i32
    scf.if %2 {
      %cst_13 = arith.constant 0.000000e+00 : f32
      %18 = vector.broadcast %cst_13 : f32 to vector<2x512xf32>
      %c0_14 = arith.constant 0 : index
      %c0_15 = arith.constant 0 : index
      %19 = vector.load %arg7[%c0_14, %c0_15] : memref<2x512xf32, #tpu.memory_space<vmem>>, vector<2x512xf32>
      tpu.vector_store %arg7[%c0_14, %c0_15], %18 {strides = array<i32>} : memref<2x512xf32, #tpu.memory_space<vmem>>, vector<2x512xf32>,
    } else {
    }
    %c0 = arith.constant 0 : index
    %c0_1 = arith.constant 0 : index
    %c0_2 = arith.constant 0 : index
    %3 = vector.load %arg1[%c0, %c0_1, %c0_2] : memref<2x736x49xf32, #tpu.memory_space<vmem>>, vector<2x736x49xf32>
    %cst = arith.constant 0.000000e+00 : f32
    %4 = vector.broadcast %cst : f32 to vector<2x736x49xf32>
    %5 = arith.maximumf %3, %4 : vector<2x736x49xf32>
    %cst_3 = arith.constant dense<0.000000e+00> : vector<2x736xf32>
    %6 = vector.multi_reduction <add>, %5, %cst_3 [2] : vector<2x736x49xf32> to vector<2x736xf32>
    %cst_4 = arith.constant 4.900000e+01 : f32
    %7 = vector.broadcast %cst_4 : f32 to vector<2x736xf32>
    %8 = arith.divf %6, %7 : vector<2x736xf32>
    %c0_5 = arith.constant 0 : index
    %c0_6 = arith.constant 0 : index
    %9 = vector.load %arg7[%c0_5, %c0_6] : memref<2x512xf32, #tpu.memory_space<vmem>>, vector<2x512xf32>
    %10 = arith.truncf %8 : vector<2x736xf32> to vector<2x736xbf16>
    %c0_7 = arith.constant 0 : index
    %c0_8 = arith.constant 0 : index
    %11 = vector.load %arg2[%c0_7, %c0_8] : memref<736x512xbf16, #tpu.memory_space<vmem>>, vector<736x512xbf16>
    %cst_9 = arith.constant dense<0.000000e+00> : vector<2x512xf32>
    %12 = tpu.matmul %10, %11, %cst_9 {dimension_numbers = #tpu.dot_dimension_numbers<[1], [0], [0], [1], [0, 0, 1, 1], [], []>} : vector<2x736xbf16>, vector<736x512xbf16>, vector<2x512xf32> -> vector<2x512xf32>
    %13 = arith.addf %9, %12 : vector<2x512xf32>
    %c0_10 = arith.constant 0 : index
    %c0_11 = arith.constant 0 : index
    %14 = vector.load %arg7[%c0_10, %c0_11] : memref<2x512xf32, #tpu.memory_space<vmem>>, vector<2x512xf32>
    tpu.vector_store %arg7[%c0_10, %c0_11], %13 {strides = array<i32>} : memref<2x512xf32, #tpu.memory_space<vmem>>, vector<2x512xf32>,
    %c2_i32 = arith.constant 2 : i32
    %15 = arith.cmpi eq, %arg0, %c2_i32 : i32
    %16 = arith.extui %15 : i1 to i32
    %c0_i32_12 = arith.constant 0 : i32
    %17 = arith.cmpi ne, %16, %c0_i32_12 : i32
    scf.if %17 {
      %c0_13 = arith.constant 0 : index
      %c0_14 = arith.constant 0 : index
      %18 = vector.load %arg7[%c0_13, %c0_14] : memref<2x512xf32, #tpu.memory_space<vmem>>, vector<2x512xf32>
      %c0_15 = arith.constant 0 : index
      %c0_16 = arith.constant 0 : index
      %19 = vector.load %arg3[%c0_15, %c0_16] : memref<1x512xf32, #tpu.memory_space<vmem>>, vector<1x512xf32>
      %20 = vector.broadcast %19 : vector<1x512xf32> to vector<2x512xf32>
      %21 = arith.addf %18, %20 : vector<2x512xf32>
      %cst_17 = arith.constant 0.000000e+00 : f32
      %22 = vector.broadcast %cst_17 : f32 to vector<2x512xf32>
      %23 = arith.maximumf %21, %22 : vector<2x512xf32>
      %c0_18 = arith.constant 0 : index
      %c0_19 = arith.constant 0 : index
      %24 = vector.load %arg4[%c0_18, %c0_19] : memref<512x16xf32, #tpu.memory_space<vmem>>, vector<512x16xf32>
      %cst_20 = arith.constant dense<0.000000e+00> : vector<2x16xf32>
      %25 = tpu.matmul %23, %24, %cst_20 {dimension_numbers = #tpu.dot_dimension_numbers<[1], [0], [0], [1], [0, 0, 1, 1], [], []>} : vector<2x512xf32>, vector<512x16xf32>, vector<2x16xf32> -> vector<2x16xf32>
      %c0_21 = arith.constant 0 : index
      %c0_22 = arith.constant 0 : index
      %26 = vector.load %arg5[%c0_21, %c0_22] : memref<1x16xf32, #tpu.memory_space<vmem>>, vector<1x16xf32>
      %27 = vector.broadcast %26 : vector<1x16xf32> to vector<2x16xf32>
      %28 = arith.addf %25, %27 : vector<2x16xf32>
      %29 = arith.negf %28 : vector<2x16xf32>
      %30 = math.exp %29 : vector<2x16xf32>
      %cst_23 = arith.constant 1.000000e+00 : f32
      %31 = vector.broadcast %cst_23 : f32 to vector<2x16xf32>
      %32 = arith.addf %31, %30 : vector<2x16xf32>
      %33 = arith.divf %31, %32 : vector<2x16xf32>
      %c0_24 = arith.constant 0 : index
      %c0_25 = arith.constant 0 : index
      %34 = vector.load %arg6[%c0_24, %c0_25] : memref<2x16xf32, #tpu.memory_space<vmem>>, vector<2x16xf32>
      tpu.vector_store %arg6[%c0_24, %c0_25], %33 {strides = array<i32>} : memref<2x16xf32, #tpu.memory_space<vmem>>, vector<2x16xf32>,
    } else {
    }
    return
  }
  func.func @transform_0(%arg0: i32) -> (i32, i32, i32) {
    %c0_i32 = arith.constant 0 : i32
    %c0_i32_0 = arith.constant 0 : i32
    %c0_i32_1 = arith.constant 0 : i32
    return %c0_i32, %arg0, %c0_i32_0 : i32, i32, i32
  }
  func.func @transform_1(%arg0: i32) -> (i32, i32) {
    %c0_i32 = arith.constant 0 : i32
    %c0_i32_0 = arith.constant 0 : i32
    return %arg0, %c0_i32 : i32, i32
  }
  func.func @transform_2(%arg0: i32) -> (i32, i32) {
    %c0_i32 = arith.constant 0 : i32
    %c0_i32_0 = arith.constant 0 : i32
    %c0_i32_1 = arith.constant 0 : i32
    return %c0_i32, %c0_i32_0 : i32, i32
  }
  func.func @transform_3(%arg0: i32) -> (i32, i32) {
    %c0_i32 = arith.constant 0 : i32
    %c0_i32_0 = arith.constant 0 : i32
    %c0_i32_1 = arith.constant 0 : i32
    return %c0_i32, %c0_i32_0 : i32, i32
  }
  func.func @transform_4(%arg0: i32) -> (i32, i32) {
    %c0_i32 = arith.constant 0 : i32
    %c0_i32_0 = arith.constant 0 : i32
    %c0_i32_1 = arith.constant 0 : i32
    return %c0_i32, %c0_i32_0 : i32, i32
  }
  func.func @transform_5(%arg0: i32) -> (i32, i32) {
    %c0_i32 = arith.constant 0 : i32
    %c0_i32_0 = arith.constant 0 : i32
    %c0_i32_1 = arith.constant 0 : i32
    return %c0_i32, %c0_i32_0 : i32, i32
  }
}

</mosaic_0001>

<llo_original>
// kernel: net_head_forward.1
$region0: #{net_head_forward.1}
  #allocation0 [shape = 'u32[]', space=smem, size = 0x4, offset = 0x4, fixed_abs, tag = 'smem constant byte address 0x4 - core index']
  #allocation1 [shape = 'u32[144,128]{1,0:T(1,128)}', space=vmem, size = 0x12000, scoped, tag = 'internal scratch']
  #allocation2 [shape = 'f32[2,512]{1,0:T(2,128)}', space=vmem, size = 0x1000, scoped, tag = 'scratch operand']
  %s0 = inlined_call_operand.vmem [shape: f32[2,2208,49], index: 0, kind: input, shape index: {}]
  %s1 = inlined_call_operand.vmem [shape: bf16[2208,512], index: 1, kind: input, shape index: {}]
  %s2 = inlined_call_operand.vmem [shape: f32[1,512], index: 2, kind: input, shape index: {}]
  %s3 = inlined_call_operand.vmem [shape: f32[512,16], index: 3, kind: input, shape index: {}]
  %s4 = inlined_call_operand.vmem [shape: f32[1,16], index: 4, kind: input, shape index: {}]
  %s5 = inlined_call_operand.hbm [shape: f32[2,16], index: 5, kind: output, shape index: {}]
  %s6 = sld [smem:[#allocation0]]
  $region99: #{net_head_forward.1} parent=0
    _
  %s8 = ssub.s32 1, %s6
  %s9 = scalar_select 0, %s8, %s6
  $region1: #{net_head_forward.1} parent=0
    #allocation3 [shape = 'u8[1507328]{0}', space=vmem, size = 0x170000, scoped, tag = 'input window, operand 0']
    #allocation4 [shape = 'u8[1024]{0}', space=vmem, size = 0x400, scoped, tag = 'output window, operand 0, single buffered']
    #allocation5 [shape = 's32[2]{0}', space=sflag, size = 0x8, scoped, tag = 'scoped memory for net_head_forward.1']
    %10 = vsyncpa [#allocation5], 0
    loop: start=0, step=1, limit=5
    $region2: #{net_head_forward.1} parent=1 // loop_pre_header
      _
    $region3: #{net_head_forward.1} parent=1 // loop_header
      %s12 = sphi 0, %s16
      %p13 = scmp.ge.s32.totalorder %s12, 5
      %s22 = sphi 0, %s24
      %s25 = sphi 0, %s22
      %s26 = sphi 0, %s25
      %s42 = sphi 0, %s26
      %s48 = sphi 0, %s50
      %s51 = sphi 0, %s48
      %s52 = sphi 0, %s51
      %s68 = sphi 0, %s52
      %s72 = sphi 0, %s72
      %s74 = sphi 0, %s72
      %s75 = sphi 0, %s74
      %s89 = sphi 0, %s75
      %s93 = sphi 0, %s93
      %s95 = sphi 0, %s93
      %s96 = sphi 0, %s95
      %s110 = sphi 0, %s96
      %s114 = sphi 0, %s114
      %s116 = sphi 0, %s114
      %s117 = sphi 0, %s116
      %s131 = sphi 0, %s117
      %s135 = sphi 0, %s135
      %s137 = sphi 0, %s135
      %s138 = sphi 0, %s137
      %s152 = sphi 0, %s138
    $region4: #{net_head_forward.1} parent=1 // loop_header_branch
      %15 = sbr.rel (%p13) target = $region8
    $region5: #{net_head_forward.1} parent=1 // loop_body
      %s17 = ssub.s32 %s12, 1
      %s18 = ssub.s32 %s12, 2
      %s19 = sadd.s32 %s12, 1
      %s20 = ssub.s32 %s12, %s19
      %p21 = scmp.eq.s32.totalorder %s20, 0
      %s23 = sadd.s32 %s22, 1
      %s24 = scalar_select %p21, %s22, %s23
      %p27 = pneg %p21
      %p28 = scmp.eq.s32.totalorder %s12, 2
      %p29 = por %p27, %p28
      %p30 = scmp.ne.s32.totalorder %s22, %s25
      %p31 = scmp.eq.s32.totalorder %s12, 0
      %p32 = por %p30, %p31
      %p33 = scmp.ne.s32.totalorder %s22, %s25
      %p34 = scmp.eq.s32.totalorder %s17, 2
      %p35 = por %p33, %p34
      %p36 = scmp.ne.s32.totalorder %s25, %s26
      %p37 = scmp.eq.s32.totalorder %s17, 0
      %p38 = por %p36, %p37
      %p39 = scmp.ne.s32.totalorder %s25, %s26
      %p40 = scmp.eq.s32.totalorder %s18, 2
      %p41 = por %p39, %p40
      %p43 = scmp.ne.s32.totalorder %s26, %s42
      %p44 = scmp.eq.s32.totalorder %s18, 0
      %p45 = por %p43, %p44
      %s46 = ssub.s32 %s12, %s19
      %p47 = scmp.eq.s32.totalorder %s46, 0
      %s49 = sadd.s32 %s48, 1
      %s50 = scalar_select %p47, %s48, %s49
      %p53 = pneg %p47
      %p54 = scmp.eq.s32.totalorder %s12, 2
      %p55 = por %p53, %p54
      %p56 = scmp.ne.s32.totalorder %s48, %s51
      %p57 = scmp.eq.s32.totalorder %s12, 0
      %p58 = por %p56, %p57
      %p59 = scmp.ne.s32.totalorder %s48, %s51
      %p60 = scmp.eq.s32.totalorder %s17, 2
      %p61 = por %p59, %p60
      %p62 = scmp.ne.s32.totalorder %s51, %s52
      %p63 = scmp.eq.s32.totalorder %s17, 0
      %p64 = por %p62, %p63
      %p65 = scmp.ne.s32.totalorder %s51, %s52
      %p66 = scmp.eq.s32.totalorder %s18, 2
      %p67 = por %p65, %p66
      %p69 = scmp.ne.s32.totalorder %s52, %s68
      %p70 = scmp.eq.s32.totalorder %s18, 0
      %p71 = por %p69, %p70
      %s73 = sadd.s32 %s72, 1
      %p76 = scmp.eq.s32.totalorder %s12, 2
      %p77 = scmp.ne.s32.totalorder %s72, %s74
      %p78 = scmp.eq.s32.totalorder %s12, 0
      %p79 = por %p77, %p78
      %p80 = scmp.ne.s32.totalorder %s72, %s74
      %p81 = scmp.eq.s32.totalorder %s17, 2
      %p82 = por %p80, %p81
      %p83 = scmp.ne.s32.totalorder %s74, %s75
      %p84 = scmp.eq.s32.totalorder %s17, 0
      %p85 = por %p83, %p84
      %p86 = scmp.ne.s32.totalorder %s74, %s75
      %p87 = scmp.eq.s32.totalorder %s18, 2
      %p88 = por %p86, %p87
      %p90 = scmp.ne.s32.totalorder %s75, %s89
      %p91 = scmp.eq.s32.totalorder %s18, 0
      %p92 = por %p90, %p91
      %s94 = sadd.s32 %s93, 1
      %p97 = scmp.eq.s32.totalorder %s12, 2
      %p98 = scmp.ne.s32.totalorder %s93, %s95
      %p99 = scmp.eq.s32.totalorder %s12, 0
      %p100 = por %p98, %p99
      %p101 = scmp.ne.s32.totalorder %s93, %s95
      %p102 = scmp.eq.s32.totalorder %s17, 2
      %p103 = por %p101, %p102
      %p104 = scmp.ne.s32.totalorder %s95, %s96
      %p105 = scmp.eq.s32.totalorder %s17, 0
      %p106 = por %p104, %p105
      %p107 = scmp.ne.s32.totalorder %s95, %s96
      %p108 = scmp.eq.s32.totalorder %s18, 2
      %p109 = por %p107, %p108
      %p111 = scmp.ne.s32.totalorder %s96, %s110
      %p112 = scmp.eq.s32.totalorder %s18, 0
      %p113 = por %p111, %p112
      %s115 = sadd.s32 %s114, 1
      %p118 = scmp.eq.s32.totalorder %s12, 2
      %p119 = scmp.ne.s32.totalorder %s114, %s116
      %p120 = scmp.eq.s32.totalorder %s12, 0
      %p121 = por %p119, %p120
      %p122 = scmp.ne.s32.totalorder %s114, %s116
      %p123 = scmp.eq.s32.totalorder %s17, 2
      %p124 = por %p122, %p123
      %p125 = scmp.ne.s32.totalorder %s116, %s117
      %p126 = scmp.eq.s32.totalorder %s17, 0
      %p127 = por %p125, %p126
      %p128 = scmp.ne.s32.totalorder %s116, %s117
      %p129 = scmp.eq.s32.totalorder %s18, 2
      %p130 = por %p128, %p129
      %p132 = scmp.ne.s32.totalorder %s117, %s131
      %p133 = scmp.eq.s32.totalorder %s18, 0
      %p134 = por %p132, %p133
      %s136 = sadd.s32 %s135, 1
      %p139 = scmp.eq.s32.totalorder %s12, 2
      %p140 = scmp.ne.s32.totalorder %s135, %s137
      %p141 = scmp.eq.s32.totalorder %s12, 0
      %p142 = por %p140, %p141
      %p143 = scmp.ne.s32.totalorder %s135, %s137
      %p144 = scmp.eq.s32.totalorder %s17, 2
      %p145 = por %p143, %p144
      %p146 = scmp.ne.s32.totalorder %s137, %s138
      %p147 = scmp.eq.s32.totalorder %s17, 0
      %p148 = por %p146, %p147
      %p149 = scmp.ne.s32.totalorder %s137, %s138
      %p150 = scmp.eq.s32.totalorder %s18, 2
      %p151 = por %p149, %p150
      %p153 = scmp.ne.s32.totalorder %s138, %s152
      %p154 = scmp.eq.s32.totalorder %s18, 0
      %p155 = por %p153, %p154
      %p156 = scmp.le.s32.totalorder 1, %s12
      %p157 = scmp.lt.s32.totalorder %s12, 4
      %p158 = pnand %p156, %p157
      %p159 = pneg %p158
      // Predicated region
      $region9: #{net_head_forward.1} parent=5 // pred_check
        _
      $region10: #{net_head_forward.1} parent=5 // pred_check_branch
        %161 = sbr.rel (%p158) target = $region12
      $region11: #{net_head_forward.1} parent=5 // pred_region
        %s162 = ssub.s32 %s12, 1
        // Predicated region
        $region13: #{net_head_forward.1} parent=11 // pred_check
          %p163 = pneg %p85
        $region14: #{net_head_forward.1} parent=11 // pred_check_branch
          %165 = sbr.rel (%p163) target = $region16
        $region15: #{net_head_forward.1} parent=11 // pred_region
          _
        $region16: #{net_head_forward.1} parent=11 // pred_fallthru
          _
        // Predicated region
        $region17: #{net_head_forward.1} parent=11 // pred_check
          %p166 = pneg %p106
        $region18: #{net_head_forward.1} parent=11 // pred_check_branch
          %168 = sbr.rel (%p166) target = $region20
        $region19: #{net_head_forward.1} parent=11 // pred_region
          _
        $region20: #{net_head_forward.1} parent=11 // pred_fallthru
          _
        // Predicated region
        $region21: #{net_head_forward.1} parent=11 // pred_check
          %p169 = pneg %p127
        $region22: #{net_head_forward.1} parent=11 // pred_check_branch
          %171 = sbr.rel (%p169) target = $region24
        $region23: #{net_head_forward.1} parent=11 // pred_region
          _
        $region24: #{net_head_forward.1} parent=11 // pred_fallthru
          _
      $region12: #{net_head_forward.1} parent=5 // pred_fallthru
        _
      %p172 = scmp.lt.s32.totalorder %s12, 3
      // Predicated region
      $region25: #{net_head_forward.1} parent=5 // pred_check
        %p173 = pneg %p172
      $region26: #{net_head_forward.1} parent=5 // pred_check_branch
        %175 = sbr.rel (%p173) target = $region28
      $region27: #{net_head_forward.1} parent=5 // pred_region
        // Predicated region
        $region29: #{net_head_forward.1} parent=27 // pred_check
          %p176 = pneg %p32
        $region30: #{net_head_forward.1} parent=27 // pred_check_branch
          %178 = sbr.rel (%p176) target = $region32
        $region31: #{net_head_forward.1} parent=27 // pred_region
          %s179 = sand.u32 %s22, 1
          %s180 = sand.u32 %s22, 1
          %s181 = smul.addr %s180, 1472
          %s182 = scalar_lea.vmem [#allocation3], %s181
          %s183 = smul.u32 92, %s12
          %s184 = smul.addr %s183, 8
          %s185 = scalar_lea.vmem %s0, %s184
          // Predicated region
          $region33: #{net_head_forward.1} parent=31 // pred_check
            _
          $region34: #{net_head_forward.1} parent=31 // pred_check_branch
            %187 = sbr.rel (0) target = $region36
          $region35: #{net_head_forward.1} parent=31 // pred_region
            // Predicated region
            $region37: #{net_head_forward.1} parent=35 // pred_check
              _
            $region38: #{net_head_forward.1} parent=35 // pred_check_branch
              %189 = sbr.rel (0) target = $region40
            $region39: #{net_head_forward.1} parent=35 // pred_region
              // Predicated region
              $region52: #{net_head_forward.1} parent=39 // pred_check
                _
              $region53: #{net_head_forward.1} parent=39 // pred_check_branch
                %571 = sbr.rel (0) target = $region55
              $region54: #{net_head_forward.1} parent=39 // pred_region
                loop: start=0, step=1, limit=1
                $region56: #{net_head_forward.1} parent=54 // loop_pre_header
                  _
                $region57: #{net_head_forward.1} parent=54 // loop_header
                  %s573 = sphi 0, %s577
                  %p574 = scmp.ge.s32.totalorder %s573, 1
                  %s578 = sphi %s185, %s185
                  %s579 = sphi %s182, %s182
                $region58: #{net_head_forward.1} parent=54 // loop_header_branch
                  %576 = sbr.rel (%p574) target = $region62
                $region59: #{net_head_forward.1} parent=54 // loop_body
                  %v580 = vld [vmem:[%s578] sm:$0xff]
                  %581 = vst [vmem:[%s579] sm:$0xff] %v580
                  %v582 = vld [vmem:[%s578 + $0x8] sm:$0xff]
                  %583 = vst [vmem:[%s579 + $0x8] sm:$0xff] %v582
                  %v584 = vld [vmem:[%s578 + $0x10] sm:$0xff]
                  %585 = vst [vmem:[%s579 + $0x10] sm:$0xff] %v584
                  %v586 = vld [vmem:[%s578 + $0x18] sm:$0xff]
                  %587 = vst [vmem:[%s579 + $0x18] sm:$0xff] %v586
                  %v588 = vld [vmem:[%s578 + $0x20] sm:$0xff]
                  %589 = vst [vmem:[%s579 + $0x20] sm:$0xff] %v588
                  %v590 = vld [vmem:[%s578 + $0x28] sm:$0xff]
                  %591 = vst [vmem:[%s579 + $0x28] sm:$0xff] %v590
                  %v592 = vld [vmem:[%s578 + $0x30] sm:$0xff]
                  %593 = vst [vmem:[%s579 + $0x30] sm:$0xff] %v592
                  %v594 = vld [vmem:[%s578 + $0x38] sm:$0xff]
                  %595 = vst [vmem:[%s579 + $0x38] sm:$0xff] %v594
                  %v596 = vld [vmem:[%s578 + $0x40] sm:$0xff]
                  %597 = vst [vmem:[%s579 + $0x40] sm:$0xff] %v596
                  %v598 = vld [vmem:[%s578 + $0x48] sm:$0xff]
                  %599 = vst [vmem:[%s579 + $0x48] sm:$0xff] %v598
                  %v600 = vld [vmem:[%s578 + $0x50] sm:$0xff]
                  %601 = vst [vmem:[%s579 + $0x50] sm:$0xff] %v600
                  %v602 = vld [vmem:[%s578 + $0x58] sm:$0xff]
                  %603 = vst [vmem:[%s579 + $0x58] sm:$0xff] %v602
                  %v604 = vld [vmem:[%s578 + $0x60] sm:$0xff]
                  %605 = vst [vmem:[%s579 + $0x60] sm:$0xff] %v604
                  %v606 = vld [vmem:[%s578 + $0x68] sm:$0xff]
                  %607 = vst [vmem:[%s579 + $0x68] sm:$0xff] %v606
                  %v608 = vld [vmem:[%s578 + $0x70] sm:$0xff]
                  %609 = vst [vmem:[%s579 + $0x70] sm:$0xff] %v608
                  %v610 = vld [vmem:[%s578 + $0x78] sm:$0xff]
                  %611 = vst [vmem:[%s579 + $0x78] sm:$0xff] %v610
                  %v612 = vld [vmem:[%s578 + $0x80] sm:$0xff]
                  %613 = vst [vmem:[%s579 + $0x80] sm:$0xff] %v612
                  %v614 = vld [vmem:[%s578 + $0x88] sm:$0xff]
                  %615 = vst [vmem:[%s579 + $0x88] sm:$0xff] %v614
                  %v616 = vld [vmem:[%s578 + $0x90] sm:$0xff]
                  %617 = vst [vmem:[%s579 + $0x90] sm:$0xff] %v616
                  %v618 = vld [vmem:[%s578 + $0x98] sm:$0xff]
                  %619 = vst [vmem:[%s579 + $0x98] sm:$0xff] %v618
                  %v620 = vld [vmem:[%s578 + $0xa0] sm:$0xff]
                  %621 = vst [vmem:[%s579 + $0xa0] sm:$0xff] %v620
                  %v622 = vld [vmem:[%s578 + $0xa8] sm:$0xff]
                  %623 = vst [vmem:[%s579 + $0xa8] sm:$0xff] %v622
                  %v624 = vld [vmem:[%s578 + $0xb0] sm:$0xff]
                  %625 = vst [vmem:[%s579 + $0xb0] sm:$0xff] %v624
                  %v626 = vld [vmem:[%s578 + $0xb8] sm:$0xff]
                  %627 = vst [vmem:[%s579 + $0xb8] sm:$0xff] %v626
                  %v628 = vld [vmem:[%s578 + $0xc0] sm:$0xff]
                  %629 = vst [vmem:[%s579 + $0xc0] sm:$0xff] %v628
                  %v630 = vld [vmem:[%s578 + $0xc8] sm:$0xff]
                  %631 = vst [vmem:[%s579 + $0xc8] sm:$0xff] %v630
                  %v632 = vld [vmem:[%s578 + $0xd0] sm:$0xff]
                  %633 = vst [vmem:[%s579 + $0xd0] sm:$0xff] %v632
                  %v634 = vld [vmem:[%s578 + $0xd8] sm:$0xff]
                  %635 = vst [vmem:[%s579 + $0xd8] sm:$0xff] %v634
                  %v636 = vld [vmem:[%s578 + $0xe0] sm:$0xff]
                  %637 = vst [vmem:[%s579 + $0xe0] sm:$0xff] %v636
                  %v638 = vld [vmem:[%s578 + $0xe8] sm:$0xff]
                  %639 = vst [vmem:[%s579 + $0xe8] sm:$0xff] %v638
                  %v640 = vld [vmem:[%s578 + $0xf0] sm:$0xff]
                  %641 = vst [vmem:[%s579 + $0xf0] sm:$0xff] %v640
                  %v642 = vld [vmem:[%s578 + $0xf8] sm:$0xff]
                  %643 = vst [vmem:[%s579 + $0xf8] sm:$0xff] %v642
                  %v644 = vld [vmem:[%s578 + $0x100] sm:$0xff]
                  %645 = vst [vmem:[%s579 + $0x100] sm:$0xff] %v644
                  %v646 = vld [vmem:[%s578 + $0x108] sm:$0xff]
                  %647 = vst [vmem:[%s579 + $0x108] sm:$0xff] %v646
                  %v648 = vld [vmem:[%s578 + $0x110] sm:$0xff]
                  %649 = vst [vmem:[%s579 + $0x110] sm:$0xff] %v648
                  %v650 = vld [vmem:[%s578 + $0x118] sm:$0xff]
                  %651 = vst [vmem:[%s579 + $0x118] sm:$0xff] %v650
                  %v652 = vld [vmem:[%s578 + $0x120] sm:$0xff]
                  %653 = vst [vmem:[%s579 + $0x120] sm:$0xff] %v652
                  %v654 = vld [vmem:[%s578 + $0x128] sm:$0xff]
                  %655 = vst [vmem:[%s579 + $0x128] sm:$0xff] %v654
                  %v656 = vld [vmem:[%s578 + $0x130] sm:$0xff]
                  %657 = vst [vmem:[%s579 + $0x130] sm:$0xff] %v656
                  %v658 = vld [vmem:[%s578 + $0x138] sm:$0xff]
                  %659 = vst [vmem:[%s579 + $0x138] sm:$0xff] %v658
                  %v660 = vld [vmem:[%s578 + $0x140] sm:$0xff]
                  %661 = vst [vmem:[%s579 + $0x140] sm:$0xff] %v660
                  %v662 = vld [vmem:[%s578 + $0x148] sm:$0xff]
                  %663 = vst [vmem:[%s579 + $0x148] sm:$0xff] %v662
                  %v664 = vld [vmem:[%s578 + $0x150] sm:$0xff]
                  %665 = vst [vmem:[%s579 + $0x150] sm:$0xff] %v664
                  %v666 = vld [vmem:[%s578 + $0x158] sm:$0xff]
                  %667 = vst [vmem:[%s579 + $0x158] sm:$0xff] %v666
                  %v668 = vld [vmem:[%s578 + $0x160] sm:$0xff]
                  %669 = vst [vmem:[%s579 + $0x160] sm:$0xff] %v668
                  %v670 = vld [vmem:[%s578 + $0x168] sm:$0xff]
                  %671 = vst [vmem:[%s579 + $0x168] sm:$0xff] %v670
                  %v672 = vld [vmem:[%s578 + $0x170] sm:$0xff]
                  %673 = vst [vmem:[%s579 + $0x170] sm:$0xff] %v672
                  %v674 = vld [vmem:[%s578 + $0x178] sm:$0xff]
                  %675 = vst [vmem:[%s579 + $0x178] sm:$0xff] %v674
                  %v676 = vld [vmem:[%s578 + $0x180] sm:$0xff]
                  %677 = vst [vmem:[%s579 + $0x180] sm:$0xff] %v676
                  %v678 = vld [vmem:[%s578 + $0x188] sm:$0xff]
                  %679 = vst [vmem:[%s579 + $0x188] sm:$0xff] %v678
                  %v680 = vld [vmem:[%s578 + $0x190] sm:$0xff]
                  %681 = vst [vmem:[%s579 + $0x190] sm:$0xff] %v680
                  %v682 = vld [vmem:[%s578 + $0x198] sm:$0xff]
                  %683 = vst [vmem:[%s579 + $0x198] sm:$0xff] %v682
                  %v684 = vld [vmem:[%s578 + $0x1a0] sm:$0xff]
                  %685 = vst [vmem:[%s579 + $0x1a0] sm:$0xff] %v684
                  %v686 = vld [vmem:[%s578 + $0x1a8] sm:$0xff]
                  %687 = vst [vmem:[%s579 + $0x1a8] sm:$0xff] %v686
                  %v688 = vld [vmem:[%s578 + $0x1b0] sm:$0xff]
                  %689 = vst [vmem:[%s579 + $0x1b0] sm:$0xff] %v688
                  %v690 = vld [vmem:[%s578 + $0x1b8] sm:$0xff]
                  %691 = vst [vmem:[%s579 + $0x1b8] sm:$0xff] %v690
                  %v692 = vld [vmem:[%s578 + $0x1c0] sm:$0xff]
                  %693 = vst [vmem:[%s579 + $0x1c0] sm:$0xff] %v692
                  %v694 = vld [vmem:[%s578 + $0x1c8] sm:$0xff]
                  %695 = vst [vmem:[%s579 + $0x1c8] sm:$0xff] %v694
                  %v696 = vld [vmem:[%s578 + $0x1d0] sm:$0xff]
                  %697 = vst [vmem:[%s579 + $0x1d0] sm:$0xff] %v696
                  %v698 = vld [vmem:[%s578 + $0x1d8] sm:$0xff]
                  %699 = vst [vmem:[%s579 + $0x1d8] sm:$0xff] %v698
                  %v700 = vld [vmem:[%s578 + $0x1e0] sm:$0xff]
                  %701 = vst [vmem:[%s579 + $0x1e0] sm:$0xff] %v700
                  %v702 = vld [vmem:[%s578 + $0x1e8] sm:$0xff]
                  %703 = vst [vmem:[%s579 + $0x1e8] sm:$0xff] %v702
                  %v704 = vld [vmem:[%s578 + $0x1f0] sm:$0xff]
                  %705 = vst [vmem:[%s579 + $0x1f0] sm:$0xff] %v704
                  %v706 = vld [vmem:[%s578 + $0x1f8] sm:$0xff]
                  %707 = vst [vmem:[%s579 + $0x1f8] sm:$0xff] %v706
                  %v708 = vld [vmem:[%s578 + $0x200] sm:$0xff]
                  %709 = vst [vmem:[%s579 + $0x200] sm:$0xff] %v708
                  %v710 = vld [vmem:[%s578 + $0x208] sm:$0xff]
                  %711 = vst [vmem:[%s579 + $0x208] sm:$0xff] %v710
                  %v712 = vld [vmem:[%s578 + $0x210] sm:$0xff]
                  %713 = vst [vmem:[%s579 + $0x210] sm:$0xff] %v712
                  %v714 = vld [vmem:[%s578 + $0x218] sm:$0xff]
                  %715 = vst [vmem:[%s579 + $0x218] sm:$0xff] %v714
                  %v716 = vld [vmem:[%s578 + $0x220] sm:$0xff]
                  %717 = vst [vmem:[%s579 + $0x220] sm:$0xff] %v716
                  %v718 = vld [vmem:[%s578 + $0x228] sm:$0xff]
                  %719 = vst [vmem:[%s579 + $0x228] sm:$0xff] %v718
                  %v720 = vld [vmem:[%s578 + $0x230] sm:$0xff]
                  %721 = vst [vmem:[%s579 + $0x230] sm:$0xff] %v720
                  %v722 = vld [vmem:[%s578 + $0x238] sm:$0xff]
                  %723 = vst [vmem:[%s579 + $0x238] sm:$0xff] %v722
                  %v724 = vld [vmem:[%s578 + $0x240] sm:$0xff]
                  %725 = vst [vmem:[%s579 + $0x240] sm:$0xff] %v724
                  %v726 = vld [vmem:[%s578 + $0x248] sm:$0xff]
                  %727 = vst [vmem:[%s579 + $0x248] sm:$0xff] %v726
                  %v728 = vld [vmem:[%s578 + $0x250] sm:$0xff]
                  %729 = vst [vmem:[%s579 + $0x250] sm:$0xff] %v728
                  %v730 = vld [vmem:[%s578 + $0x258] sm:$0xff]
                  %731 = vst [vmem:[%s579 + $0x258] sm:$0xff] %v730
                  %v732 = vld [vmem:[%s578 + $0x260] sm:$0xff]
                  %733 = vst [vmem:[%s579 + $0x260] sm:$0xff] %v732
                  %v734 = vld [vmem:[%s578 + $0x268] sm:$0xff]
                  %735 = vst [vmem:[%s579 + $0x268] sm:$0xff] %v734
                  %v736 = vld [vmem:[%s578 + $0x270] sm:$0xff]
                  %737 = vst [vmem:[%s579 + $0x270] sm:$0xff] %v736
                  %v738 = vld [vmem:[%s578 + $0x278] sm:$0xff]
                  %739 = vst [vmem:[%s579 + $0x278] sm:$0xff] %v738
                  %v740 = vld [vmem:[%s578 + $0x280] sm:$0xff]
                  %741 = vst [vmem:[%s579 + $0x280] sm:$0xff] %v740
                  %v742 = vld [vmem:[%s578 + $0x288] sm:$0xff]
                  %743 = vst [vmem:[%s579 + $0x288] sm:$0xff] %v742
                  %v744 = vld [vmem:[%s578 + $0x290] sm:$0xff]
                  %745 = vst [vmem:[%s579 + $0x290] sm:$0xff] %v744
                  %v746 = vld [vmem:[%s578 + $0x298] sm:$0xff]
                  %747 = vst [vmem:[%s579 + $0x298] sm:$0xff] %v746
                  %v748 = vld [vmem:[%s578 + $0x2a0] sm:$0xff]
                  %749 = vst [vmem:[%s579 + $0x2a0] sm:$0xff] %v748
                  %v750 = vld [vmem:[%s578 + $0x2a8] sm:$0xff]
                  %751 = vst [vmem:[%s579 + $0x2a8] sm:$0xff] %v750
                  %v752 = vld [vmem:[%s578 + $0x2b0] sm:$0xff]
                  %753 = vst [vmem:[%s579 + $0x2b0] sm:$0xff] %v752
                  %v754 = vld [vmem:[%s578 + $0x2b8] sm:$0xff]
                  %755 = vst [vmem:[%s579 + $0x2b8] sm:$0xff] %v754
                  %v756 = vld [vmem:[%s578 + $0x2c0] sm:$0xff]
                  %757 = vst [vmem:[%s579 + $0x2c0] sm:$0xff] %v756
                  %v758 = vld [vmem:[%s578 + $0x2c8] sm:$0xff]
                  %759 = vst [vmem:[%s579 + $0x2c8] sm:$0xff] %v758
                  %v760 = vld [vmem:[%s578 + $0x2d0] sm:$0xff]
                  %761 = vst [vmem:[%s579 + $0x2d0] sm:$0xff] %v760
                  %v762 = vld [vmem:[%s578 + $0x2d8] sm:$0xff]
                  %763 = vst [vmem:[%s579 + $0x2d8] sm:$0xff] %v762
                  %v764 = vld [vmem:[%s578 + $0x8a0] sm:$0xff]
                  %765 = vst [vmem:[%s579 + $0x2e0] sm:$0xff] %v764
                  %v766 = vld [vmem:[%s578 + $0x8a8] sm:$0xff]
                  %767 = vst [vmem:[%s579 + $0x2e8] sm:$0xff] %v766
                  %v768 = vld [vmem:[%s578 + $0x8b0] sm:$0xff]
                  %769 = vst [vmem:[%s579 + $0x2f0] sm:$0xff] %v768
                  %v770 = vld [vmem:[%s578 + $0x8b8] sm:$0xff]
                  %771 = vst [vmem:[%s579 + $0x2f8] sm:$0xff] %v770
                  %v772 = vld [vmem:[%s578 + $0x8c0] sm:$0xff]
                  %773 = vst [vmem:[%s579 + $0x300] sm:$0xff] %v772
                  %v774 = vld [vmem:[%s578 + $0x8c8] sm:$0xff]
                  %775 = vst [vmem:[%s579 + $0x308] sm:$0xff] %v774
                  %v776 = vld [vmem:[%s578 + $0x8d0] sm:$0xff]
                  %777 = vst [vmem:[%s579 + $0x310] sm:$0xff] %v776
                  %v778 = vld [vmem:[%s578 + $0x8d8] sm:$0xff]
                  %779 = vst [vmem:[%s579 + $0x318] sm:$0xff] %v778
                  %v780 = vld [vmem:[%s578 + $0x8e0] sm:$0xff]
                  %781 = vst [vmem:[%s579 + $0x320] sm:$0xff] %v780
                  %v782 = vld [vmem:[%s578 + $0x8e8] sm:$0xff]
                  %783 = vst [vmem:[%s579 + $0x328] sm:$0xff] %v782
                  %v784 = vld [vmem:[%s578 + $0x8f0] sm:$0xff]
                  %785 = vst [vmem:[%s579 + $0x330] sm:$0xff] %v784
                  %v786 = vld [vmem:[%s578 + $0x8f8] sm:$0xff]
                  %787 = vst [vmem:[%s579 + $0x338] sm:$0xff] %v786
                  %v788 = vld [vmem:[%s578 + $0x900] sm:$0xff]
                  %789 = vst [vmem:[%s579 + $0x340] sm:$0xff] %v788
                  %v790 = vld [vmem:[%s578 + $0x908] sm:$0xff]
                  %791 = vst [vmem:[%s579 + $0x348] sm:$0xff] %v790
                  %v792 = vld [vmem:[%s578 + $0x910] sm:$0xff]
                  %793 = vst [vmem:[%s579 + $0x350] sm:$0xff] %v792
                  %v794 = vld [vmem:[%s578 + $0x918] sm:$0xff]
                  %795 = vst [vmem:[%s579 + $0x358] sm:$0xff] %v794
                  %v796 = vld [vmem:[%s578 + $0x920] sm:$0xff]
                  %797 = vst [vmem:[%s579 + $0x360] sm:$0xff] %v796
                  %v798 = vld [vmem:[%s578 + $0x928] sm:$0xff]
                  %799 = vst [vmem:[%s579 + $0x368] sm:$0xff] %v798
                  %v800 = vld [vmem:[%s578 + $0x930] sm:$0xff]
                  %801 = vst [vmem:[%s579 + $0x370] sm:$0xff] %v800
                  %v802 = vld [vmem:[%s578 + $0x938] sm:$0xff]
                  %803 = vst [vmem:[%s579 + $0x378] sm:$0xff] %v802
                  %v804 = vld [vmem:[%s578 + $0x940] sm:$0xff]
                  %805 = vst [vmem:[%s579 + $0x380] sm:$0xff] %v804
                  %v806 = vld [vmem:[%s578 + $0x948] sm:$0xff]
                  %807 = vst [vmem:[%s579 + $0x388] sm:$0xff] %v806
                  %v808 = vld [vmem:[%s578 + $0x950] sm:$0xff]
                  %809 = vst [vmem:[%s579 + $0x390] sm:$0xff] %v808
                  %v810 = vld [vmem:[%s578 + $0x958] sm:$0xff]
                  %811 = vst [vmem:[%s579 + $0x398] sm:$0xff] %v810
                  %v812 = vld [vmem:[%s578 + $0x960] sm:$0xff]
                  %813 = vst [vmem:[%s579 + $0x3a0] sm:$0xff] %v812
                  %v814 = vld [vmem:[%s578 + $0x968] sm:$0xff]
                  %815 = vst [vmem:[%s579 + $0x3a8] sm:$0xff] %v814
                  %v816 = vld [vmem:[%s578 + $0x970] sm:$0xff]
                  %817 = vst [vmem:[%s579 + $0x3b0] sm:$0xff] %v816
                  %v818 = vld [vmem:[%s578 + $0x978] sm:$0xff]
                  %819 = vst [vmem:[%s579 + $0x3b8] sm:$0xff] %v818
                  %v820 = vld [vmem:[%s578 + $0x980] sm:$0xff]
                  %821 = vst [vmem:[%s579 + $0x3c0] sm:$0xff] %v820
                  %v822 = vld [vmem:[%s578 + $0x988] sm:$0xff]
                  %823 = vst [vmem:[%s579 + $0x3c8] sm:$0xff] %v822
                  %v824 = vld [vmem:[%s578 + $0x990] sm:$0xff]
                  %825 = vst [vmem:[%s579 + $0x3d0] sm:$0xff] %v824
                  %v826 = vld [vmem:[%s578 + $0x998] sm:$0xff]
                  %827 = vst [vmem:[%s579 + $0x3d8] sm:$0xff] %v826
                  %v828 = vld [vmem:[%s578 + $0x9a0] sm:$0xff]
                  %829 = vst [vmem:[%s579 + $0x3e0] sm:$0xff] %v828
                  %v830 = vld [vmem:[%s578 + $0x9a8] sm:$0xff]
                  %831 = vst [vmem:[%s579 + $0x3e8] sm:$0xff] %v830
                  %v832 = vld [vmem:[%s578 + $0x9b0] sm:$0xff]
                  %833 = vst [vmem:[%s579 + $0x3f0] sm:$0xff] %v832
                  %v834 = vld [vmem:[%s578 + $0x9b8] sm:$0xff]
                  %835 = vst [vmem:[%s579 + $0x3f8] sm:$0xff] %v834
                  %v836 = vld [vmem:[%s578 + $0x9c0] sm:$0xff]
                  %837 = vst [vmem:[%s579 + $0x400] sm:$0xff] %v836
                  %v838 = vld [vmem:[%s578 + $0x9c8] sm:$0xff]
                  %839 = vst [vmem:[%s579 + $0x408] sm:$0xff] %v838
                  %v840 = vld [vmem:[%s578 + $0x9d0] sm:$0xff]
                  %841 = vst [vmem:[%s579 + $0x410] sm:$0xff] %v840
                  %v842 = vld [vmem:[%s578 + $0x9d8] sm:$0xff]
                  %843 = vst [vmem:[%s579 + $0x418] sm:$0xff] %v842
                  %v844 = vld [vmem:[%s578 + $0x9e0] sm:$0xff]
                  %845 = vst [vmem:[%s579 + $0x420] sm:$0xff] %v844
                  %v846 = vld [vmem:[%s578 + $0x9e8] sm:$0xff]
                  %847 = vst [vmem:[%s579 + $0x428] sm:$0xff] %v846
                  %v848 = vld [vmem:[%s578 + $0x9f0] sm:$0xff]
                  %849 = vst [vmem:[%s579 + $0x430] sm:$0xff] %v848
                  %v850 = vld [vmem:[%s578 + $0x9f8] sm:$0xff]
                  %851 = vst [vmem:[%s579 + $0x438] sm:$0xff] %v850
                  %v852 = vld [vmem:[%s578 + $0xa00] sm:$0xff]
                  %853 = vst [vmem:[%s579 + $0x440] sm:$0xff] %v852
                  %v854 = vld [vmem:[%s578 + $0xa08] sm:$0xff]
                  %855 = vst [vmem:[%s579 + $0x448] sm:$0xff] %v854
                  %v856 = vld [vmem:[%s578 + $0xa10] sm:$0xff]
                  %857 = vst [vmem:[%s579 + $0x450] sm:$0xff] %v856
                  %v858 = vld [vmem:[%s578 + $0xa18] sm:$0xff]
                  %859 = vst [vmem:[%s579 + $0x458] sm:$0xff] %v858
                  %v860 = vld [vmem:[%s578 + $0xa20] sm:$0xff]
                  %861 = vst [vmem:[%s579 + $0x460] sm:$0xff] %v860
                  %v862 = vld [vmem:[%s578 + $0xa28] sm:$0xff]
                  %863 = vst [vmem:[%s579 + $0x468] sm:$0xff] %v862
                  %v864 = vld [vmem:[%s578 + $0xa30] sm:$0xff]
                  %865 = vst [vmem:[%s579 + $0x470] sm:$0xff] %v864
                  %v866 = vld [vmem:[%s578 + $0xa38] sm:$0xff]
                  %867 = vst [vmem:[%s579 + $0x478] sm:$0xff] %v866
                  %v868 = vld [vmem:[%s578 + $0xa40] sm:$0xff]
                  %869 = vst [vmem:[%s579 + $0x480] sm:$0xff] %v868
                  %v870 = vld [vmem:[%s578 + $0xa48] sm:$0xff]
                  %871 = vst [vmem:[%s579 + $0x488] sm:$0xff] %v870
                  %v872 = vld [vmem:[%s578 + $0xa50] sm:$0xff]
                  %873 = vst [vmem:[%s579 + $0x490] sm:$0xff] %v872
                  %v874 = vld [vmem:[%s578 + $0xa58] sm:$0xff]
                  %875 = vst [vmem:[%s579 + $0x498] sm:$0xff] %v874
                  %v876 = vld [vmem:[%s578 + $0xa60] sm:$0xff]
                  %877 = vst [vmem:[%s579 + $0x4a0] sm:$0xff] %v876
                  %v878 = vld [vmem:[%s578 + $0xa68] sm:$0xff]
                  %879 = vst [vmem:[%s579 + $0x4a8] sm:$0xff] %v878
                  %v880 = vld [vmem:[%s578 + $0xa70] sm:$0xff]
                  %881 = vst [vmem:[%s579 + $0x4b0] sm:$0xff] %v880
                  %v882 = vld [vmem:[%s578 + $0xa78] sm:$0xff]
                  %883 = vst [vmem:[%s579 + $0x4b8] sm:$0xff] %v882
                  %v884 = vld [vmem:[%s578 + $0xa80] sm:$0xff]
                  %885 = vst [vmem:[%s579 + $0x4c0] sm:$0xff] %v884
                  %v886 = vld [vmem:[%s578 + $0xa88] sm:$0xff]
                  %887 = vst [vmem:[%s579 + $0x4c8] sm:$0xff] %v886
                  %v888 = vld [vmem:[%s578 + $0xa90] sm:$0xff]
                  %889 = vst [vmem:[%s579 + $0x4d0] sm:$0xff] %v888
                  %v890 = vld [vmem:[%s578 + $0xa98] sm:$0xff]
                  %891 = vst [vmem:[%s579 + $0x4d8] sm:$0xff] %v890
                  %v892 = vld [vmem:[%s578 + $0xaa0] sm:$0xff]
                  %893 = vst [vmem:[%s579 + $0x4e0] sm:$0xff] %v892
                  %v894 = vld [vmem:[%s578 + $0xaa8] sm:$0xff]
                  %895 = vst [vmem:[%s579 + $0x4e8] sm:$0xff] %v894
                  %v896 = vld [vmem:[%s578 + $0xab0] sm:$0xff]
                  %897 = vst [vmem:[%s579 + $0x4f0] sm:$0xff] %v896
                  %v898 = vld [vmem:[%s578 + $0xab8] sm:$0xff]
                  %899 = vst [vmem:[%s579 + $0x4f8] sm:$0xff] %v898
                  %v900 = vld [vmem:[%s578 + $0xac0] sm:$0xff]
                  %901 = vst [vmem:[%s579 + $0x500] sm:$0xff] %v900
                  %v902 = vld [vmem:[%s578 + $0xac8] sm:$0xff]
                  %903 = vst [vmem:[%s579 + $0x508] sm:$0xff] %v902
                  %v904 = vld [vmem:[%s578 + $0xad0] sm:$0xff]
                  %905 = vst [vmem:[%s579 + $0x510] sm:$0xff] %v904
                  %v906 = vld [vmem:[%s578 + $0xad8] sm:$0xff]
                  %907 = vst [vmem:[%s579 + $0x518] sm:$0xff] %v906
                  %v908 = vld [vmem:[%s578 + $0xae0] sm:$0xff]
                  %909 = vst [vmem:[%s579 + $0x520] sm:$0xff] %v908
                  %v910 = vld [vmem:[%s578 + $0xae8] sm:$0xff]
                  %911 = vst [vmem:[%s579 + $0x528] sm:$0xff] %v910
                  %v912 = vld [vmem:[%s578 + $0xaf0] sm:$0xff]
                  %913 = vst [vmem:[%s579 + $0x530] sm:$0xff] %v912
                  %v914 = vld [vmem:[%s578 + $0xaf8] sm:$0xff]
                  %915 = vst [vmem:[%s579 + $0x538] sm:$0xff] %v914
                  %v916 = vld [vmem:[%s578 + $0xb00] sm:$0xff]
                  %917 = vst [vmem:[%s579 + $0x540] sm:$0xff] %v916
                  %v918 = vld [vmem:[%s578 + $0xb08] sm:$0xff]
                  %919 = vst [vmem:[%s579 + $0x548] sm:$0xff] %v918
                  %v920 = vld [vmem:[%s578 + $0xb10] sm:$0xff]
                  %921 = vst [vmem:[%s579 + $0x550] sm:$0xff] %v920
                  %v922 = vld [vmem:[%s578 + $0xb18] sm:$0xff]
                  %923 = vst [vmem:[%s579 + $0x558] sm:$0xff] %v922
                  %v924 = vld [vmem:[%s578 + $0xb20] sm:$0xff]
                  %925 = vst [vmem:[%s579 + $0x560] sm:$0xff] %v924
                  %v926 = vld [vmem:[%s578 + $0xb28] sm:$0xff]
                  %927 = vst [vmem:[%s579 + $0x568] sm:$0xff] %v926
                  %v928 = vld [vmem:[%s578 + $0xb30] sm:$0xff]
                  %929 = vst [vmem:[%s579 + $0x570] sm:$0xff] %v928
                  %v930 = vld [vmem:[%s578 + $0xb38] sm:$0xff]
                  %931 = vst [vmem:[%s579 + $0x578] sm:$0xff] %v930
                  %v932 = vld [vmem:[%s578 + $0xb40] sm:$0xff]
                  %933 = vst [vmem:[%s579 + $0x580] sm:$0xff] %v932
                  %v934 = vld [vmem:[%s578 + $0xb48] sm:$0xff]
                  %935 = vst [vmem:[%s579 + $0x588] sm:$0xff] %v934
                  %v936 = vld [vmem:[%s578 + $0xb50] sm:$0xff]
                  %937 = vst [vmem:[%s579 + $0x590] sm:$0xff] %v936
                  %v938 = vld [vmem:[%s578 + $0xb58] sm:$0xff]
                  %939 = vst [vmem:[%s579 + $0x598] sm:$0xff] %v938
                  %v940 = vld [vmem:[%s578 + $0xb60] sm:$0xff]
                  %941 = vst [vmem:[%s579 + $0x5a0] sm:$0xff] %v940
                  %v942 = vld [vmem:[%s578 + $0xb68] sm:$0xff]
                  %943 = vst [vmem:[%s579 + $0x5a8] sm:$0xff] %v942
                  %v944 = vld [vmem:[%s578 + $0xb70] sm:$0xff]
                  %945 = vst [vmem:[%s579 + $0x5b0] sm:$0xff] %v944
                  %v946 = vld [vmem:[%s578 + $0xb78] sm:$0xff]
                  %947 = vst [vmem:[%s579 + $0x5b8] sm:$0xff] %v946
                $region60: #{net_head_forward.1} parent=54 // loop_footer
                  %s577 = sadd.s32 1, %s573
                $region61: #{net_head_forward.1} parent=54 // loop_footer_branch
                  %572 = sbr.rel target = $region57
                $region62: #{net_head_forward.1} parent=54 // loop_exit
                  _
              $region55: #{net_head_forward.1} parent=39 // pred_fallthru
                _
              // Predicated region
              $region63: #{net_head_forward.1} parent=39 // pred_check
                _
              $region64: #{net_head_forward.1} parent=39 // pred_check_branch
                %949 = sbr.rel target = $region66
              $region65: #{net_head_forward.1} parent=39 // pred_region
                _
              $region66: #{net_head_forward.1} parent=39 // pred_fallthru
                _
            $region40: #{net_head_forward.1} parent=35 // pred_fallthru
              _
            // Predicated region
            $region41: #{net_head_forward.1} parent=35 // pred_check
              _
            $region42: #{net_head_forward.1} parent=35 // pred_check_branch
              %191 = sbr.rel target = $region44
            $region43: #{net_head_forward.1} parent=35 // pred_region
              %s193 = ssub.s32 256, 1
              loop: start=0, step=1, limit=1
              $region45: #{net_head_forward.1} parent=43 // loop_pre_header
                _
              $region46: #{net_head_forward.1} parent=43 // loop_header
                %s195 = sphi 0, %s199
                %p196 = scmp.ge.s32.totalorder %s195, 1
                %s200 = sphi %s185, %s185
                %s201 = sphi %s182, %s182
              $region47: #{net_head_forward.1} parent=43 // loop_header_branch
                %198 = sbr.rel (%p196) target = $region51
              $region48: #{net_head_forward.1} parent=43 // loop_body
                %v202 = vld [vmem:[%s200] sm:%s193]
                %203 = vst [vmem:[%s201] sm:%s193] %v202
                %v204 = vld [vmem:[%s200 + $0x8] sm:%s193]
                %205 = vst [vmem:[%s201 + $0x8] sm:%s193] %v204
                %v206 = vld [vmem:[%s200 + $0x10] sm:%s193]
                %207 = vst [vmem:[%s201 + $0x10] sm:%s193] %v206
                %v208 = vld [vmem:[%s200 + $0x18] sm:%s193]
                %209 = vst [vmem:[%s201 + $0x18] sm:%s193] %v208
                %v210 = vld [vmem:[%s200 + $0x20] sm:%s193]
                %211 = vst [vmem:[%s201 + $0x20] sm:%s193] %v210
                %v212 = vld [vmem:[%s200 + $0x28] sm:%s193]
                %213 = vst [vmem:[%s201 + $0x28] sm:%s193] %v212
                %v214 = vld [vmem:[%s200 + $0x30] sm:%s193]
                %215 = vst [vmem:[%s201 + $0x30] sm:%s193] %v214
                %v216 = vld [vmem:[%s200 + $0x38] sm:%s193]
                %217 = vst [vmem:[%s201 + $0x38] sm:%s193] %v216
                %v218 = vld [vmem:[%s200 + $0x40] sm:%s193]
                %219 = vst [vmem:[%s201 + $0x40] sm:%s193] %v218
                %v220 = vld [vmem:[%s200 + $0x48] sm:%s193]
                %221 = vst [vmem:[%s201 + $0x48] sm:%s193] %v220
                %v222 = vld [vmem:[%s200 + $0x50] sm:%s193]
                %223 = vst [vmem:[%s201 + $0x50] sm:%s193] %v222
                %v224 = vld [vmem:[%s200 + $0x58] sm:%s193]
                %225 = vst [vmem:[%s201 + $0x58] sm:%s193] %v224
                %v226 = vld [vmem:[%s200 + $0x60] sm:%s193]
                %227 = vst [vmem:[%s201 + $0x60] sm:%s193] %v226
                %v228 = vld [vmem:[%s200 + $0x68] sm:%s193]
                %229 = vst [vmem:[%s201 + $0x68] sm:%s193] %v228
                %v230 = vld [vmem:[%s200 + $0x70] sm:%s193]
                %231 = vst [vmem:[%s201 + $0x70] sm:%s193] %v230
                %v232 = vld [vmem:[%s200 + $0x78] sm:%s193]
                %233 = vst [vmem:[%s201 + $0x78] sm:%s193] %v232
                %v234 = vld [vmem:[%s200 + $0x80] sm:%s193]
                %235 = vst [vmem:[%s201 + $0x80] sm:%s193] %v234
                %v236 = vld [vmem:[%s200 + $0x88] sm:%s193]
                %237 = vst [vmem:[%s201 + $0x88] sm:%s193] %v236
                %v238 = vld [vmem:[%s200 + $0x90] sm:%s193]
                %239 = vst [vmem:[%s201 + $0x90] sm:%s193] %v238
                %v240 = vld [vmem:[%s200 + $0x98] sm:%s193]
                %241 = vst [vmem:[%s201 + $0x98] sm:%s193] %v240
                %v242 = vld [vmem:[%s200 + $0xa0] sm:%s193]
                %243 = vst [vmem:[%s201 + $0xa0] sm:%s193] %v242
                %v244 = vld [vmem:[%s200 + $0xa8] sm:%s193]
                %245 = vst [vmem:[%s201 + $0xa8] sm:%s193] %v244
                %v246 = vld [vmem:[%s200 + $0xb0] sm:%s193]
                %247 = vst [vmem:[%s201 + $0xb0] sm:%s193] %v246
                %v248 = vld [vmem:[%s200 + $0xb8] sm:%s193]
                %249 = vst [vmem:[%s201 + $0xb8] sm:%s193] %v248
                %v250 = vld [vmem:[%s200 + $0xc0] sm:%s193]
                %251 = vst [vmem:[%s201 + $0xc0] sm:%s193] %v250
                %v252 = vld [vmem:[%s200 + $0xc8] sm:%s193]
                %253 = vst [vmem:[%s201 + $0xc8] sm:%s193] %v252
                %v254 = vld [vmem:[%s200 + $0xd0] sm:%s193]
                %255 = vst [vmem:[%s201 + $0xd0] sm:%s193] %v254
                %v256 = vld [vmem:[%s200 + $0xd8] sm:%s193]
                %257 = vst [vmem:[%s201 + $0xd8] sm:%s193] %v256
                %v258 = vld [vmem:[%s200 + $0xe0] sm:%s193]
                %259 = vst [vmem:[%s201 + $0xe0] sm:%s193] %v258
                %v260 = vld [vmem:[%s200 + $0xe8] sm:%s193]
                %261 = vst [vmem:[%s201 + $0xe8] sm:%s193] %v260
                %v262 = vld [vmem:[%s200 + $0xf0] sm:%s193]
                %263 = vst [vmem:[%s201 + $0xf0] sm:%s193] %v262
                %v264 = vld [vmem:[%s200 + $0xf8] sm:%s193]
                %265 = vst [vmem:[%s201 + $0xf8] sm:%s193] %v264
                %v266 = vld [vmem:[%s200 + $0x100] sm:%s193]
                %267 = vst [vmem:[%s201 + $0x100] sm:%s193] %v266
                %v268 = vld [vmem:[%s200 + $0x108] sm:%s193]
                %269 = vst [vmem:[%s201 + $0x108] sm:%s193] %v268
                %v270 = vld [vmem:[%s200 + $0x110] sm:%s193]
                %271 = vst [vmem:[%s201 + $0x110] sm:%s193] %v270
                %v272 = vld [vmem:[%s200 + $0x118] sm:%s193]
                %273 = vst [vmem:[%s201 + $0x118] sm:%s193] %v272
                %v274 = vld [vmem:[%s200 + $0x120] sm:%s193]
                %275 = vst [vmem:[%s201 + $0x120] sm:%s193] %v274
                %v276 = vld [vmem:[%s200 + $0x128] sm:%s193]
                %277 = vst [vmem:[%s201 + $0x128] sm:%s193] %v276
                %v278 = vld [vmem:[%s200 + $0x130] sm:%s193]
                %279 = vst [vmem:[%s201 + $0x130] sm:%s193] %v278
                %v280 = vld [vmem:[%s200 + $0x138] sm:%s193]
                %281 = vst [vmem:[%s201 + $0x138] sm:%s193] %v280
                %v282 = vld [vmem:[%s200 + $0x140] sm:%s193]
                %283 = vst [vmem:[%s201 + $0x140] sm:%s193] %v282
                %v284 = vld [vmem:[%s200 + $0x148] sm:%s193]
                %285 = vst [vmem:[%s201 + $0x148] sm:%s193] %v284
                %v286 = vld [vmem:[%s200 + $0x150] sm:%s193]
                %287 = vst [vmem:[%s201 + $0x150] sm:%s193] %v286
                %v288 = vld [vmem:[%s200 + $0x158] sm:%s193]
                %289 = vst [vmem:[%s201 + $0x158] sm:%s193] %v288
                %v290 = vld [vmem:[%s200 + $0x160] sm:%s193]
                %291 = vst [vmem:[%s201 + $0x160] sm:%s193] %v290
                %v292 = vld [vmem:[%s200 + $0x168] sm:%s193]
                %293 = vst [vmem:[%s201 + $0x168] sm:%s193] %v292
                %v294 = vld [vmem:[%s200 + $0x170] sm:%s193]
                %295 = vst [vmem:[%s201 + $0x170] sm:%s193] %v294
                %v296 = vld [vmem:[%s200 + $0x178] sm:%s193]
                %297 = vst [vmem:[%s201 + $0x178] sm:%s193] %v296
                %v298 = vld [vmem:[%s200 + $0x180] sm:%s193]
                %299 = vst [vmem:[%s201 + $0x180] sm:%s193] %v298
                %v300 = vld [vmem:[%s200 + $0x188] sm:%s193]
                %301 = vst [vmem:[%s201 + $0x188] sm:%s193] %v300
                %v302 = vld [vmem:[%s200 + $0x190] sm:%s193]
                %303 = vst [vmem:[%s201 + $0x190] sm:%s193] %v302
                %v304 = vld [vmem:[%s200 + $0x198] sm:%s193]
                %305 = vst [vmem:[%s201 + $0x198] sm:%s193] %v304
                %v306 = vld [vmem:[%s200 + $0x1a0] sm:%s193]
                %307 = vst [vmem:[%s201 + $0x1a0] sm:%s193] %v306
                %v308 = vld [vmem:[%s200 + $0x1a8] sm:%s193]
                %309 = vst [vmem:[%s201 + $0x1a8] sm:%s193] %v308
                %v310 = vld [vmem:[%s200 + $0x1b0] sm:%s193]
                %311 = vst [vmem:[%s201 + $0x1b0] sm:%s193] %v310
                %v312 = vld [vmem:[%s200 + $0x1b8] sm:%s193]
                %313 = vst [vmem:[%s201 + $0x1b8] sm:%s193] %v312
                %v314 = vld [vmem:[%s200 + $0x1c0] sm:%s193]
                %315 = vst [vmem:[%s201 + $0x1c0] sm:%s193] %v314
                %v316 = vld [vmem:[%s200 + $0x1c8] sm:%s193]
                %317 = vst [vmem:[%s201 + $0x1c8] sm:%s193] %v316
                %v318 = vld [vmem:[%s200 + $0x1d0] sm:%s193]
                %319 = vst [vmem:[%s201 + $0x1d0] sm:%s193] %v318
                %v320 = vld [vmem:[%s200 + $0x1d8] sm:%s193]
                %321 = vst [vmem:[%s201 + $0x1d8] sm:%s193] %v320
                %v322 = vld [vmem:[%s200 + $0x1e0] sm:%s193]
                %323 = vst [vmem:[%s201 + $0x1e0] sm:%s193] %v322
                %v324 = vld [vmem:[%s200 + $0x1e8] sm:%s193]
                %325 = vst [vmem:[%s201 + $0x1e8] sm:%s193] %v324
                %v326 = vld [vmem:[%s200 + $0x1f0] sm:%s193]
                %327 = vst [vmem:[%s201 + $0x1f0] sm:%s193] %v326
                %v328 = vld [vmem:[%s200 + $0x1f8] sm:%s193]
                %329 = vst [vmem:[%s201 + $0x1f8] sm:%s193] %v328
                %v330 = vld [vmem:[%s200 + $0x200] sm:%s193]
                %331 = vst [vmem:[%s201 + $0x200] sm:%s193] %v330
                %v332 = vld [vmem:[%s200 + $0x208] sm:%s193]
                %333 = vst [vmem:[%s201 + $0x208] sm:%s193] %v332
                %v334 = vld [vmem:[%s200 + $0x210] sm:%s193]
                %335 = vst [vmem:[%s201 + $0x210] sm:%s193] %v334
                %v336 = vld [vmem:[%s200 + $0x218] sm:%s193]
                %337 = vst [vmem:[%s201 + $0x218] sm:%s193] %v336
                %v338 = vld [vmem:[%s200 + $0x220] sm:%s193]
                %339 = vst [vmem:[%s201 + $0x220] sm:%s193] %v338
                %v340 = vld [vmem:[%s200 + $0x228] sm:%s193]
                %341 = vst [vmem:[%s201 + $0x228] sm:%s193] %v340
                %v342 = vld [vmem:[%s200 + $0x230] sm:%s193]
                %343 = vst [vmem:[%s201 + $0x230] sm:%s193] %v342
                %v344 = vld [vmem:[%s200 + $0x238] sm:%s193]
                %345 = vst [vmem:[%s201 + $0x238] sm:%s193] %v344
                %v346 = vld [vmem:[%s200 + $0x240] sm:%s193]
                %347 = vst [vmem:[%s201 + $0x240] sm:%s193] %v346
                %v348 = vld [vmem:[%s200 + $0x248] sm:%s193]
                %349 = vst [vmem:[%s201 + $0x248] sm:%s193] %v348
                %v350 = vld [vmem:[%s200 + $0x250] sm:%s193]
                %351 = vst [vmem:[%s201 + $0x250] sm:%s193] %v350
                %v352 = vld [vmem:[%s200 + $0x258] sm:%s193]
                %353 = vst [vmem:[%s201 + $0x258] sm:%s193] %v352
                %v354 = vld [vmem:[%s200 + $0x260] sm:%s193]
                %355 = vst [vmem:[%s201 + $0x260] sm:%s193] %v354
                %v356 = vld [vmem:[%s200 + $0x268] sm:%s193]
                %357 = vst [vmem:[%s201 + $0x268] sm:%s193] %v356
                %v358 = vld [vmem:[%s200 + $0x270] sm:%s193]
                %359 = vst [vmem:[%s201 + $0x270] sm:%s193] %v358
                %v360 = vld [vmem:[%s200 + $0x278] sm:%s193]
                %361 = vst [vmem:[%s201 + $0x278] sm:%s193] %v360
                %v362 = vld [vmem:[%s200 + $0x280] sm:%s193]
                %363 = vst [vmem:[%s201 + $0x280] sm:%s193] %v362
                %v364 = vld [vmem:[%s200 + $0x288] sm:%s193]
                %365 = vst [vmem:[%s201 + $0x288] sm:%s193] %v364
                %v366 = vld [vmem:[%s200 + $0x290] sm:%s193]
                %367 = vst [vmem:[%s201 + $0x290] sm:%s193] %v366
                %v368 = vld [vmem:[%s200 + $0x298] sm:%s193]
                %369 = vst [vmem:[%s201 + $0x298] sm:%s193] %v368
                %v370 = vld [vmem:[%s200 + $0x2a0] sm:%s193]
                %371 = vst [vmem:[%s201 + $0x2a0] sm:%s193] %v370
                %v372 = vld [vmem:[%s200 + $0x2a8] sm:%s193]
                %373 = vst [vmem:[%s201 + $0x2a8] sm:%s193] %v372
                %v374 = vld [vmem:[%s200 + $0x2b0] sm:%s193]
                %375 = vst [vmem:[%s201 + $0x2b0] sm:%s193] %v374
                %v376 = vld [vmem:[%s200 + $0x2b8] sm:%s193]
                %377 = vst [vmem:[%s201 + $0x2b8] sm:%s193] %v376
                %v378 = vld [vmem:[%s200 + $0x2c0] sm:%s193]
                %379 = vst [vmem:[%s201 + $0x2c0] sm:%s193] %v378
                %v380 = vld [vmem:[%s200 + $0x2c8] sm:%s193]
                %381 = vst [vmem:[%s201 + $0x2c8] sm:%s193] %v380
                %v382 = vld [vmem:[%s200 + $0x2d0] sm:%s193]
                %383 = vst [vmem:[%s201 + $0x2d0] sm:%s193] %v382
                %v384 = vld [vmem:[%s200 + $0x2d8] sm:%s193]
                %385 = vst [vmem:[%s201 + $0x2d8] sm:%s193] %v384
                %v386 = vld [vmem:[%s200 + $0x8a0] sm:%s193]
                %387 = vst [vmem:[%s201 + $0x2e0] sm:%s193] %v386
                %v388 = vld [vmem:[%s200 + $0x8a8] sm:%s193]
                %389 = vst [vmem:[%s201 + $0x2e8] sm:%s193] %v388
                %v390 = vld [vmem:[%s200 + $0x8b0] sm:%s193]
                %391 = vst [vmem:[%s201 + $0x2f0] sm:%s193] %v390
                %v392 = vld [vmem:[%s200 + $0x8b8] sm:%s193]
                %393 = vst [vmem:[%s201 + $0x2f8] sm:%s193] %v392
                %v394 = vld [vmem:[%s200 + $0x8c0] sm:%s193]
                %395 = vst [vmem:[%s201 + $0x300] sm:%s193] %v394
                %v396 = vld [vmem:[%s200 + $0x8c8] sm:%s193]
                %397 = vst [vmem:[%s201 + $0x308] sm:%s193] %v396
                %v398 = vld [vmem:[%s200 + $0x8d0] sm:%s193]
                %399 = vst [vmem:[%s201 + $0x310] sm:%s193] %v398
                %v400 = vld [vmem:[%s200 + $0x8d8] sm:%s193]
                %401 = vst [vmem:[%s201 + $0x318] sm:%s193] %v400
                %v402 = vld [vmem:[%s200 + $0x8e0] sm:%s193]
                %403 = vst [vmem:[%s201 + $0x320] sm:%s193] %v402
                %v404 = vld [vmem:[%s200 + $0x8e8] sm:%s193]
                %405 = vst [vmem:[%s201 + $0x328] sm:%s193] %v404
                %v406 = vld [vmem:[%s200 + $0x8f0] sm:%s193]
                %407 = vst [vmem:[%s201 + $0x330] sm:%s193] %v406
                %v408 = vld [vmem:[%s200 + $0x8f8] sm:%s193]
                %409 = vst [vmem:[%s201 + $0x338] sm:%s193] %v408
                %v410 = vld [vmem:[%s200 + $0x900] sm:%s193]
                %411 = vst [vmem:[%s201 + $0x340] sm:%s193] %v410
                %v412 = vld [vmem:[%s200 + $0x908] sm:%s193]
                %413 = vst [vmem:[%s201 + $0x348] sm:%s193] %v412
                %v414 = vld [vmem:[%s200 + $0x910] sm:%s193]
                %415 = vst [vmem:[%s201 + $0x350] sm:%s193] %v414
                %v416 = vld [vmem:[%s200 + $0x918] sm:%s193]
                %417 = vst [vmem:[%s201 + $0x358] sm:%s193] %v416
                %v418 = vld [vmem:[%s200 + $0x920] sm:%s193]
                %419 = vst [vmem:[%s201 + $0x360] sm:%s193] %v418
                %v420 = vld [vmem:[%s200 + $0x928] sm:%s193]
                %421 = vst [vmem:[%s201 + $0x368] sm:%s193] %v420
                %v422 = vld [vmem:[%s200 + $0x930] sm:%s193]
                %423 = vst [vmem:[%s201 + $0x370] sm:%s193] %v422
                %v424 = vld [vmem:[%s200 + $0x938] sm:%s193]
                %425 = vst [vmem:[%s201 + $0x378] sm:%s193] %v424
                %v426 = vld [vmem:[%s200 + $0x940] sm:%s193]
                %427 = vst [vmem:[%s201 + $0x380] sm:%s193] %v426
                %v428 = vld [vmem:[%s200 + $0x948] sm:%s193]
                %429 = vst [vmem:[%s201 + $0x388] sm:%s193] %v428
                %v430 = vld [vmem:[%s200 + $0x950] sm:%s193]
                %431 = vst [vmem:[%s201 + $0x390] sm:%s193] %v430
                %v432 = vld [vmem:[%s200 + $0x958] sm:%s193]
                %433 = vst [vmem:[%s201 + $0x398] sm:%s193] %v432
                %v434 = vld [vmem:[%s200 + $0x960] sm:%s193]
                %435 = vst [vmem:[%s201 + $0x3a0] sm:%s193] %v434
                %v436 = vld [vmem:[%s200 + $0x968] sm:%s193]
                %437 = vst [vmem:[%s201 + $0x3a8] sm:%s193] %v436
                %v438 = vld [vmem:[%s200 + $0x970] sm:%s193]
                %439 = vst [vmem:[%s201 + $0x3b0] sm:%s193] %v438
                %v440 = vld [vmem:[%s200 + $0x978] sm:%s193]
                %441 = vst [vmem:[%s201 + $0x3b8] sm:%s193] %v440
                %v442 = vld [vmem:[%s200 + $0x980] sm:%s193]
                %443 = vst [vmem:[%s201 + $0x3c0] sm:%s193] %v442
                %v444 = vld [vmem:[%s200 + $0x988] sm:%s193]
                %445 = vst [vmem:[%s201 + $0x3c8] sm:%s193] %v444
                %v446 = vld [vmem:[%s200 + $0x990] sm:%s193]
                %447 = vst [vmem:[%s201 + $0x3d0] sm:%s193] %v446
                %v448 = vld [vmem:[%s200 + $0x998] sm:%s193]
                %449 = vst [vmem:[%s201 + $0x3d8] sm:%s193] %v448
                %v450 = vld [vmem:[%s200 + $0x9a0] sm:%s193]
                %451 = vst [vmem:[%s201 + $0x3e0] sm:%s193] %v450
                %v452 = vld [vmem:[%s200 + $0x9a8] sm:%s193]
                %453 = vst [vmem:[%s201 + $0x3e8] sm:%s193] %v452
                %v454 = vld [vmem:[%s200 + $0x9b0] sm:%s193]
                %455 = vst [vmem:[%s201 + $0x3f0] sm:%s193] %v454
                %v456 = vld [vmem:[%s200 + $0x9b8] sm:%s193]
                %457 = vst [vmem:[%s201 + $0x3f8] sm:%s193] %v456
                %v458 = vld [vmem:[%s200 + $0x9c0] sm:%s193]
                %459 = vst [vmem:[%s201 + $0x400] sm:%s193] %v458
                %v460 = vld [vmem:[%s200 + $0x9c8] sm:%s193]
                %461 = vst [vmem:[%s201 + $0x408] sm:%s193] %v460
                %v462 = vld [vmem:[%s200 + $0x9d0] sm:%s193]
                %463 = vst [vmem:[%s201 + $0x410] sm:%s193] %v462
                %v464 = vld [vmem:[%s200 + $0x9d8] sm:%s193]
                %465 = vst [vmem:[%s201 + $0x418] sm:%s193] %v464
                %v466 = vld [vmem:[%s200 + $0x9e0] sm:%s193]
                %467 = vst [vmem:[%s201 + $0x420] sm:%s193] %v466
                %v468 = vld [vmem:[%s200 + $0x9e8] sm:%s193]
                %469 = vst [vmem:[%s201 + $0x428] sm:%s193] %v468
                %v470 = vld [vmem:[%s200 + $0x9f0] sm:%s193]
                %471 = vst [vmem:[%s201 + $0x430] sm:%s193] %v470
                %v472 = vld [vmem:[%s200 + $0x9f8] sm:%s193]
                %473 = vst [vmem:[%s201 + $0x438] sm:%s193] %v472
                %v474 = vld [vmem:[%s200 + $0xa00] sm:%s193]
                %475 = vst [vmem:[%s201 + $0x440] sm:%s193] %v474
                %v476 = vld [vmem:[%s200 + $0xa08] sm:%s193]
                %477 = vst [vmem:[%s201 + $0x448] sm:%s193] %v476
                %v478 = vld [vmem:[%s200 + $0xa10] sm:%s193]
                %479 = vst [vmem:[%s201 + $0x450] sm:%s193] %v478
                %v480 = vld [vmem:[%s200 + $0xa18] sm:%s193]
                %481 = vst [vmem:[%s201 + $0x458] sm:%s193] %v480
                %v482 = vld [vmem:[%s200 + $0xa20] sm:%s193]
                %483 = vst [vmem:[%s201 + $0x460] sm:%s193] %v482
                %v484 = vld [vmem:[%s200 + $0xa28] sm:%s193]
                %485 = vst [vmem:[%s201 + $0x468] sm:%s193] %v484
                %v486 = vld [vmem:[%s200 + $0xa30] sm:%s193]
                %487 = vst [vmem:[%s201 + $0x470] sm:%s193] %v486
                %v488 = vld [vmem:[%s200 + $0xa38] sm:%s193]
                %489 = vst [vmem:[%s201 + $0x478] sm:%s193] %v488
                %v490 = vld [vmem:[%s200 + $0xa40] sm:%s193]
                %491 = vst [vmem:[%s201 + $0x480] sm:%s193] %v490
                %v492 = vld [vmem:[%s200 + $0xa48] sm:%s193]
                %493 = vst [vmem:[%s201 + $0x488] sm:%s193] %v492
                %v494 = vld [vmem:[%s200 + $0xa50] sm:%s193]
                %495 = vst [vmem:[%s201 + $0x490] sm:%s193] %v494
                %v496 = vld [vmem:[%s200 + $0xa58] sm:%s193]
                %497 = vst [vmem:[%s201 + $0x498] sm:%s193] %v496
                %v498 = vld [vmem:[%s200 + $0xa60] sm:%s193]
                %499 = vst [vmem:[%s201 + $0x4a0] sm:%s193] %v498
                %v500 = vld [vmem:[%s200 + $0xa68] sm:%s193]
                %501 = vst [vmem:[%s201 + $0x4a8] sm:%s193] %v500
                %v502 = vld [vmem:[%s200 + $0xa70] sm:%s193]
                %503 = vst [vmem:[%s201 + $0x4b0] sm:%s193] %v502
                %v504 = vld [vmem:[%s200 + $0xa78] sm:%s193]
                %505 = vst [vmem:[%s201 + $0x4b8] sm:%s193] %v504
                %v506 = vld [vmem:[%s200 + $0xa80] sm:%s193]
                %507 = vst [vmem:[%s201 + $0x4c0] sm:%s193] %v506
                %v508 = vld [vmem:[%s200 + $0xa88] sm:%s193]
                %509 = vst [vmem:[%s201 + $0x4c8] sm:%s193] %v508
                %v510 = vld [vmem:[%s200 + $0xa90] sm:%s193]
                %511 = vst [vmem:[%s201 + $0x4d0] sm:%s193] %v510
                %v512 = vld [vmem:[%s200 + $0xa98] sm:%s193]
                %513 = vst [vmem:[%s201 + $0x4d8] sm:%s193] %v512
                %v514 = vld [vmem:[%s200 + $0xaa0] sm:%s193]
                %515 = vst [vmem:[%s201 + $0x4e0] sm:%s193] %v514
                %v516 = vld [vmem:[%s200 + $0xaa8] sm:%s193]
                %517 = vst [vmem:[%s201 + $0x4e8] sm:%s193] %v516
                %v518 = vld [vmem:[%s200 + $0xab0] sm:%s193]
                %519 = vst [vmem:[%s201 + $0x4f0] sm:%s193] %v518
                %v520 = vld [vmem:[%s200 + $0xab8] sm:%s193]
                %521 = vst [vmem:[%s201 + $0x4f8] sm:%s193] %v520
                %v522 = vld [vmem:[%s200 + $0xac0] sm:%s193]
                %523 = vst [vmem:[%s201 + $0x500] sm:%s193] %v522
                %v524 = vld [vmem:[%s200 + $0xac8] sm:%s193]
                %525 = vst [vmem:[%s201 + $0x508] sm:%s193] %v524
                %v526 = vld [vmem:[%s200 + $0xad0] sm:%s193]
                %527 = vst [vmem:[%s201 + $0x510] sm:%s193] %v526
                %v528 = vld [vmem:[%s200 + $0xad8] sm:%s193]
                %529 = vst [vmem:[%s201 + $0x518] sm:%s193] %v528
                %v530 = vld [vmem:[%s200 + $0xae0] sm:%s193]
                %531 = vst [vmem:[%s201 + $0x520] sm:%s193] %v530
                %v532 = vld [vmem:[%s200 + $0xae8] sm:%s193]
                %533 = vst [vmem:[%s201 + $0x528] sm:%s193] %v532
                %v534 = vld [vmem:[%s200 + $0xaf0] sm:%s193]
                %535 = vst [vmem:[%s201 + $0x530] sm:%s193] %v534
                %v536 = vld [vmem:[%s200 + $0xaf8] sm:%s193]
                %537 = vst [vmem:[%s201 + $0x538] sm:%s193] %v536
                %v538 = vld [vmem:[%s200 + $0xb00] sm:%s193]
                %539 = vst [vmem:[%s201 + $0x540] sm:%s193] %v538
                %v540 = vld [vmem:[%s200 + $0xb08] sm:%s193]
                %541 = vst [vmem:[%s201 + $0x548] sm:%s193] %v540
                %v542 = vld [vmem:[%s200 + $0xb10] sm:%s193]
                %543 = vst [vmem:[%s201 + $0x550] sm:%s193] %v542
                %v544 = vld [vmem:[%s200 + $0xb18] sm:%s193]
                %545 = vst [vmem:[%s201 + $0x558] sm:%s193] %v544
                %v546 = vld [vmem:[%s200 + $0xb20] sm:%s193]
                %547 = vst [vmem:[%s201 + $0x560] sm:%s193] %v546
                %v548 = vld [vmem:[%s200 + $0xb28] sm:%s193]
                %549 = vst [vmem:[%s201 + $0x568] sm:%s193] %v548
                %v550 = vld [vmem:[%s200 + $0xb30] sm:%s193]
                %551 = vst [vmem:[%s201 + $0x570] sm:%s193] %v550
                %v552 = vld [vmem:[%s200 + $0xb38] sm:%s193]
                %553 = vst [vmem:[%s201 + $0x578] sm:%s193] %v552
                %v554 = vld [vmem:[%s200 + $0xb40] sm:%s193]
                %555 = vst [vmem:[%s201 + $0x580] sm:%s193] %v554
                %v556 = vld [vmem:[%s200 + $0xb48] sm:%s193]
                %557 = vst [vmem:[%s201 + $0x588] sm:%s193] %v556
                %v558 = vld [vmem:[%s200 + $0xb50] sm:%s193]
                %559 = vst [vmem:[%s201 + $0x590] sm:%s193] %v558
                %v560 = vld [vmem:[%s200 + $0xb58] sm:%s193]
                %561 = vst [vmem:[%s201 + $0x598] sm:%s193] %v560
                %v562 = vld [vmem:[%s200 + $0xb60] sm:%s193]
                %563 = vst [vmem:[%s201 + $0x5a0] sm:%s193] %v562
                %v564 = vld [vmem:[%s200 + $0xb68] sm:%s193]
                %565 = vst [vmem:[%s201 + $0x5a8] sm:%s193] %v564
                %v566 = vld [vmem:[%s200 + $0xb70] sm:%s193]
                %567 = vst [vmem:[%s201 + $0x5b0] sm:%s193] %v566
                %v568 = vld [vmem:[%s200 + $0xb78] sm:%s193]
                %569 = vst [vmem:[%s201 + $0x5b8] sm:%s193] %v568
              $region49: #{net_head_forward.1} parent=43 // loop_footer
                %s199 = sadd.s32 1, %s195
              $region50: #{net_head_forward.1} parent=43 // loop_footer_branch
                %194 = sbr.rel target = $region46
              $region51: #{net_head_forward.1} parent=43 // loop_exit
                _
            $region44: #{net_head_forward.1} parent=35 // pred_fallthru
              _
          $region36: #{net_head_forward.1} parent=31 // pred_fallthru
            _
          %950 = vnop
        $region32: #{net_head_forward.1} parent=27 // pred_fallthru
          _
        // Predicated region
        $region67: #{net_head_forward.1} parent=27 // pred_check
          %p951 = pneg %p58
        $region68: #{net_head_forward.1} parent=27 // pred_check_branch
          %953 = sbr.rel (%p951) target = $region70
        $region69: #{net_head_forward.1} parent=27 // pred_region
          %s954 = smul.u32 92, %s12
          %p955 = scmp.lt.s32.totalorder %s954, 275
          %s956 = scalar_select %p955, %s954, 275
          %s957 = smul.addr %s956, 4
          %s958 = smul.addr %s957, 4
          %s959 = scalar_lea.vmem %s1, %s958
          %s960 = smul.u32 92, %s12
        $region70: #{net_head_forward.1} parent=27 // pred_fallthru
          _
      $region28: #{net_head_forward.1} parent=5 // pred_fallthru
        _
      %p961 = scmp.le.s32.totalorder 1, %s12
      %p962 = scmp.lt.s32.totalorder %s12, 4
      %p963 = pnand %p961, %p962
      %p964 = pneg %p963
      // Predicated region
      $region71: #{net_head_forward.1} parent=5 // pred_check
        _
      $region72: #{net_head_forward.1} parent=5 // pred_check_branch
        %966 = sbr.rel (%p963) target = $region74
      $region73: #{net_head_forward.1} parent=5 // pred_region
        %s967 = ssub.s32 %s12, 1
        %s968 = sand.u32 %s25, 1
        %s969 = sand.u32 %s25, 1
        %s970 = smul.addr %s969, 1472
        %s971 = scalar_lea.vmem [#allocation3], %s970
        // Predicated region
        $region75: #{net_head_forward.1} parent=73 // pred_check
          %p972 = pneg %p38
        $region76: #{net_head_forward.1} parent=73 // pred_check_branch
          %974 = sbr.rel (%p972) target = $region78
        $region77: #{net_head_forward.1} parent=73 // pred_region
          _
        $region78: #{net_head_forward.1} parent=73 // pred_fallthru
          _
        %s975 = sand.u32 %s25, 1
        %s976 = sand.u32 %s25, 1
        %s977 = smul.addr %s976, 1472
        %s978 = scalar_lea.vmem [#allocation3], %s977
        %p979 = pneg %p38
        %p980 = pneg %p35
        %s981 = smul.u32 92, %s17
        %p982 = scmp.lt.s32.totalorder %s981, 275
        %s983 = scalar_select %p982, %s981, 275
        %s984 = smul.addr %s983, 4
        %s985 = smul.addr %s984, 4
        %s986 = scalar_lea.vmem %s1, %s985
        %p987 = pneg %p64
        %p988 = pneg %p61
        %p989 = pneg %p85
        %p990 = pneg %p82
        %p991 = pneg %p106
        %p992 = pneg %p103
        %p993 = pneg %p127
        %p994 = pneg %p124
        %p995 = pneg %p148
        %p996 = pneg %p145
        %s997 = smul.u32 92, %s17
        %s998 = smul.u32 92, %s17
        %p999 = scmp.lt.s32.totalorder %s998, 275
        %s1000 = scalar_select %p999, %s998, 275
        %s1001 = smul.addr %s1000, 4
        %s1002 = smul.addr %s1001, 4
        %s1003 = scalar_lea.vmem %s1, %s1002
        %s1004 = smul.u32 92, %s17
        %p1006 = scmp.eq.s32.totalorder %s17, 0
        // Predicated region
        $region79: #{net_head_forward.1} parent=73 // pred_check
          %p1007 = pneg %p1006
        $region80: #{net_head_forward.1} parent=73 // pred_check_branch
          %1009 = sbr.rel (%p1007) target = $region82
        $region81: #{net_head_forward.1} parent=73 // pred_region
          %1010 = vst [vmem:[#allocation2] sm:$0xff] 0.0
        $region82: #{net_head_forward.1} parent=73 // pred_fallthru
          _
        %v1011 = vld [vmem:[%s971] sm:$0xff]
        %v1012 = vld [vmem:[%s971 + $0x8] sm:$0xff]
        %v1013 = vld [vmem:[%s971 + $0x10] sm:$0xff]
        %v1014 = vld [vmem:[%s971 + $0x18] sm:$0xff]
        %v1015 = vld [vmem:[%s971 + $0x20] sm:$0xff]
        %v1016 = vld [vmem:[%s971 + $0x28] sm:$0xff]
        %v1017 = vld [vmem:[%s971 + $0x30] sm:$0xff]
        %v1018 = vld [vmem:[%s971 + $0x38] sm:$0xff]
        %v1019 = vld [vmem:[%s971 + $0x40] sm:$0xff]
        %v1020 = vld [vmem:[%s971 + $0x48] sm:$0xff]
        %v1021 = vld [vmem:[%s971 + $0x50] sm:$0xff]
        %v1022 = vld [vmem:[%s971 + $0x58] sm:$0xff]
        %v1023 = vld [vmem:[%s971 + $0x60] sm:$0xff]
        %v1024 = vld [vmem:[%s971 + $0x68] sm:$0xff]
        %v1025 = vld [vmem:[%s971 + $0x70] sm:$0xff]
        %v1026 = vld [vmem:[%s971 + $0x78] sm:$0xff]
        %v1027 = vld [vmem:[%s971 + $0x80] sm:$0xff]
        %v1028 = vld [vmem:[%s971 + $0x88] sm:$0xff]
        %v1029 = vld [vmem:[%s971 + $0x90] sm:$0xff]
        %v1030 = vld [vmem:[%s971 + $0x98] sm:$0xff]
        %v1031 = vld [vmem:[%s971 + $0xa0] sm:$0xff]
        %v1032 = vld [vmem:[%s971 + $0xa8] sm:$0xff]
        %v1033 = vld [vmem:[%s971 + $0xb0] sm:$0xff]
        %v1034 = vld [vmem:[%s971 + $0xb8] sm:$0xff]
        %v1035 = vld [vmem:[%s971 + $0xc0] sm:$0xff]
        %v1036 = vld [vmem:[%s971 + $0xc8] sm:$0xff]
        %v1037 = vld [vmem:[%s971 + $0xd0] sm:$0xff]
        %v1038 = vld [vmem:[%s971 + $0xd8] sm:$0xff]
        %v1039 = vld [vmem:[%s971 + $0xe0] sm:$0xff]
        %v1040 = vld [vmem:[%s971 + $0xe8] sm:$0xff]
        %v1041 = vld [vmem:[%s971 + $0xf0] sm:$0xff]
        %v1042 = vld [vmem:[%s971 + $0xf8] sm:$0xff]
        %v1043 = vld [vmem:[%s971 + $0x100] sm:$0xff]
        %v1044 = vld [vmem:[%s971 + $0x108] sm:$0xff]
        %v1045 = vld [vmem:[%s971 + $0x110] sm:$0xff]
        %v1046 = vld [vmem:[%s971 + $0x118] sm:$0xff]
        %v1047 = vld [vmem:[%s971 + $0x120] sm:$0xff]
        %v1048 = vld [vmem:[%s971 + $0x128] sm:$0xff]
        %v1049 = vld [vmem:[%s971 + $0x130] sm:$0xff]
        %v1050 = vld [vmem:[%s971 + $0x138] sm:$0xff]
        %v1051 = vld [vmem:[%s971 + $0x140] sm:$0xff]
        %v1052 = vld [vmem:[%s971 + $0x148] sm:$0xff]
        %v1053 = vld [vmem:[%s971 + $0x150] sm:$0xff]
        %v1054 = vld [vmem:[%s971 + $0x158] sm:$0xff]
        %v1055 = vld [vmem:[%s971 + $0x160] sm:$0xff]
        %v1056 = vld [vmem:[%s971 + $0x168] sm:$0xff]
        %v1057 = vld [vmem:[%s971 + $0x170] sm:$0xff]
        %v1058 = vld [vmem:[%s971 + $0x178] sm:$0xff]
        %v1059 = vld [vmem:[%s971 + $0x180] sm:$0xff]
        %v1060 = vld [vmem:[%s971 + $0x188] sm:$0xff]
        %v1061 = vld [vmem:[%s971 + $0x190] sm:$0xff]
        %v1062 = vld [vmem:[%s971 + $0x198] sm:$0xff]
        %v1063 = vld [vmem:[%s971 + $0x1a0] sm:$0xff]
        %v1064 = vld [vmem:[%s971 + $0x1a8] sm:$0xff]
        %v1065 = vld [vmem:[%s971 + $0x1b0] sm:$0xff]
        %v1066 = vld [vmem:[%s971 + $0x1b8] sm:$0xff]
        %v1067 = vld [vmem:[%s971 + $0x1c0] sm:$0xff]
        %v1068 = vld [vmem:[%s971 + $0x1c8] sm:$0xff]
        %v1069 = vld [vmem:[%s971 + $0x1d0] sm:$0xff]
        %v1070 = vld [vmem:[%s971 + $0x1d8] sm:$0xff]
        %v1071 = vld [vmem:[%s971 + $0x1e0] sm:$0xff]
        %v1072 = vld [vmem:[%s971 + $0x1e8] sm:$0xff]
        %v1073 = vld [vmem:[%s971 + $0x1f0] sm:$0xff]
        %v1074 = vld [vmem:[%s971 + $0x1f8] sm:$0xff]
        %v1075 = vld [vmem:[%s971 + $0x200] sm:$0xff]
        %v1076 = vld [vmem:[%s971 + $0x208] sm:$0xff]
        %v1077 = vld [vmem:[%s971 + $0x210] sm:$0xff]
        %v1078 = vld [vmem:[%s971 + $0x218] sm:$0xff]
        %v1079 = vld [vmem:[%s971 + $0x220] sm:$0xff]
        %v1080 = vld [vmem:[%s971 + $0x228] sm:$0xff]
        %v1081 = vld [vmem:[%s971 + $0x230] sm:$0xff]
        %v1082 = vld [vmem:[%s971 + $0x238] sm:$0xff]
        %v1083 = vld [vmem:[%s971 + $0x240] sm:$0xff]
        %v1084 = vld [vmem:[%s971 + $0x248] sm:$0xff]
        %v1085 = vld [vmem:[%s971 + $0x250] sm:$0xff]
        %v1086 = vld [vmem:[%s971 + $0x258] sm:$0xff]
        %v1087 = vld [vmem:[%s971 + $0x260] sm:$0xff]
        %v1088 = vld [vmem:[%s971 + $0x268] sm:$0xff]
        %v1089 = vld [vmem:[%s971 + $0x270] sm:$0xff]
        %v1090 = vld [vmem:[%s971 + $0x278] sm:$0xff]
        %v1091 = vld [vmem:[%s971 + $0x280] sm:$0xff]
        %v1092 = vld [vmem:[%s971 + $0x288] sm:$0xff]
        %v1093 = vld [vmem:[%s971 + $0x290] sm:$0xff]
        %v1094 = vld [vmem:[%s971 + $0x298] sm:$0xff]
        %v1095 = vld [vmem:[%s971 + $0x2a0] sm:$0xff]
        %v1096 = vld [vmem:[%s971 + $0x2a8] sm:$0xff]
        %v1097 = vld [vmem:[%s971 + $0x2b0] sm:$0xff]
        %v1098 = vld [vmem:[%s971 + $0x2b8] sm:$0xff]
        %v1099 = vld [vmem:[%s971 + $0x2c0] sm:$0xff]
        %v1100 = vld [vmem:[%s971 + $0x2c8] sm:$0xff]
        %v1101 = vld [vmem:[%s971 + $0x2d0] sm:$0xff]
        %v1102 = vld [vmem:[%s971 + $0x2d8] sm:$0xff]
        %v1103 = vld [vmem:[%s971 + $0x2e0] sm:$0xff]
        %v1104 = vld [vmem:[%s971 + $0x2e8] sm:$0xff]
        %v1105 = vld [vmem:[%s971 + $0x2f0] sm:$0xff]
        %v1106 = vld [vmem:[%s971 + $0x2f8] sm:$0xff]
        %v1107 = vld [vmem:[%s971 + $0x300] sm:$0xff]
        %v1108 = vld [vmem:[%s971 + $0x308] sm:$0xff]
        %v1109 = vld [vmem:[%s971 + $0x310] sm:$0xff]
        %v1110 = vld [vmem:[%s971 + $0x318] sm:$0xff]
        %v1111 = vld [vmem:[%s971 + $0x320] sm:$0xff]
        %v1112 = vld [vmem:[%s971 + $0x328] sm:$0xff]
        %v1113 = vld [vmem:[%s971 + $0x330] sm:$0xff]
        %v1114 = vld [vmem:[%s971 + $0x338] sm:$0xff]
        %v1115 = vld [vmem:[%s971 + $0x340] sm:$0xff]
        %v1116 = vld [vmem:[%s971 + $0x348] sm:$0xff]
        %v1117 = vld [vmem:[%s971 + $0x350] sm:$0xff]
        %v1118 = vld [vmem:[%s971 + $0x358] sm:$0xff]
        %v1119 = vld [vmem:[%s971 + $0x360] sm:$0xff]
        %v1120 = vld [vmem:[%s971 + $0x368] sm:$0xff]
        %v1121 = vld [vmem:[%s971 + $0x370] sm:$0xff]
        %v1122 = vld [vmem:[%s971 + $0x378] sm:$0xff]
        %v1123 = vld [vmem:[%s971 + $0x380] sm:$0xff]
        %v1124 = vld [vmem:[%s971 + $0x388] sm:$0xff]
        %v1125 = vld [vmem:[%s971 + $0x390] sm:$0xff]
        %v1126 = vld [vmem:[%s971 + $0x398] sm:$0xff]
        %v1127 = vld [vmem:[%s971 + $0x3a0] sm:$0xff]
        %v1128 = vld [vmem:[%s971 + $0x3a8] sm:$0xff]
        %v1129 = vld [vmem:[%s971 + $0x3b0] sm:$0xff]
        %v1130 = vld [vmem:[%s971 + $0x3b8] sm:$0xff]
        %v1131 = vld [vmem:[%s971 + $0x3c0] sm:$0xff]
        %v1132 = vld [vmem:[%s971 + $0x3c8] sm:$0xff]
        %v1133 = vld [vmem:[%s971 + $0x3d0] sm:$0xff]
        %v1134 = vld [vmem:[%s971 + $0x3d8] sm:$0xff]
        %v1135 = vld [vmem:[%s971 + $0x3e0] sm:$0xff]
        %v1136 = vld [vmem:[%s971 + $0x3e8] sm:$0xff]
        %v1137 = vld [vmem:[%s971 + $0x3f0] sm:$0xff]
        %v1138 = vld [vmem:[%s971 + $0x3f8] sm:$0xff]
        %v1139 = vld [vmem:[%s971 + $0x400] sm:$0xff]
        %v1140 = vld [vmem:[%s971 + $0x408] sm:$0xff]
        %v1141 = vld [vmem:[%s971 + $0x410] sm:$0xff]
        %v1142 = vld [vmem:[%s971 + $0x418] sm:$0xff]
        %v1143 = vld [vmem:[%s971 + $0x420] sm:$0xff]
        %v1144 = vld [vmem:[%s971 + $0x428] sm:$0xff]
        %v1145 = vld [vmem:[%s971 + $0x430] sm:$0xff]
        %v1146 = vld [vmem:[%s971 + $0x438] sm:$0xff]
        %v1147 = vld [vmem:[%s971 + $0x440] sm:$0xff]
        %v1148 = vld [vmem:[%s971 + $0x448] sm:$0xff]
        %v1149 = vld [vmem:[%s971 + $0x450] sm:$0xff]
        %v1150 = vld [vmem:[%s971 + $0x458] sm:$0xff]
        %v1151 = vld [vmem:[%s971 + $0x460] sm:$0xff]
        %v1152 = vld [vmem:[%s971 + $0x468] sm:$0xff]
        %v1153 = vld [vmem:[%s971 + $0x470] sm:$0xff]
        %v1154 = vld [vmem:[%s971 + $0x478] sm:$0xff]
        %v1155 = vld [vmem:[%s971 + $0x480] sm:$0xff]
        %v1156 = vld [vmem:[%s971 + $0x488] sm:$0xff]
        %v1157 = vld [vmem:[%s971 + $0x490] sm:$0xff]
        %v1158 = vld [vmem:[%s971 + $0x498] sm:$0xff]
        %v1159 = vld [vmem:[%s971 + $0x4a0] sm:$0xff]
        %v1160 = vld [vmem:[%s971 + $0x4a8] sm:$0xff]
        %v1161 = vld [vmem:[%s971 + $0x4b0] sm:$0xff]
        %v1162 = vld [vmem:[%s971 + $0x4b8] sm:$0xff]
        %v1163 = vld [vmem:[%s971 + $0x4c0] sm:$0xff]
        %v1164 = vld [vmem:[%s971 + $0x4c8] sm:$0xff]
        %v1165 = vld [vmem:[%s971 + $0x4d0] sm:$0xff]
        %v1166 = vld [vmem:[%s971 + $0x4d8] sm:$0xff]
        %v1167 = vld [vmem:[%s971 + $0x4e0] sm:$0xff]
        %v1168 = vld [vmem:[%s971 + $0x4e8] sm:$0xff]
        %v1169 = vld [vmem:[%s971 + $0x4f0] sm:$0xff]
        %v1170 = vld [vmem:[%s971 + $0x4f8] sm:$0xff]
        %v1171 = vld [vmem:[%s971 + $0x500] sm:$0xff]
        %v1172 = vld [vmem:[%s971 + $0x508] sm:$0xff]
        %v1173 = vld [vmem:[%s971 + $0x510] sm:$0xff]
        %v1174 = vld [vmem:[%s971 + $0x518] sm:$0xff]
        %v1175 = vld [vmem:[%s971 + $0x520] sm:$0xff]
        %v1176 = vld [vmem:[%s971 + $0x528] sm:$0xff]
        %v1177 = vld [vmem:[%s971 + $0x530] sm:$0xff]
        %v1178 = vld [vmem:[%s971 + $0x538] sm:$0xff]
        %v1179 = vld [vmem:[%s971 + $0x540] sm:$0xff]
        %v1180 = vld [vmem:[%s971 + $0x548] sm:$0xff]
        %v1181 = vld [vmem:[%s971 + $0x550] sm:$0xff]
        %v1182 = vld [vmem:[%s971 + $0x558] sm:$0xff]
        %v1183 = vld [vmem:[%s971 + $0x560] sm:$0xff]
        %v1184 = vld [vmem:[%s971 + $0x568] sm:$0xff]
        %v1185 = vld [vmem:[%s971 + $0x570] sm:$0xff]
        %v1186 = vld [vmem:[%s971 + $0x578] sm:$0xff]
        %v1187 = vld [vmem:[%s971 + $0x580] sm:$0xff]
        %v1188 = vld [vmem:[%s971 + $0x588] sm:$0xff]
        %v1189 = vld [vmem:[%s971 + $0x590] sm:$0xff]
        %v1190 = vld [vmem:[%s971 + $0x598] sm:$0xff]
        %v1191 = vld [vmem:[%s971 + $0x5a0] sm:$0xff]
        %v1192 = vld [vmem:[%s971 + $0x5a8] sm:$0xff]
        %v1193 = vld [vmem:[%s971 + $0x5b0] sm:$0xff]
        %v1194 = vld [vmem:[%s971 + $0x5b8] sm:$0xff]
        %v1195 = vmax.f32 %v1011, 0.0
        %v1196 = vmax.f32 %v1012, 0.0
        %v1197 = vmax.f32 %v1013, 0.0
        %v1198 = vmax.f32 %v1014, 0.0
        %v1199 = vmax.f32 %v1015, 0.0
        %v1200 = vmax.f32 %v1016, 0.0
        %v1201 = vmax.f32 %v1017, 0.0
        %v1202 = vmax.f32 %v1018, 0.0
        %v1203 = vmax.f32 %v1019, 0.0
        %v1204 = vmax.f32 %v1020, 0.0
        %v1205 = vmax.f32 %v1021, 0.0
        %v1206 = vmax.f32 %v1022, 0.0
        %v1207 = vmax.f32 %v1023, 0.0
        %v1208 = vmax.f32 %v1024, 0.0
        %v1209 = vmax.f32 %v1025, 0.0
        %v1210 = vmax.f32 %v1026, 0.0
        %v1211 = vmax.f32 %v1027, 0.0
        %v1212 = vmax.f32 %v1028, 0.0
        %v1213 = vmax.f32 %v1029, 0.0
        %v1214 = vmax.f32 %v1030, 0.0
        %v1215 = vmax.f32 %v1031, 0.0
        %v1216 = vmax.f32 %v1032, 0.0
        %v1217 = vmax.f32 %v1033, 0.0
        %v1218 = vmax.f32 %v1034, 0.0
        %v1219 = vmax.f32 %v1035, 0.0
        %v1220 = vmax.f32 %v1036, 0.0
        %v1221 = vmax.f32 %v1037, 0.0
        %v1222 = vmax.f32 %v1038, 0.0
        %v1223 = vmax.f32 %v1039, 0.0
        %v1224 = vmax.f32 %v1040, 0.0
        %v1225 = vmax.f32 %v1041, 0.0
        %v1226 = vmax.f32 %v1042, 0.0
        %v1227 = vmax.f32 %v1043, 0.0
        %v1228 = vmax.f32 %v1044, 0.0
        %v1229 = vmax.f32 %v1045, 0.0
        %v1230 = vmax.f32 %v1046, 0.0
        %v1231 = vmax.f32 %v1047, 0.0
        %v1232 = vmax.f32 %v1048, 0.0
        %v1233 = vmax.f32 %v1049, 0.0
        %v1234 = vmax.f32 %v1050, 0.0
        %v1235 = vmax.f32 %v1051, 0.0
        %v1236 = vmax.f32 %v1052, 0.0
        %v1237 = vmax.f32 %v1053, 0.0
        %v1238 = vmax.f32 %v1054, 0.0
        %v1239 = vmax.f32 %v1055, 0.0
        %v1240 = vmax.f32 %v1056, 0.0
        %v1241 = vmax.f32 %v1057, 0.0
        %v1242 = vmax.f32 %v1058, 0.0
        %v1243 = vmax.f32 %v1059, 0.0
        %v1244 = vmax.f32 %v1060, 0.0
        %v1245 = vmax.f32 %v1061, 0.0
        %v1246 = vmax.f32 %v1062, 0.0
        %v1247 = vmax.f32 %v1063, 0.0
        %v1248 = vmax.f32 %v1064, 0.0
        %v1249 = vmax.f32 %v1065, 0.0
        %v1250 = vmax.f32 %v1066, 0.0
        %v1251 = vmax.f32 %v1067, 0.0
        %v1252 = vmax.f32 %v1068, 0.0
        %v1253 = vmax.f32 %v1069, 0.0
        %v1254 = vmax.f32 %v1070, 0.0
        %v1255 = vmax.f32 %v1071, 0.0
        %v1256 = vmax.f32 %v1072, 0.0
        %v1257 = vmax.f32 %v1073, 0.0
        %v1258 = vmax.f32 %v1074, 0.0
        %v1259 = vmax.f32 %v1075, 0.0
        %v1260 = vmax.f32 %v1076, 0.0
        %v1261 = vmax.f32 %v1077, 0.0
        %v1262 = vmax.f32 %v1078, 0.0
        %v1263 = vmax.f32 %v1079, 0.0
        %v1264 = vmax.f32 %v1080, 0.0
        %v1265 = vmax.f32 %v1081, 0.0
        %v1266 = vmax.f32 %v1082, 0.0
        %v1267 = vmax.f32 %v1083, 0.0
        %v1268 = vmax.f32 %v1084, 0.0
        %v1269 = vmax.f32 %v1085, 0.0
        %v1270 = vmax.f32 %v1086, 0.0
        %v1271 = vmax.f32 %v1087, 0.0
        %v1272 = vmax.f32 %v1088, 0.0
        %v1273 = vmax.f32 %v1089, 0.0
        %v1274 = vmax.f32 %v1090, 0.0
        %v1275 = vmax.f32 %v1091, 0.0
        %v1276 = vmax.f32 %v1092, 0.0
        %v1277 = vmax.f32 %v1093, 0.0
        %v1278 = vmax.f32 %v1094, 0.0
        %v1279 = vmax.f32 %v1095, 0.0
        %v1280 = vmax.f32 %v1096, 0.0
        %v1281 = vmax.f32 %v1097, 0.0
        %v1282 = vmax.f32 %v1098, 0.0
        %v1283 = vmax.f32 %v1099, 0.0
        %v1284 = vmax.f32 %v1100, 0.0
        %v1285 = vmax.f32 %v1101, 0.0
        %v1286 = vmax.f32 %v1102, 0.0
        %v1287 = vmax.f32 %v1103, 0.0
        %v1288 = vmax.f32 %v1104, 0.0
        %v1289 = vmax.f32 %v1105, 0.0
        %v1290 = vmax.f32 %v1106, 0.0
        %v1291 = vmax.f32 %v1107, 0.0
        %v1292 = vmax.f32 %v1108, 0.0
        %v1293 = vmax.f32 %v1109, 0.0
        %v1294 = vmax.f32 %v1110, 0.0
        %v1295 = vmax.f32 %v1111, 0.0
        %v1296 = vmax.f32 %v1112, 0.0
        %v1297 = vmax.f32 %v1113, 0.0
        %v1298 = vmax.f32 %v1114, 0.0
        %v1299 = vmax.f32 %v1115, 0.0
        %v1300 = vmax.f32 %v1116, 0.0
        %v1301 = vmax.f32 %v1117, 0.0
        %v1302 = vmax.f32 %v1118, 0.0
        %v1303 = vmax.f32 %v1119, 0.0
        %v1304 = vmax.f32 %v1120, 0.0
        %v1305 = vmax.f32 %v1121, 0.0
        %v1306 = vmax.f32 %v1122, 0.0
        %v1307 = vmax.f32 %v1123, 0.0
        %v1308 = vmax.f32 %v1124, 0.0
        %v1309 = vmax.f32 %v1125, 0.0
        %v1310 = vmax.f32 %v1126, 0.0
        %v1311 = vmax.f32 %v1127, 0.0
        %v1312 = vmax.f32 %v1128, 0.0
        %v1313 = vmax.f32 %v1129, 0.0
        %v1314 = vmax.f32 %v1130, 0.0
        %v1315 = vmax.f32 %v1131, 0.0
        %v1316 = vmax.f32 %v1132, 0.0
        %v1317 = vmax.f32 %v1133, 0.0
        %v1318 = vmax.f32 %v1134, 0.0
        %v1319 = vmax.f32 %v1135, 0.0
        %v1320 = vmax.f32 %v1136, 0.0
        %v1321 = vmax.f32 %v1137, 0.0
        %v1322 = vmax.f32 %v1138, 0.0
        %v1323 = vmax.f32 %v1139, 0.0
        %v1324 = vmax.f32 %v1140, 0.0
        %v1325 = vmax.f32 %v1141, 0.0
        %v1326 = vmax.f32 %v1142, 0.0
        %v1327 = vmax.f32 %v1143, 0.0
        %v1328 = vmax.f32 %v1144, 0.0
        %v1329 = vmax.f32 %v1145, 0.0
        %v1330 = vmax.f32 %v1146, 0.0
        %v1331 = vmax.f32 %v1147, 0.0
        %v1332 = vmax.f32 %v1148, 0.0
        %v1333 = vmax.f32 %v1149, 0.0
        %v1334 = vmax.f32 %v1150, 0.0
        %v1335 = vmax.f32 %v1151, 0.0
        %v1336 = vmax.f32 %v1152, 0.0
        %v1337 = vmax.f32 %v1153, 0.0
        %v1338 = vmax.f32 %v1154, 0.0
        %v1339 = vmax.f32 %v1155, 0.0
        %v1340 = vmax.f32 %v1156, 0.0
        %v1341 = vmax.f32 %v1157, 0.0
        %v1342 = vmax.f32 %v1158, 0.0
        %v1343 = vmax.f32 %v1159, 0.0
        %v1344 = vmax.f32 %v1160, 0.0
        %v1345 = vmax.f32 %v1161, 0.0
        %v1346 = vmax.f32 %v1162, 0.0
        %v1347 = vmax.f32 %v1163, 0.0
        %v1348 = vmax.f32 %v1164, 0.0
        %v1349 = vmax.f32 %v1165, 0.0
        %v1350 = vmax.f32 %v1166, 0.0
        %v1351 = vmax.f32 %v1167, 0.0
        %v1352 = vmax.f32 %v1168, 0.0
        %v1353 = vmax.f32 %v1169, 0.0
        %v1354 = vmax.f32 %v1170, 0.0
        %v1355 = vmax.f32 %v1171, 0.0
        %v1356 = vmax.f32 %v1172, 0.0
        %v1357 = vmax.f32 %v1173, 0.0
        %v1358 = vmax.f32 %v1174, 0.0
        %v1359 = vmax.f32 %v1175, 0.0
        %v1360 = vmax.f32 %v1176, 0.0
        %v1361 = vmax.f32 %v1177, 0.0
        %v1362 = vmax.f32 %v1178, 0.0
        %v1363 = vmax.f32 %v1179, 0.0
        %v1364 = vmax.f32 %v1180, 0.0
        %v1365 = vmax.f32 %v1181, 0.0
        %v1366 = vmax.f32 %v1182, 0.0
        %v1367 = vmax.f32 %v1183, 0.0
        %v1368 = vmax.f32 %v1184, 0.0
        %v1369 = vmax.f32 %v1185, 0.0
        %v1370 = vmax.f32 %v1186, 0.0
        %v1371 = vmax.f32 %v1187, 0.0
        %v1372 = vmax.f32 %v1188, 0.0
        %v1373 = vmax.f32 %v1189, 0.0
        %v1374 = vmax.f32 %v1190, 0.0
        %v1375 = vmax.f32 %v1191, 0.0
        %v1376 = vmax.f32 %v1192, 0.0
        %v1377 = vmax.f32 %v1193, 0.0
        %v1378 = vmax.f32 %v1194, 0.0
        %vm1379 = vcmask 400384
        %v1380 = vsel %vm1379, %v1195, 0.0
        %1381 = vadd.xlane.f32.xlu0 %v1380
        %v1382 = vpop.xlane.xlu0 %1381
        %v1383 = vsel %vm1379, %v1196, 0.0
        %1384 = vadd.xlane.f32.xlu0 %v1383
        %v1385 = vpop.xlane.xlu0 %1384
        %v1386 = vsel %vm1379, %v1197, 0.0
        %1387 = vadd.xlane.f32.xlu0 %v1386
        %v1388 = vpop.xlane.xlu0 %1387
        %v1389 = vsel %vm1379, %v1198, 0.0
        %1390 = vadd.xlane.f32.xlu0 %v1389
        %v1391 = vpop.xlane.xlu0 %1390
        %v1392 = vsel %vm1379, %v1199, 0.0
        %1393 = vadd.xlane.f32.xlu0 %v1392
        %v1394 = vpop.xlane.xlu0 %1393
        %v1395 = vsel %vm1379, %v1200, 0.0
        %1396 = vadd.xlane.f32.xlu0 %v1395
        %v1397 = vpop.xlane.xlu0 %1396
        %v1398 = vsel %vm1379, %v1201, 0.0
        %1399 = vadd.xlane.f32.xlu0 %v1398
        %v1400 = vpop.xlane.xlu0 %1399
        %v1401 = vsel %vm1379, %v1202, 0.0
        %1402 = vadd.xlane.f32.xlu0 %v1401
        %v1403 = vpop.xlane.xlu0 %1402
        %v1404 = vsel %vm1379, %v1203, 0.0
        %1405 = vadd.xlane.f32.xlu0 %v1404
        %v1406 = vpop.xlane.xlu0 %1405
        %v1407 = vsel %vm1379, %v1204, 0.0
        %1408 = vadd.xlane.f32.xlu0 %v1407
        %v1409 = vpop.xlane.xlu0 %1408
        %v1410 = vsel %vm1379, %v1205, 0.0
        %1411 = vadd.xlane.f32.xlu0 %v1410
        %v1412 = vpop.xlane.xlu0 %1411
        %v1413 = vsel %vm1379, %v1206, 0.0
        %1414 = vadd.xlane.f32.xlu0 %v1413
        %v1415 = vpop.xlane.xlu0 %1414
        %v1416 = vsel %vm1379, %v1207, 0.0
        %1417 = vadd.xlane.f32.xlu0 %v1416
        %v1418 = vpop.xlane.xlu0 %1417
        %v1419 = vsel %vm1379, %v1208, 0.0
        %1420 = vadd.xlane.f32.xlu0 %v1419
        %v1421 = vpop.xlane.xlu0 %1420
        %v1422 = vsel %vm1379, %v1209, 0.0
        %1423 = vadd.xlane.f32.xlu0 %v1422
        %v1424 = vpop.xlane.xlu0 %1423
        %v1425 = vsel %vm1379, %v1210, 0.0
        %1426 = vadd.xlane.f32.xlu0 %v1425
        %v1427 = vpop.xlane.xlu0 %1426
        %v1428 = vsel %vm1379, %v1211, 0.0
        %1429 = vadd.xlane.f32.xlu0 %v1428
        %v1430 = vpop.xlane.xlu0 %1429
        %v1431 = vsel %vm1379, %v1212, 0.0
        %1432 = vadd.xlane.f32.xlu0 %v1431
        %v1433 = vpop.xlane.xlu0 %1432
        %v1434 = vsel %vm1379, %v1213, 0.0
        %1435 = vadd.xlane.f32.xlu0 %v1434
        %v1436 = vpop.xlane.xlu0 %1435
        %v1437 = vsel %vm1379, %v1214, 0.0
        %1438 = vadd.xlane.f32.xlu0 %v1437
        %v1439 = vpop.xlane.xlu0 %1438
        %v1440 = vsel %vm1379, %v1215, 0.0
        %1441 = vadd.xlane.f32.xlu0 %v1440
        %v1442 = vpop.xlane.xlu0 %1441
        %v1443 = vsel %vm1379, %v1216, 0.0
        %1444 = vadd.xlane.f32.xlu0 %v1443
        %v1445 = vpop.xlane.xlu0 %1444
        %v1446 = vsel %vm1379, %v1217, 0.0
        %1447 = vadd.xlane.f32.xlu0 %v1446
        %v1448 = vpop.xlane.xlu0 %1447
        %v1449 = vsel %vm1379, %v1218, 0.0
        %1450 = vadd.xlane.f32.xlu0 %v1449
        %v1451 = vpop.xlane.xlu0 %1450
        %v1452 = vsel %vm1379, %v1219, 0.0
        %1453 = vadd.xlane.f32.xlu0 %v1452
        %v1454 = vpop.xlane.xlu0 %1453
        %v1455 = vsel %vm1379, %v1220, 0.0
        %1456 = vadd.xlane.f32.xlu0 %v1455
        %v1457 = vpop.xlane.xlu0 %1456
        %v1458 = vsel %vm1379, %v1221, 0.0
        %1459 = vadd.xlane.f32.xlu0 %v1458
        %v1460 = vpop.xlane.xlu0 %1459
        %v1461 = vsel %vm1379, %v1222, 0.0
        %1462 = vadd.xlane.f32.xlu0 %v1461
        %v1463 = vpop.xlane.xlu0 %1462
        %v1464 = vsel %vm1379, %v1223, 0.0
        %1465 = vadd.xlane.f32.xlu0 %v1464
        %v1466 = vpop.xlane.xlu0 %1465
        %v1467 = vsel %vm1379, %v1224, 0.0
        %1468 = vadd.xlane.f32.xlu0 %v1467
        %v1469 = vpop.xlane.xlu0 %1468
        %v1470 = vsel %vm1379, %v1225, 0.0
        %1471 = vadd.xlane.f32.xlu0 %v1470
        %v1472 = vpop.xlane.xlu0 %1471
        %v1473 = vsel %vm1379, %v1226, 0.0
        %1474 = vadd.xlane.f32.xlu0 %v1473
        %v1475 = vpop.xlane.xlu0 %1474
        %v1476 = vsel %vm1379, %v1227, 0.0
        %1477 = vadd.xlane.f32.xlu0 %v1476
        %v1478 = vpop.xlane.xlu0 %1477
        %v1479 = vsel %vm1379, %v1228, 0.0
        %1480 = vadd.xlane.f32.xlu0 %v1479
        %v1481 = vpop.xlane.xlu0 %1480
        %v1482 = vsel %vm1379, %v1229, 0.0
        %1483 = vadd.xlane.f32.xlu0 %v1482
        %v1484 = vpop.xlane.xlu0 %1483
        %v1485 = vsel %vm1379, %v1230, 0.0
        %1486 = vadd.xlane.f32.xlu0 %v1485
        %v1487 = vpop.xlane.xlu0 %1486
        %v1488 = vsel %vm1379, %v1231, 0.0
        %1489 = vadd.xlane.f32.xlu0 %v1488
        %v1490 = vpop.xlane.xlu0 %1489
        %v1491 = vsel %vm1379, %v1232, 0.0
        %1492 = vadd.xlane.f32.xlu0 %v1491
        %v1493 = vpop.xlane.xlu0 %1492
        %v1494 = vsel %vm1379, %v1233, 0.0
        %1495 = vadd.xlane.f32.xlu0 %v1494
        %v1496 = vpop.xlane.xlu0 %1495
        %v1497 = vsel %vm1379, %v1234, 0.0
        %1498 = vadd.xlane.f32.xlu0 %v1497
        %v1499 = vpop.xlane.xlu0 %1498
        %v1500 = vsel %vm1379, %v1235, 0.0
        %1501 = vadd.xlane.f32.xlu0 %v1500
        %v1502 = vpop.xlane.xlu0 %1501
        %v1503 = vsel %vm1379, %v1236, 0.0
        %1504 = vadd.xlane.f32.xlu0 %v1503
        %v1505 = vpop.xlane.xlu0 %1504
        %v1506 = vsel %vm1379, %v1237, 0.0
        %1507 = vadd.xlane.f32.xlu0 %v1506
        %v1508 = vpop.xlane.xlu0 %1507
        %v1509 = vsel %vm1379, %v1238, 0.0
        %1510 = vadd.xlane.f32.xlu0 %v1509
        %v1511 = vpop.xlane.xlu0 %1510
        %v1512 = vsel %vm1379, %v1239, 0.0
        %1513 = vadd.xlane.f32.xlu0 %v1512
        %v1514 = vpop.xlane.xlu0 %1513
        %v1515 = vsel %vm1379, %v1240, 0.0
        %1516 = vadd.xlane.f32.xlu0 %v1515
        %v1517 = vpop.xlane.xlu0 %1516
        %v1518 = vsel %vm1379, %v1241, 0.0
        %1519 = vadd.xlane.f32.xlu0 %v1518
        %v1520 = vpop.xlane.xlu0 %1519
        %v1521 = vsel %vm1379, %v1242, 0.0
        %1522 = vadd.xlane.f32.xlu0 %v1521
        %v1523 = vpop.xlane.xlu0 %1522
        %v1524 = vsel %vm1379, %v1243, 0.0
        %1525 = vadd.xlane.f32.xlu0 %v1524
        %v1526 = vpop.xlane.xlu0 %1525
        %v1527 = vsel %vm1379, %v1244, 0.0
        %1528 = vadd.xlane.f32.xlu0 %v1527
        %v1529 = vpop.xlane.xlu0 %1528
        %v1530 = vsel %vm1379, %v1245, 0.0
        %1531 = vadd.xlane.f32.xlu0 %v1530
        %v1532 = vpop.xlane.xlu0 %1531
        %v1533 = vsel %vm1379, %v1246, 0.0
        %1534 = vadd.xlane.f32.xlu0 %v1533
        %v1535 = vpop.xlane.xlu0 %1534
        %v1536 = vsel %vm1379, %v1247, 0.0
        %1537 = vadd.xlane.f32.xlu0 %v1536
        %v1538 = vpop.xlane.xlu0 %1537
        %v1539 = vsel %vm1379, %v1248, 0.0
        %1540 = vadd.xlane.f32.xlu0 %v1539
        %v1541 = vpop.xlane.xlu0 %1540
        %v1542 = vsel %vm1379, %v1249, 0.0
        %1543 = vadd.xlane.f32.xlu0 %v1542
        %v1544 = vpop.xlane.xlu0 %1543
        %v1545 = vsel %vm1379, %v1250, 0.0
        %1546 = vadd.xlane.f32.xlu0 %v1545
        %v1547 = vpop.xlane.xlu0 %1546
        %v1548 = vsel %vm1379, %v1251, 0.0
        %1549 = vadd.xlane.f32.xlu0 %v1548
        %v1550 = vpop.xlane.xlu0 %1549
        %v1551 = vsel %vm1379, %v1252, 0.0
        %1552 = vadd.xlane.f32.xlu0 %v1551
        %v1553 = vpop.xlane.xlu0 %1552
        %v1554 = vsel %vm1379, %v1253, 0.0
        %1555 = vadd.xlane.f32.xlu0 %v1554
        %v1556 = vpop.xlane.xlu0 %1555
        %v1557 = vsel %vm1379, %v1254, 0.0
        %1558 = vadd.xlane.f32.xlu0 %v1557
        %v1559 = vpop.xlane.xlu0 %1558
        %v1560 = vsel %vm1379, %v1255, 0.0
        %1561 = vadd.xlane.f32.xlu0 %v1560
        %v1562 = vpop.xlane.xlu0 %1561
        %v1563 = vsel %vm1379, %v1256, 0.0
        %1564 = vadd.xlane.f32.xlu0 %v1563
        %v1565 = vpop.xlane.xlu0 %1564
        %v1566 = vsel %vm1379, %v1257, 0.0
        %1567 = vadd.xlane.f32.xlu0 %v1566
        %v1568 = vpop.xlane.xlu0 %1567
        %v1569 = vsel %vm1379, %v1258, 0.0
        %1570 = vadd.xlane.f32.xlu0 %v1569
        %v1571 = vpop.xlane.xlu0 %1570
        %v1572 = vsel %vm1379, %v1259, 0.0
        %1573 = vadd.xlane.f32.xlu0 %v1572
        %v1574 = vpop.xlane.xlu0 %1573
        %v1575 = vsel %vm1379, %v1260, 0.0
        %1576 = vadd.xlane.f32.xlu0 %v1575
        %v1577 = vpop.xlane.xlu0 %1576
        %v1578 = vsel %vm1379, %v1261, 0.0
        %1579 = vadd.xlane.f32.xlu0 %v1578
        %v1580 = vpop.xlane.xlu0 %1579
        %v1581 = vsel %vm1379, %v1262, 0.0
        %1582 = vadd.xlane.f32.xlu0 %v1581
        %v1583 = vpop.xlane.xlu0 %1582
        %v1584 = vsel %vm1379, %v1263, 0.0
        %1585 = vadd.xlane.f32.xlu0 %v1584
        %v1586 = vpop.xlane.xlu0 %1585
        %v1587 = vsel %vm1379, %v1264, 0.0
        %1588 = vadd.xlane.f32.xlu0 %v1587
        %v1589 = vpop.xlane.xlu0 %1588
        %v1590 = vsel %vm1379, %v1265, 0.0
        %1591 = vadd.xlane.f32.xlu0 %v1590
        %v1592 = vpop.xlane.xlu0 %1591
        %v1593 = vsel %vm1379, %v1266, 0.0
        %1594 = vadd.xlane.f32.xlu0 %v1593
        %v1595 = vpop.xlane.xlu0 %1594
        %v1596 = vsel %vm1379, %v1267, 0.0
        %1597 = vadd.xlane.f32.xlu0 %v1596
        %v1598 = vpop.xlane.xlu0 %1597
        %v1599 = vsel %vm1379, %v1268, 0.0
        %1600 = vadd.xlane.f32.xlu0 %v1599
        %v1601 = vpop.xlane.xlu0 %1600
        %v1602 = vsel %vm1379, %v1269, 0.0
        %1603 = vadd.xlane.f32.xlu0 %v1602
        %v1604 = vpop.xlane.xlu0 %1603
        %v1605 = vsel %vm1379, %v1270, 0.0
        %1606 = vadd.xlane.f32.xlu0 %v1605
        %v1607 = vpop.xlane.xlu0 %1606
        %v1608 = vsel %vm1379, %v1271, 0.0
        %1609 = vadd.xlane.f32.xlu0 %v1608
        %v1610 = vpop.xlane.xlu0 %1609
        %v1611 = vsel %vm1379, %v1272, 0.0
        %1612 = vadd.xlane.f32.xlu0 %v1611
        %v1613 = vpop.xlane.xlu0 %1612
        %v1614 = vsel %vm1379, %v1273, 0.0
        %1615 = vadd.xlane.f32.xlu0 %v1614
        %v1616 = vpop.xlane.xlu0 %1615
        %v1617 = vsel %vm1379, %v1274, 0.0
        %1618 = vadd.xlane.f32.xlu0 %v1617
        %v1619 = vpop.xlane.xlu0 %1618
        %v1620 = vsel %vm1379, %v1275, 0.0
        %1621 = vadd.xlane.f32.xlu0 %v1620
        %v1622 = vpop.xlane.xlu0 %1621
        %v1623 = vsel %vm1379, %v1276, 0.0
        %1624 = vadd.xlane.f32.xlu0 %v1623
        %v1625 = vpop.xlane.xlu0 %1624
        %v1626 = vsel %vm1379, %v1277, 0.0
        %1627 = vadd.xlane.f32.xlu0 %v1626
        %v1628 = vpop.xlane.xlu0 %1627
        %v1629 = vsel %vm1379, %v1278, 0.0
        %1630 = vadd.xlane.f32.xlu0 %v1629
        %v1631 = vpop.xlane.xlu0 %1630
        %v1632 = vsel %vm1379, %v1279, 0.0
        %1633 = vadd.xlane.f32.xlu0 %v1632
        %v1634 = vpop.xlane.xlu0 %1633
        %v1635 = vsel %vm1379, %v1280, 0.0
        %1636 = vadd.xlane.f32.xlu0 %v1635
        %v1637 = vpop.xlane.xlu0 %1636
        %v1638 = vsel %vm1379, %v1281, 0.0
        %1639 = vadd.xlane.f32.xlu0 %v1638
        %v1640 = vpop.xlane.xlu0 %1639
        %v1641 = vsel %vm1379, %v1282, 0.0
        %1642 = vadd.xlane.f32.xlu0 %v1641
        %v1643 = vpop.xlane.xlu0 %1642
        %v1644 = vsel %vm1379, %v1283, 0.0
        %1645 = vadd.xlane.f32.xlu0 %v1644
        %v1646 = vpop.xlane.xlu0 %1645
        %v1647 = vsel %vm1379, %v1284, 0.0
        %1648 = vadd.xlane.f32.xlu0 %v1647
        %v1649 = vpop.xlane.xlu0 %1648
        %v1650 = vsel %vm1379, %v1285, 0.0
        %1651 = vadd.xlane.f32.xlu0 %v1650
        %v1652 = vpop.xlane.xlu0 %1651
        %v1653 = vsel %vm1379, %v1286, 0.0
        %1654 = vadd.xlane.f32.xlu0 %v1653
        %v1655 = vpop.xlane.xlu0 %1654
        %v1656 = vsel %vm1379, %v1287, 0.0
        %1657 = vadd.xlane.f32.xlu0 %v1656
        %v1658 = vpop.xlane.xlu0 %1657
        %v1659 = vsel %vm1379, %v1288, 0.0
        %1660 = vadd.xlane.f32.xlu0 %v1659
        %v1661 = vpop.xlane.xlu0 %1660
        %v1662 = vsel %vm1379, %v1289, 0.0
        %1663 = vadd.xlane.f32.xlu0 %v1662
        %v1664 = vpop.xlane.xlu0 %1663
        %v1665 = vsel %vm1379, %v1290, 0.0
        %1666 = vadd.xlane.f32.xlu0 %v1665
        %v1667 = vpop.xlane.xlu0 %1666
        %v1668 = vsel %vm1379, %v1291, 0.0
        %1669 = vadd.xlane.f32.xlu0 %v1668
        %v1670 = vpop.xlane.xlu0 %1669
        %v1671 = vsel %vm1379, %v1292, 0.0
        %1672 = vadd.xlane.f32.xlu0 %v1671
        %v1673 = vpop.xlane.xlu0 %1672
        %v1674 = vsel %vm1379, %v1293, 0.0
        %1675 = vadd.xlane.f32.xlu0 %v1674
        %v1676 = vpop.xlane.xlu0 %1675
        %v1677 = vsel %vm1379, %v1294, 0.0
        %1678 = vadd.xlane.f32.xlu0 %v1677
        %v1679 = vpop.xlane.xlu0 %1678
        %v1680 = vsel %vm1379, %v1295, 0.0
        %1681 = vadd.xlane.f32.xlu0 %v1680
        %v1682 = vpop.xlane.xlu0 %1681
        %v1683 = vsel %vm1379, %v1296, 0.0
        %1684 = vadd.xlane.f32.xlu0 %v1683
        %v1685 = vpop.xlane.xlu0 %1684
        %v1686 = vsel %vm1379, %v1297, 0.0
        %1687 = vadd.xlane.f32.xlu0 %v1686
        %v1688 = vpop.xlane.xlu0 %1687
        %v1689 = vsel %vm1379, %v1298, 0.0
        %1690 = vadd.xlane.f32.xlu0 %v1689
        %v1691 = vpop.xlane.xlu0 %1690
        %v1692 = vsel %vm1379, %v1299, 0.0
        %1693 = vadd.xlane.f32.xlu0 %v1692
        %v1694 = vpop.xlane.xlu0 %1693
        %v1695 = vsel %vm1379, %v1300, 0.0
        %1696 = vadd.xlane.f32.xlu0 %v1695
        %v1697 = vpop.xlane.xlu0 %1696
        %v1698 = vsel %vm1379, %v1301, 0.0
        %1699 = vadd.xlane.f32.xlu0 %v1698
        %v1700 = vpop.xlane.xlu0 %1699
        %v1701 = vsel %vm1379, %v1302, 0.0
        %1702 = vadd.xlane.f32.xlu0 %v1701
        %v1703 = vpop.xlane.xlu0 %1702
        %v1704 = vsel %vm1379, %v1303, 0.0
        %1705 = vadd.xlane.f32.xlu0 %v1704
        %v1706 = vpop.xlane.xlu0 %1705
        %v1707 = vsel %vm1379, %v1304, 0.0
        %1708 = vadd.xlane.f32.xlu0 %v1707
        %v1709 = vpop.xlane.xlu0 %1708
        %v1710 = vsel %vm1379, %v1305, 0.0
        %1711 = vadd.xlane.f32.xlu0 %v1710
        %v1712 = vpop.xlane.xlu0 %1711
        %v1713 = vsel %vm1379, %v1306, 0.0
        %1714 = vadd.xlane.f32.xlu0 %v1713
        %v1715 = vpop.xlane.xlu0 %1714
        %v1716 = vsel %vm1379, %v1307, 0.0
        %1717 = vadd.xlane.f32.xlu0 %v1716
        %v1718 = vpop.xlane.xlu0 %1717
        %v1719 = vsel %vm1379, %v1308, 0.0
        %1720 = vadd.xlane.f32.xlu0 %v1719
        %v1721 = vpop.xlane.xlu0 %1720
        %v1722 = vsel %vm1379, %v1309, 0.0
        %1723 = vadd.xlane.f32.xlu0 %v1722
        %v1724 = vpop.xlane.xlu0 %1723
        %v1725 = vsel %vm1379, %v1310, 0.0
        %1726 = vadd.xlane.f32.xlu0 %v1725
        %v1727 = vpop.xlane.xlu0 %1726
        %v1728 = vsel %vm1379, %v1311, 0.0
        %1729 = vadd.xlane.f32.xlu0 %v1728
        %v1730 = vpop.xlane.xlu0 %1729
        %v1731 = vsel %vm1379, %v1312, 0.0
        %1732 = vadd.xlane.f32.xlu0 %v1731
        %v1733 = vpop.xlane.xlu0 %1732
        %v1734 = vsel %vm1379, %v1313, 0.0
        %1735 = vadd.xlane.f32.xlu0 %v1734
        %v1736 = vpop.xlane.xlu0 %1735
        %v1737 = vsel %vm1379, %v1314, 0.0
        %1738 = vadd.xlane.f32.xlu0 %v1737
        %v1739 = vpop.xlane.xlu0 %1738
        %v1740 = vsel %vm1379, %v1315, 0.0
        %1741 = vadd.xlane.f32.xlu0 %v1740
        %v1742 = vpop.xlane.xlu0 %1741
        %v1743 = vsel %vm1379, %v1316, 0.0
        %1744 = vadd.xlane.f32.xlu0 %v1743
        %v1745 = vpop.xlane.xlu0 %1744
        %v1746 = vsel %vm1379, %v1317, 0.0
        %1747 = vadd.xlane.f32.xlu0 %v1746
        %v1748 = vpop.xlane.xlu0 %1747
        %v1749 = vsel %vm1379, %v1318, 0.0
        %1750 = vadd.xlane.f32.xlu0 %v1749
        %v1751 = vpop.xlane.xlu0 %1750
        %v1752 = vsel %vm1379, %v1319, 0.0
        %1753 = vadd.xlane.f32.xlu0 %v1752
        %v1754 = vpop.xlane.xlu0 %1753
        %v1755 = vsel %vm1379, %v1320, 0.0
        %1756 = vadd.xlane.f32.xlu0 %v1755
        %v1757 = vpop.xlane.xlu0 %1756
        %v1758 = vsel %vm1379, %v1321, 0.0
        %1759 = vadd.xlane.f32.xlu0 %v1758
        %v1760 = vpop.xlane.xlu0 %1759
        %v1761 = vsel %vm1379, %v1322, 0.0
        %1762 = vadd.xlane.f32.xlu0 %v1761
        %v1763 = vpop.xlane.xlu0 %1762
        %v1764 = vsel %vm1379, %v1323, 0.0
        %1765 = vadd.xlane.f32.xlu0 %v1764
        %v1766 = vpop.xlane.xlu0 %1765
        %v1767 = vsel %vm1379, %v1324, 0.0
        %1768 = vadd.xlane.f32.xlu0 %v1767
        %v1769 = vpop.xlane.xlu0 %1768
        %v1770 = vsel %vm1379, %v1325, 0.0
        %1771 = vadd.xlane.f32.xlu0 %v1770
        %v1772 = vpop.xlane.xlu0 %1771
        %v1773 = vsel %vm1379, %v1326, 0.0
        %1774 = vadd.xlane.f32.xlu0 %v1773
        %v1775 = vpop.xlane.xlu0 %1774
        %v1776 = vsel %vm1379, %v1327, 0.0
        %1777 = vadd.xlane.f32.xlu0 %v1776
        %v1778 = vpop.xlane.xlu0 %1777
        %v1779 = vsel %vm1379, %v1328, 0.0
        %1780 = vadd.xlane.f32.xlu0 %v1779
        %v1781 = vpop.xlane.xlu0 %1780
        %v1782 = vsel %vm1379, %v1329, 0.0
        %1783 = vadd.xlane.f32.xlu0 %v1782
        %v1784 = vpop.xlane.xlu0 %1783
        %v1785 = vsel %vm1379, %v1330, 0.0
        %1786 = vadd.xlane.f32.xlu0 %v1785
        %v1787 = vpop.xlane.xlu0 %1786
        %v1788 = vsel %vm1379, %v1331, 0.0
        %1789 = vadd.xlane.f32.xlu0 %v1788
        %v1790 = vpop.xlane.xlu0 %1789
        %v1791 = vsel %vm1379, %v1332, 0.0
        %1792 = vadd.xlane.f32.xlu0 %v1791
        %v1793 = vpop.xlane.xlu0 %1792
        %v1794 = vsel %vm1379, %v1333, 0.0
        %1795 = vadd.xlane.f32.xlu0 %v1794
        %v1796 = vpop.xlane.xlu0 %1795
        %v1797 = vsel %vm1379, %v1334, 0.0
        %1798 = vadd.xlane.f32.xlu0 %v1797
        %v1799 = vpop.xlane.xlu0 %1798
        %v1800 = vsel %vm1379, %v1335, 0.0
        %1801 = vadd.xlane.f32.xlu0 %v1800
        %v1802 = vpop.xlane.xlu0 %1801
        %v1803 = vsel %vm1379, %v1336, 0.0
        %1804 = vadd.xlane.f32.xlu0 %v1803
        %v1805 = vpop.xlane.xlu0 %1804
        %v1806 = vsel %vm1379, %v1337, 0.0
        %1807 = vadd.xlane.f32.xlu0 %v1806
        %v1808 = vpop.xlane.xlu0 %1807
        %v1809 = vsel %vm1379, %v1338, 0.0
        %1810 = vadd.xlane.f32.xlu0 %v1809
        %v1811 = vpop.xlane.xlu0 %1810
        %v1812 = vsel %vm1379, %v1339, 0.0
        %1813 = vadd.xlane.f32.xlu0 %v1812
        %v1814 = vpop.xlane.xlu0 %1813
        %v1815 = vsel %vm1379, %v1340, 0.0
        %1816 = vadd.xlane.f32.xlu0 %v1815
        %v1817 = vpop.xlane.xlu0 %1816
        %v1818 = vsel %vm1379, %v1341, 0.0
        %1819 = vadd.xlane.f32.xlu0 %v1818
        %v1820 = vpop.xlane.xlu0 %1819
        %v1821 = vsel %vm1379, %v1342, 0.0
        %1822 = vadd.xlane.f32.xlu0 %v1821
        %v1823 = vpop.xlane.xlu0 %1822
        %v1824 = vsel %vm1379, %v1343, 0.0
        %1825 = vadd.xlane.f32.xlu0 %v1824
        %v1826 = vpop.xlane.xlu0 %1825
        %v1827 = vsel %vm1379, %v1344, 0.0
        %1828 = vadd.xlane.f32.xlu0 %v1827
        %v1829 = vpop.xlane.xlu0 %1828
        %v1830 = vsel %vm1379, %v1345, 0.0
        %1831 = vadd.xlane.f32.xlu0 %v1830
        %v1832 = vpop.xlane.xlu0 %1831
        %v1833 = vsel %vm1379, %v1346, 0.0
        %1834 = vadd.xlane.f32.xlu0 %v1833
        %v1835 = vpop.xlane.xlu0 %1834
        %v1836 = vsel %vm1379, %v1347, 0.0
        %1837 = vadd.xlane.f32.xlu0 %v1836
        %v1838 = vpop.xlane.xlu0 %1837
        %v1839 = vsel %vm1379, %v1348, 0.0
        %1840 = vadd.xlane.f32.xlu0 %v1839
        %v1841 = vpop.xlane.xlu0 %1840
        %v1842 = vsel %vm1379, %v1349, 0.0
        %1843 = vadd.xlane.f32.xlu0 %v1842
        %v1844 = vpop.xlane.xlu0 %1843
        %v1845 = vsel %vm1379, %v1350, 0.0
        %1846 = vadd.xlane.f32.xlu0 %v1845
        %v1847 = vpop.xlane.xlu0 %1846
        %v1848 = vsel %vm1379, %v1351, 0.0
        %1849 = vadd.xlane.f32.xlu0 %v1848
        %v1850 = vpop.xlane.xlu0 %1849
        %v1851 = vsel %vm1379, %v1352, 0.0
        %1852 = vadd.xlane.f32.xlu0 %v1851
        %v1853 = vpop.xlane.xlu0 %1852
        %v1854 = vsel %vm1379, %v1353, 0.0
        %1855 = vadd.xlane.f32.xlu0 %v1854
        %v1856 = vpop.xlane.xlu0 %1855
        %v1857 = vsel %vm1379, %v1354, 0.0
        %1858 = vadd.xlane.f32.xlu0 %v1857
        %v1859 = vpop.xlane.xlu0 %1858
        %v1860 = vsel %vm1379, %v1355, 0.0
        %1861 = vadd.xlane.f32.xlu0 %v1860
        %v1862 = vpop.xlane.xlu0 %1861
        %v1863 = vsel %vm1379, %v1356, 0.0
        %1864 = vadd.xlane.f32.xlu0 %v1863
        %v1865 = vpop.xlane.xlu0 %1864
        %v1866 = vsel %vm1379, %v1357, 0.0
        %1867 = vadd.xlane.f32.xlu0 %v1866
        %v1868 = vpop.xlane.xlu0 %1867
        %v1869 = vsel %vm1379, %v1358, 0.0
        %1870 = vadd.xlane.f32.xlu0 %v1869
        %v1871 = vpop.xlane.xlu0 %1870
        %v1872 = vsel %vm1379, %v1359, 0.0
        %1873 = vadd.xlane.f32.xlu0 %v1872
        %v1874 = vpop.xlane.xlu0 %1873
        %v1875 = vsel %vm1379, %v1360, 0.0
        %1876 = vadd.xlane.f32.xlu0 %v1875
        %v1877 = vpop.xlane.xlu0 %1876
        %v1878 = vsel %vm1379, %v1361, 0.0
        %1879 = vadd.xlane.f32.xlu0 %v1878
        %v1880 = vpop.xlane.xlu0 %1879
        %v1881 = vsel %vm1379, %v1362, 0.0
        %1882 = vadd.xlane.f32.xlu0 %v1881
        %v1883 = vpop.xlane.xlu0 %1882
        %v1884 = vsel %vm1379, %v1363, 0.0
        %1885 = vadd.xlane.f32.xlu0 %v1884
        %v1886 = vpop.xlane.xlu0 %1885
        %v1887 = vsel %vm1379, %v1364, 0.0
        %1888 = vadd.xlane.f32.xlu0 %v1887
        %v1889 = vpop.xlane.xlu0 %1888
        %v1890 = vsel %vm1379, %v1365, 0.0
        %1891 = vadd.xlane.f32.xlu0 %v1890
        %v1892 = vpop.xlane.xlu0 %1891
        %v1893 = vsel %vm1379, %v1366, 0.0
        %1894 = vadd.xlane.f32.xlu0 %v1893
        %v1895 = vpop.xlane.xlu0 %1894
        %v1896 = vsel %vm1379, %v1367, 0.0
        %1897 = vadd.xlane.f32.xlu0 %v1896
        %v1898 = vpop.xlane.xlu0 %1897
        %v1899 = vsel %vm1379, %v1368, 0.0
        %1900 = vadd.xlane.f32.xlu0 %v1899
        %v1901 = vpop.xlane.xlu0 %1900
        %v1902 = vsel %vm1379, %v1369, 0.0
        %1903 = vadd.xlane.f32.xlu0 %v1902
        %v1904 = vpop.xlane.xlu0 %1903
        %v1905 = vsel %vm1379, %v1370, 0.0
        %1906 = vadd.xlane.f32.xlu0 %v1905
        %v1907 = vpop.xlane.xlu0 %1906
        %v1908 = vsel %vm1379, %v1371, 0.0
        %1909 = vadd.xlane.f32.xlu0 %v1908
        %v1910 = vpop.xlane.xlu0 %1909
        %v1911 = vsel %vm1379, %v1372, 0.0
        %1912 = vadd.xlane.f32.xlu0 %v1911
        %v1913 = vpop.xlane.xlu0 %1912
        %v1914 = vsel %vm1379, %v1373, 0.0
        %1915 = vadd.xlane.f32.xlu0 %v1914
        %v1916 = vpop.xlane.xlu0 %1915
        %v1917 = vsel %vm1379, %v1374, 0.0
        %1918 = vadd.xlane.f32.xlu0 %v1917
        %v1919 = vpop.xlane.xlu0 %1918
        %v1920 = vsel %vm1379, %v1375, 0.0
        %1921 = vadd.xlane.f32.xlu0 %v1920
        %v1922 = vpop.xlane.xlu0 %1921
        %v1923 = vsel %vm1379, %v1376, 0.0
        %1924 = vadd.xlane.f32.xlu0 %v1923
        %v1925 = vpop.xlane.xlu0 %1924
        %v1926 = vsel %vm1379, %v1377, 0.0
        %1927 = vadd.xlane.f32.xlu0 %v1926
        %v1928 = vpop.xlane.xlu0 %1927
        %v1929 = vsel %vm1379, %v1378, 0.0
        %1930 = vadd.xlane.f32.xlu0 %v1929
        %v1931 = vpop.xlane.xlu0 %1930
        %v1932 = vrcp.pop 49.0
        %v1933 = vmul.f32 %v1382, %v1932
        %v1934 = vmul.f32 %v1385, %v1932
        %v1935 = vmul.f32 %v1388, %v1932
        %v1936 = vmul.f32 %v1391, %v1932
        %v1937 = vmul.f32 %v1394, %v1932
        %v1938 = vmul.f32 %v1397, %v1932
        %v1939 = vmul.f32 %v1400, %v1932
        %v1940 = vmul.f32 %v1403, %v1932
        %v1941 = vmul.f32 %v1406, %v1932
        %v1942 = vmul.f32 %v1409, %v1932
        %v1943 = vmul.f32 %v1412, %v1932
        %v1944 = vmul.f32 %v1415, %v1932
        %v1945 = vmul.f32 %v1418, %v1932
        %v1946 = vmul.f32 %v1421, %v1932
        %v1947 = vmul.f32 %v1424, %v1932
        %v1948 = vmul.f32 %v1427, %v1932
        %v1949 = vmul.f32 %v1430, %v1932
        %v1950 = vmul.f32 %v1433, %v1932
        %v1951 = vmul.f32 %v1436, %v1932
        %v1952 = vmul.f32 %v1439, %v1932
        %v1953 = vmul.f32 %v1442, %v1932
        %v1954 = vmul.f32 %v1445, %v1932
        %v1955 = vmul.f32 %v1448, %v1932
        %v1956 = vmul.f32 %v1451, %v1932
        %v1957 = vmul.f32 %v1454, %v1932
        %v1958 = vmul.f32 %v1457, %v1932
        %v1959 = vmul.f32 %v1460, %v1932
        %v1960 = vmul.f32 %v1463, %v1932
        %v1961 = vmul.f32 %v1466, %v1932
        %v1962 = vmul.f32 %v1469, %v1932
        %v1963 = vmul.f32 %v1472, %v1932
        %v1964 = vmul.f32 %v1475, %v1932
        %v1965 = vmul.f32 %v1478, %v1932
        %v1966 = vmul.f32 %v1481, %v1932
        %v1967 = vmul.f32 %v1484, %v1932
        %v1968 = vmul.f32 %v1487, %v1932
        %v1969 = vmul.f32 %v1490, %v1932
        %v1970 = vmul.f32 %v1493, %v1932
        %v1971 = vmul.f32 %v1496, %v1932
        %v1972 = vmul.f32 %v1499, %v1932
        %v1973 = vmul.f32 %v1502, %v1932
        %v1974 = vmul.f32 %v1505, %v1932
        %v1975 = vmul.f32 %v1508, %v1932
        %v1976 = vmul.f32 %v1511, %v1932
        %v1977 = vmul.f32 %v1514, %v1932
        %v1978 = vmul.f32 %v1517, %v1932
        %v1979 = vmul.f32 %v1520, %v1932
        %v1980 = vmul.f32 %v1523, %v1932
        %v1981 = vmul.f32 %v1526, %v1932
        %v1982 = vmul.f32 %v1529, %v1932
        %v1983 = vmul.f32 %v1532, %v1932
        %v1984 = vmul.f32 %v1535, %v1932
        %v1985 = vmul.f32 %v1538, %v1932
        %v1986 = vmul.f32 %v1541, %v1932
        %v1987 = vmul.f32 %v1544, %v1932
        %v1988 = vmul.f32 %v1547, %v1932
        %v1989 = vmul.f32 %v1550, %v1932
        %v1990 = vmul.f32 %v1553, %v1932
        %v1991 = vmul.f32 %v1556, %v1932
        %v1992 = vmul.f32 %v1559, %v1932
        %v1993 = vmul.f32 %v1562, %v1932
        %v1994 = vmul.f32 %v1565, %v1932
        %v1995 = vmul.f32 %v1568, %v1932
        %v1996 = vmul.f32 %v1571, %v1932
        %v1997 = vmul.f32 %v1574, %v1932
        %v1998 = vmul.f32 %v1577, %v1932
        %v1999 = vmul.f32 %v1580, %v1932
        %v2000 = vmul.f32 %v1583, %v1932
        %v2001 = vmul.f32 %v1586, %v1932
        %v2002 = vmul.f32 %v1589, %v1932
        %v2003 = vmul.f32 %v1592, %v1932
        %v2004 = vmul.f32 %v1595, %v1932
        %v2005 = vmul.f32 %v1598, %v1932
        %v2006 = vmul.f32 %v1601, %v1932
        %v2007 = vmul.f32 %v1604, %v1932
        %v2008 = vmul.f32 %v1607, %v1932
        %v2009 = vmul.f32 %v1610, %v1932
        %v2010 = vmul.f32 %v1613, %v1932
        %v2011 = vmul.f32 %v1616, %v1932
        %v2012 = vmul.f32 %v1619, %v1932
        %v2013 = vmul.f32 %v1622, %v1932
        %v2014 = vmul.f32 %v1625, %v1932
        %v2015 = vmul.f32 %v1628, %v1932
        %v2016 = vmul.f32 %v1631, %v1932
        %v2017 = vmul.f32 %v1634, %v1932
        %v2018 = vmul.f32 %v1637, %v1932
        %v2019 = vmul.f32 %v1640, %v1932
        %v2020 = vmul.f32 %v1643, %v1932
        %v2021 = vmul.f32 %v1646, %v1932
        %v2022 = vmul.f32 %v1649, %v1932
        %v2023 = vmul.f32 %v1652, %v1932
        %v2024 = vmul.f32 %v1655, %v1932
        %v2025 = vmul.f32 %v1658, %v1932
        %v2026 = vmul.f32 %v1661, %v1932
        %v2027 = vmul.f32 %v1664, %v1932
        %v2028 = vmul.f32 %v1667, %v1932
        %v2029 = vmul.f32 %v1670, %v1932
        %v2030 = vmul.f32 %v1673, %v1932
        %v2031 = vmul.f32 %v1676, %v1932
        %v2032 = vmul.f32 %v1679, %v1932
        %v2033 = vmul.f32 %v1682, %v1932
        %v2034 = vmul.f32 %v1685, %v1932
        %v2035 = vmul.f32 %v1688, %v1932
        %v2036 = vmul.f32 %v1691, %v1932
        %v2037 = vmul.f32 %v1694, %v1932
        %v2038 = vmul.f32 %v1697, %v1932
        %v2039 = vmul.f32 %v1700, %v1932
        %v2040 = vmul.f32 %v1703, %v1932
        %v2041 = vmul.f32 %v1706, %v1932
        %v2042 = vmul.f32 %v1709, %v1932
        %v2043 = vmul.f32 %v1712, %v1932
        %v2044 = vmul.f32 %v1715, %v1932
        %v2045 = vmul.f32 %v1718, %v1932
        %v2046 = vmul.f32 %v1721, %v1932
        %v2047 = vmul.f32 %v1724, %v1932
        %v2048 = vmul.f32 %v1727, %v1932
        %v2049 = vmul.f32 %v1730, %v1932
        %v2050 = vmul.f32 %v1733, %v1932
        %v2051 = vmul.f32 %v1736, %v1932
        %v2052 = vmul.f32 %v1739, %v1932
        %v2053 = vmul.f32 %v1742, %v1932
        %v2054 = vmul.f32 %v1745, %v1932
        %v2055 = vmul.f32 %v1748, %v1932
        %v2056 = vmul.f32 %v1751, %v1932
        %v2057 = vmul.f32 %v1754, %v1932
        %v2058 = vmul.f32 %v1757, %v1932
        %v2059 = vmul.f32 %v1760, %v1932
        %v2060 = vmul.f32 %v1763, %v1932
        %v2061 = vmul.f32 %v1766, %v1932
        %v2062 = vmul.f32 %v1769, %v1932
        %v2063 = vmul.f32 %v1772, %v1932
        %v2064 = vmul.f32 %v1775, %v1932
        %v2065 = vmul.f32 %v1778, %v1932
        %v2066 = vmul.f32 %v1781, %v1932
        %v2067 = vmul.f32 %v1784, %v1932
        %v2068 = vmul.f32 %v1787, %v1932
        %v2069 = vmul.f32 %v1790, %v1932
        %v2070 = vmul.f32 %v1793, %v1932
        %v2071 = vmul.f32 %v1796, %v1932
        %v2072 = vmul.f32 %v1799, %v1932
        %v2073 = vmul.f32 %v1802, %v1932
        %v2074 = vmul.f32 %v1805, %v1932
        %v2075 = vmul.f32 %v1808, %v1932
        %v2076 = vmul.f32 %v1811, %v1932
        %v2077 = vmul.f32 %v1814, %v1932
        %v2078 = vmul.f32 %v1817, %v1932
        %v2079 = vmul.f32 %v1820, %v1932
        %v2080 = vmul.f32 %v1823, %v1932
        %v2081 = vmul.f32 %v1826, %v1932
        %v2082 = vmul.f32 %v1829, %v1932
        %v2083 = vmul.f32 %v1832, %v1932
        %v2084 = vmul.f32 %v1835, %v1932
        %v2085 = vmul.f32 %v1838, %v1932
        %v2086 = vmul.f32 %v1841, %v1932
        %v2087 = vmul.f32 %v1844, %v1932
        %v2088 = vmul.f32 %v1847, %v1932
        %v2089 = vmul.f32 %v1850, %v1932
        %v2090 = vmul.f32 %v1853, %v1932
        %v2091 = vmul.f32 %v1856, %v1932
        %v2092 = vmul.f32 %v1859, %v1932
        %v2093 = vmul.f32 %v1862, %v1932
        %v2094 = vmul.f32 %v1865, %v1932
        %v2095 = vmul.f32 %v1868, %v1932
        %v2096 = vmul.f32 %v1871, %v1932
        %v2097 = vmul.f32 %v1874, %v1932
        %v2098 = vmul.f32 %v1877, %v1932
        %v2099 = vmul.f32 %v1880, %v1932
        %v2100 = vmul.f32 %v1883, %v1932
        %v2101 = vmul.f32 %v1886, %v1932
        %v2102 = vmul.f32 %v1889, %v1932
        %v2103 = vmul.f32 %v1892, %v1932
        %v2104 = vmul.f32 %v1895, %v1932
        %v2105 = vmul.f32 %v1898, %v1932
        %v2106 = vmul.f32 %v1901, %v1932
        %v2107 = vmul.f32 %v1904, %v1932
        %v2108 = vmul.f32 %v1907, %v1932
        %v2109 = vmul.f32 %v1910, %v1932
        %v2110 = vmul.f32 %v1913, %v1932
        %v2111 = vmul.f32 %v1916, %v1932
        %v2112 = vmul.f32 %v1919, %v1932
        %v2113 = vmul.f32 %v1922, %v1932
        %v2114 = vmul.f32 %v1925, %v1932
        %v2115 = vmul.f32 %v1928, %v1932
        %v2116 = vmul.f32 %v1931, %v1932
        %v2117 = vld [vmem:[#allocation2] sm:$0xff]
        %v2118 = vpack.c.bf16 %v1934, %v1933
        %v2119 = vpack.c.bf16 %v1936, %v1935
        %v2120 = vpack.c.bf16 %v1938, %v1937
        %v2121 = vpack.c.bf16 %v1940, %v1939
        %v2122 = vpack.c.bf16 %v1942, %v1941
        %v2123 = vpack.c.bf16 %v1944, %v1943
        %v2124 = vpack.c.bf16 %v1946, %v1945
        %v2125 = vpack.c.bf16 %v1948, %v1947
        %v2126 = vpack.c.bf16 %v1950, %v1949
        %v2127 = vpack.c.bf16 %v1952, %v1951
        %v2128 = vpack.c.bf16 %v1954, %v1953
        %v2129 = vpack.c.bf16 %v1956, %v1955
        %v2130 = vpack.c.bf16 %v1958, %v1957
        %v2131 = vpack.c.bf16 %v1960, %v1959
        %v2132 = vpack.c.bf16 %v1962, %v1961
        %v2133 = vpack.c.bf16 %v1964, %v1963
        %v2134 = vpack.c.bf16 %v1966, %v1965
        %v2135 = vpack.c.bf16 %v1968, %v1967
        %v2136 = vpack.c.bf16 %v1970, %v1969
        %v2137 = vpack.c.bf16 %v1972, %v1971
        %v2138 = vpack.c.bf16 %v1974, %v1973
        %v2139 = vpack.c.bf16 %v1976, %v1975
        %v2140 = vpack.c.bf16 %v1978, %v1977
        %v2141 = vpack.c.bf16 %v1980, %v1979
        %v2142 = vpack.c.bf16 %v1982, %v1981
        %v2143 = vpack.c.bf16 %v1984, %v1983
        %v2144 = vpack.c.bf16 %v1986, %v1985
        %v2145 = vpack.c.bf16 %v1988, %v1987
        %v2146 = vpack.c.bf16 %v1990, %v1989
        %v2147 = vpack.c.bf16 %v1992, %v1991
        %v2148 = vpack.c.bf16 %v1994, %v1993
        %v2149 = vpack.c.bf16 %v1996, %v1995
        %v2150 = vpack.c.bf16 %v1998, %v1997
        %v2151 = vpack.c.bf16 %v2000, %v1999
        %v2152 = vpack.c.bf16 %v2002, %v2001
        %v2153 = vpack.c.bf16 %v2004, %v2003
        %v2154 = vpack.c.bf16 %v2006, %v2005
        %v2155 = vpack.c.bf16 %v2008, %v2007
        %v2156 = vpack.c.bf16 %v2010, %v2009
        %v2157 = vpack.c.bf16 %v2012, %v2011
        %v2158 = vpack.c.bf16 %v2014, %v2013
        %v2159 = vpack.c.bf16 %v2016, %v2015
        %v2160 = vpack.c.bf16 %v2018, %v2017
        %v2161 = vpack.c.bf16 %v2020, %v2019
        %v2162 = vpack.c.bf16 %v2022, %v2021
        %v2163 = vpack.c.bf16 %v2024, %v2023
        %v2164 = vpack.c.bf16 %v2026, %v2025
        %v2165 = vpack.c.bf16 %v2028, %v2027
        %v2166 = vpack.c.bf16 %v2030, %v2029
        %v2167 = vpack.c.bf16 %v2032, %v2031
        %v2168 = vpack.c.bf16 %v2034, %v2033
        %v2169 = vpack.c.bf16 %v2036, %v2035
        %v2170 = vpack.c.bf16 %v2038, %v2037
        %v2171 = vpack.c.bf16 %v2040, %v2039
        %v2172 = vpack.c.bf16 %v2042, %v2041
        %v2173 = vpack.c.bf16 %v2044, %v2043
        %v2174 = vpack.c.bf16 %v2046, %v2045
        %v2175 = vpack.c.bf16 %v2048, %v2047
        %v2176 = vpack.c.bf16 %v2050, %v2049
        %v2177 = vpack.c.bf16 %v2052, %v2051
        %v2178 = vpack.c.bf16 %v2054, %v2053
        %v2179 = vpack.c.bf16 %v2056, %v2055
        %v2180 = vpack.c.bf16 %v2058, %v2057
        %v2181 = vpack.c.bf16 %v2060, %v2059
        %v2182 = vpack.c.bf16 %v2062, %v2061
        %v2183 = vpack.c.bf16 %v2064, %v2063
        %v2184 = vpack.c.bf16 %v2066, %v2065
        %v2185 = vpack.c.bf16 %v2068, %v2067
        %v2186 = vpack.c.bf16 %v2070, %v2069
        %v2187 = vpack.c.bf16 %v2072, %v2071
        %v2188 = vpack.c.bf16 %v2074, %v2073
        %v2189 = vpack.c.bf16 %v2076, %v2075
        %v2190 = vpack.c.bf16 %v2078, %v2077
        %v2191 = vpack.c.bf16 %v2080, %v2079
        %v2192 = vpack.c.bf16 %v2082, %v2081
        %v2193 = vpack.c.bf16 %v2084, %v2083
        %v2194 = vpack.c.bf16 %v2086, %v2085
        %v2195 = vpack.c.bf16 %v2088, %v2087
        %v2196 = vpack.c.bf16 %v2090, %v2089
        %v2197 = vpack.c.bf16 %v2092, %v2091
        %v2198 = vpack.c.bf16 %v2094, %v2093
        %v2199 = vpack.c.bf16 %v2096, %v2095
        %v2200 = vpack.c.bf16 %v2098, %v2097
        %v2201 = vpack.c.bf16 %v2100, %v2099
        %v2202 = vpack.c.bf16 %v2102, %v2101
        %v2203 = vpack.c.bf16 %v2104, %v2103
        %v2204 = vpack.c.bf16 %v2106, %v2105
        %v2205 = vpack.c.bf16 %v2108, %v2107
        %v2206 = vpack.c.bf16 %v2110, %v2109
        %v2207 = vpack.c.bf16 %v2112, %v2111
        %v2208 = vpack.c.bf16 %v2114, %v2113
        %v2209 = vpack.c.bf16 %v2116, %v2115
        %v2210 = vld [vmem:[%s1003] sm:$0xff]
        %v2211 = vld [vmem:[%s1003 + $0x8] sm:$0xff]
        %v2212 = vld [vmem:[%s1003 + $0x10] sm:$0xff]
        %v2213 = vld [vmem:[%s1003 + $0x18] sm:$0xff]
        %v2214 = vld [vmem:[%s1003 + $0x20] sm:$0xff]
        %v2215 = vld [vmem:[%s1003 + $0x28] sm:$0xff]
        %v2216 = vld [vmem:[%s1003 + $0x30] sm:$0xff]
        %v2217 = vld [vmem:[%s1003 + $0x38] sm:$0xff]
        %v2218 = vld [vmem:[%s1003 + $0x40] sm:$0xff]
        %v2219 = vld [vmem:[%s1003 + $0x48] sm:$0xff]
        %v2220 = vld [vmem:[%s1003 + $0x50] sm:$0xff]
        %v2221 = vld [vmem:[%s1003 + $0x58] sm:$0xff]
        %v2222 = vld [vmem:[%s1003 + $0x60] sm:$0xff]
        %v2223 = vld [vmem:[%s1003 + $0x68] sm:$0xff]
        %v2224 = vld [vmem:[%s1003 + $0x70] sm:$0xff]
        %v2225 = vld [vmem:[%s1003 + $0x78] sm:$0xff]
        %v2226 = vld [vmem:[%s1003 + $0x80] sm:$0xff]
        %v2227 = vld [vmem:[%s1003 + $0x88] sm:$0xff]
        %v2228 = vld [vmem:[%s1003 + $0x90] sm:$0xff]
        %v2229 = vld [vmem:[%s1003 + $0x98] sm:$0xff]
        %v2230 = vld [vmem:[%s1003 + $0xa0] sm:$0xff]
        %v2231 = vld [vmem:[%s1003 + $0xa8] sm:$0xff]
        %v2232 = vld [vmem:[%s1003 + $0xb0] sm:$0xff]
        %v2233 = vld [vmem:[%s1003 + $0xb8] sm:$0xff]
        %v2234 = vld [vmem:[%s1003 + $0xc0] sm:$0xff]
        %v2235 = vld [vmem:[%s1003 + $0xc8] sm:$0xff]
        %v2236 = vld [vmem:[%s1003 + $0xd0] sm:$0xff]
        %v2237 = vld [vmem:[%s1003 + $0xd8] sm:$0xff]
        %v2238 = vld [vmem:[%s1003 + $0xe0] sm:$0xff]
        %v2239 = vld [vmem:[%s1003 + $0xe8] sm:$0xff]
        %v2240 = vld [vmem:[%s1003 + $0xf0] sm:$0xff]
        %v2241 = vld [vmem:[%s1003 + $0xf8] sm:$0xff]
        %v2242 = vld [vmem:[%s1003 + $0x100] sm:$0xff]
        %v2243 = vld [vmem:[%s1003 + $0x108] sm:$0xff]
        %v2244 = vld [vmem:[%s1003 + $0x110] sm:$0xff]
        %v2245 = vld [vmem:[%s1003 + $0x118] sm:$0xff]
        %v2246 = vld [vmem:[%s1003 + $0x120] sm:$0xff]
        %v2247 = vld [vmem:[%s1003 + $0x128] sm:$0xff]
        %v2248 = vld [vmem:[%s1003 + $0x130] sm:$0xff]
        %v2249 = vld [vmem:[%s1003 + $0x138] sm:$0xff]
        %v2250 = vld [vmem:[%s1003 + $0x140] sm:$0xff]
        %v2251 = vld [vmem:[%s1003 + $0x148] sm:$0xff]
        %v2252 = vld [vmem:[%s1003 + $0x150] sm:$0xff]
        %v2253 = vld [vmem:[%s1003 + $0x158] sm:$0xff]
        %v2254 = vld [vmem:[%s1003 + $0x160] sm:$0xff]
        %v2255 = vld [vmem:[%s1003 + $0x168] sm:$0xff]
        %v2256 = vld [vmem:[%s1003 + $0x170] sm:$0xff]
        %v2257 = vld [vmem:[%s1003 + $0x178] sm:$0xff]
        %v2258 = vld [vmem:[%s1003 + $0x180] sm:$0xff]
        %v2259 = vld [vmem:[%s1003 + $0x188] sm:$0xff]
        %v2260 = vld [vmem:[%s1003 + $0x190] sm:$0xff]
        %v2261 = vld [vmem:[%s1003 + $0x198] sm:$0xff]
        %v2262 = vld [vmem:[%s1003 + $0x1a0] sm:$0xff]
        %v2263 = vld [vmem:[%s1003 + $0x1a8] sm:$0xff]
        %v2264 = vld [vmem:[%s1003 + $0x1b0] sm:$0xff]
        %v2265 = vld [vmem:[%s1003 + $0x1b8] sm:$0xff]
        %v2266 = vld [vmem:[%s1003 + $0x1c0] sm:$0xff]
        %v2267 = vld [vmem:[%s1003 + $0x1c8] sm:$0xff]
        %v2268 = vld [vmem:[%s1003 + $0x1d0] sm:$0xff]
        %v2269 = vld [vmem:[%s1003 + $0x1d8] sm:$0xff]
        %v2270 = vld [vmem:[%s1003 + $0x1e0] sm:$0xff]
        %v2271 = vld [vmem:[%s1003 + $0x1e8] sm:$0xff]
        %v2272 = vld [vmem:[%s1003 + $0x1f0] sm:$0xff]
        %v2273 = vld [vmem:[%s1003 + $0x1f8] sm:$0xff]
        %v2274 = vld [vmem:[%s1003 + $0x200] sm:$0xff]
        %v2275 = vld [vmem:[%s1003 + $0x208] sm:$0xff]
        %v2276 = vld [vmem:[%s1003 + $0x210] sm:$0xff]
        %v2277 = vld [vmem:[%s1003 + $0x218] sm:$0xff]
        %v2278 = vld [vmem:[%s1003 + $0x220] sm:$0xff]
        %v2279 = vld [vmem:[%s1003 + $0x228] sm:$0xff]
        %v2280 = vld [vmem:[%s1003 + $0x230] sm:$0xff]
        %v2281 = vld [vmem:[%s1003 + $0x238] sm:$0xff]
        %v2282 = vld [vmem:[%s1003 + $0x240] sm:$0xff]
        %v2283 = vld [vmem:[%s1003 + $0x248] sm:$0xff]
        %v2284 = vld [vmem:[%s1003 + $0x250] sm:$0xff]
        %v2285 = vld [vmem:[%s1003 + $0x258] sm:$0xff]
        %v2286 = vld [vmem:[%s1003 + $0x260] sm:$0xff]
        %v2287 = vld [vmem:[%s1003 + $0x268] sm:$0xff]
        %v2288 = vld [vmem:[%s1003 + $0x270] sm:$0xff]
        %v2289 = vld [vmem:[%s1003 + $0x278] sm:$0xff]
        %v2290 = vld [vmem:[%s1003 + $0x280] sm:$0xff]
        %v2291 = vld [vmem:[%s1003 + $0x288] sm:$0xff]
        %v2292 = vld [vmem:[%s1003 + $0x290] sm:$0xff]
        %v2293 = vld [vmem:[%s1003 + $0x298] sm:$0xff]
        %v2294 = vld [vmem:[%s1003 + $0x2a0] sm:$0xff]
        %v2295 = vld [vmem:[%s1003 + $0x2a8] sm:$0xff]
        %v2296 = vld [vmem:[%s1003 + $0x2b0] sm:$0xff]
        %v2297 = vld [vmem:[%s1003 + $0x2b8] sm:$0xff]
        %v2298 = vld [vmem:[%s1003 + $0x2c0] sm:$0xff]
        %v2299 = vld [vmem:[%s1003 + $0x2c8] sm:$0xff]
        %v2300 = vld [vmem:[%s1003 + $0x2d0] sm:$0xff]
        %v2301 = vld [vmem:[%s1003 + $0x2d8] sm:$0xff]
        %v2302 = vld [vmem:[%s1003 + $0x2e0] sm:$0xff]
        %v2303 = vld [vmem:[%s1003 + $0x2e8] sm:$0xff]
        %v2304 = vld [vmem:[%s1003 + $0x2f0] sm:$0xff]
        %v2305 = vld [vmem:[%s1003 + $0x2f8] sm:$0xff]
        %v2306 = vld [vmem:[%s1003 + $0x300] sm:$0xff]
        %v2307 = vld [vmem:[%s1003 + $0x308] sm:$0xff]
        %v2308 = vld [vmem:[%s1003 + $0x310] sm:$0xff]
        %v2309 = vld [vmem:[%s1003 + $0x318] sm:$0xff]
        %v2310 = vld [vmem:[%s1003 + $0x320] sm:$0xff]
        %v2311 = vld [vmem:[%s1003 + $0x328] sm:$0xff]
        %v2312 = vld [vmem:[%s1003 + $0x330] sm:$0xff]
        %v2313 = vld [vmem:[%s1003 + $0x338] sm:$0xff]
        %v2314 = vld [vmem:[%s1003 + $0x340] sm:$0xff]
        %v2315 = vld [vmem:[%s1003 + $0x348] sm:$0xff]
        %v2316 = vld [vmem:[%s1003 + $0x350] sm:$0xff]
        %v2317 = vld [vmem:[%s1003 + $0x358] sm:$0xff]
        %v2318 = vld [vmem:[%s1003 + $0x360] sm:$0xff]
        %v2319 = vld [vmem:[%s1003 + $0x368] sm:$0xff]
        %v2320 = vld [vmem:[%s1003 + $0x370] sm:$0xff]
        %v2321 = vld [vmem:[%s1003 + $0x378] sm:$0xff]
        %v2322 = vld [vmem:[%s1003 + $0x380] sm:$0xff]
        %v2323 = vld [vmem:[%s1003 + $0x388] sm:$0xff]
        %v2324 = vld [vmem:[%s1003 + $0x390] sm:$0xff]
        %v2325 = vld [vmem:[%s1003 + $0x398] sm:$0xff]
        %v2326 = vld [vmem:[%s1003 + $0x3a0] sm:$0xff]
        %v2327 = vld [vmem:[%s1003 + $0x3a8] sm:$0xff]
        %v2328 = vld [vmem:[%s1003 + $0x3b0] sm:$0xff]
        %v2329 = vld [vmem:[%s1003 + $0x3b8] sm:$0xff]
        %v2330 = vld [vmem:[%s1003 + $0x3c0] sm:$0xff]
        %v2331 = vld [vmem:[%s1003 + $0x3c8] sm:$0xff]
        %v2332 = vld [vmem:[%s1003 + $0x3d0] sm:$0xff]
        %v2333 = vld [vmem:[%s1003 + $0x3d8] sm:$0xff]
        %v2334 = vld [vmem:[%s1003 + $0x3e0] sm:$0xff]
        %v2335 = vld [vmem:[%s1003 + $0x3e8] sm:$0xff]
        %v2336 = vld [vmem:[%s1003 + $0x3f0] sm:$0xff]
        %v2337 = vld [vmem:[%s1003 + $0x3f8] sm:$0xff]
        %v2338 = vld [vmem:[%s1003 + $0x400] sm:$0xff]
        %v2339 = vld [vmem:[%s1003 + $0x408] sm:$0xff]
        %v2340 = vld [vmem:[%s1003 + $0x410] sm:$0xff]
        %v2341 = vld [vmem:[%s1003 + $0x418] sm:$0xff]
        %v2342 = vld [vmem:[%s1003 + $0x420] sm:$0xff]
        %v2343 = vld [vmem:[%s1003 + $0x428] sm:$0xff]
        %v2344 = vld [vmem:[%s1003 + $0x430] sm:$0xff]
        %v2345 = vld [vmem:[%s1003 + $0x438] sm:$0xff]
        %v2346 = vld [vmem:[%s1003 + $0x440] sm:$0xff]
        %v2347 = vld [vmem:[%s1003 + $0x448] sm:$0xff]
        %v2348 = vld [vmem:[%s1003 + $0x450] sm:$0xff]
        %v2349 = vld [vmem:[%s1003 + $0x458] sm:$0xff]
        %v2350 = vld [vmem:[%s1003 + $0x460] sm:$0xff]
        %v2351 = vld [vmem:[%s1003 + $0x468] sm:$0xff]
        %v2352 = vld [vmem:[%s1003 + $0x470] sm:$0xff]
        %v2353 = vld [vmem:[%s1003 + $0x478] sm:$0xff]
        %v2354 = vld [vmem:[%s1003 + $0x480] sm:$0xff]
        %v2355 = vld [vmem:[%s1003 + $0x488] sm:$0xff]
        %v2356 = vld [vmem:[%s1003 + $0x490] sm:$0xff]
        %v2357 = vld [vmem:[%s1003 + $0x498] sm:$0xff]
        %v2358 = vld [vmem:[%s1003 + $0x4a0] sm:$0xff]
        %v2359 = vld [vmem:[%s1003 + $0x4a8] sm:$0xff]
        %v2360 = vld [vmem:[%s1003 + $0x4b0] sm:$0xff]
        %v2361 = vld [vmem:[%s1003 + $0x4b8] sm:$0xff]
        %v2362 = vld [vmem:[%s1003 + $0x4c0] sm:$0xff]
        %v2363 = vld [vmem:[%s1003 + $0x4c8] sm:$0xff]
        %v2364 = vld [vmem:[%s1003 + $0x4d0] sm:$0xff]
        %v2365 = vld [vmem:[%s1003 + $0x4d8] sm:$0xff]
        %v2366 = vld [vmem:[%s1003 + $0x4e0] sm:$0xff]
        %v2367 = vld [vmem:[%s1003 + $0x4e8] sm:$0xff]
        %v2368 = vld [vmem:[%s1003 + $0x4f0] sm:$0xff]
        %v2369 = vld [vmem:[%s1003 + $0x4f8] sm:$0xff]
        %v2370 = vld [vmem:[%s1003 + $0x500] sm:$0xff]
        %v2371 = vld [vmem:[%s1003 + $0x508] sm:$0xff]
        %v2372 = vld [vmem:[%s1003 + $0x510] sm:$0xff]
        %v2373 = vld [vmem:[%s1003 + $0x518] sm:$0xff]
        %v2374 = vld [vmem:[%s1003 + $0x520] sm:$0xff]
        %v2375 = vld [vmem:[%s1003 + $0x528] sm:$0xff]
        %v2376 = vld [vmem:[%s1003 + $0x530] sm:$0xff]
        %v2377 = vld [vmem:[%s1003 + $0x538] sm:$0xff]
        %v2378 = vld [vmem:[%s1003 + $0x540] sm:$0xff]
        %v2379 = vld [vmem:[%s1003 + $0x548] sm:$0xff]
        %v2380 = vld [vmem:[%s1003 + $0x550] sm:$0xff]
        %v2381 = vld [vmem:[%s1003 + $0x558] sm:$0xff]
        %v2382 = vld [vmem:[%s1003 + $0x560] sm:$0xff]
        %v2383 = vld [vmem:[%s1003 + $0x568] sm:$0xff]
        %v2384 = vld [vmem:[%s1003 + $0x570] sm:$0xff]
        %v2385 = vld [vmem:[%s1003 + $0x578] sm:$0xff]
        %v2386 = vld [vmem:[%s1003 + $0x580] sm:$0xff]
        %v2387 = vld [vmem:[%s1003 + $0x588] sm:$0xff]
        %v2388 = vld [vmem:[%s1003 + $0x590] sm:$0xff]
        %v2389 = vld [vmem:[%s1003 + $0x598] sm:$0xff]
        %v2390 = vld [vmem:[%s1003 + $0x5a0] sm:$0xff]
        %v2391 = vld [vmem:[%s1003 + $0x5a8] sm:$0xff]
        %v2392 = vld [vmem:[%s1003 + $0x5b0] sm:$0xff]
        %v2393 = vld [vmem:[%s1003 + $0x5b8] sm:$0xff]
        %v2486 = vunpack.c.l.b16 %v2118
        %v2487 = vunpack.c.h.b16 %v2118
        %v2488 = vunpack.c.l.b16 %v2119
        %v2489 = vunpack.c.h.b16 %v2119
        %v2490 = vunpack.c.l.b16 %v2120
        %v2491 = vunpack.c.h.b16 %v2120
        %v2492 = vunpack.c.l.b16 %v2121
        %v2493 = vunpack.c.h.b16 %v2121
        %v2494 = vunpack.c.l.b16 %v2122
        %v2495 = vunpack.c.h.b16 %v2122
        %v2496 = vunpack.c.l.b16 %v2123
        %v2497 = vunpack.c.h.b16 %v2123
        %v2498 = vunpack.c.l.b16 %v2124
        %v2499 = vunpack.c.h.b16 %v2124
        %v2500 = vunpack.c.l.b16 %v2125
        %v2501 = vunpack.c.h.b16 %v2125
        %v2502 = vunpack.c.l.b16 %v2126
        %v2503 = vunpack.c.h.b16 %v2126
        %v2504 = vunpack.c.l.b16 %v2127
        %v2505 = vunpack.c.h.b16 %v2127
        %v2506 = vunpack.c.l.b16 %v2128
        %v2507 = vunpack.c.h.b16 %v2128
        %v2508 = vunpack.c.l.b16 %v2129
        %v2509 = vunpack.c.h.b16 %v2129
        %v2510 = vunpack.c.l.b16 %v2130
        %v2511 = vunpack.c.h.b16 %v2130
        %v2512 = vunpack.c.l.b16 %v2131
        %v2513 = vunpack.c.h.b16 %v2131
        %v2514 = vunpack.c.l.b16 %v2132
        %v2515 = vunpack.c.h.b16 %v2132
        %v2516 = vunpack.c.l.b16 %v2133
        %v2517 = vunpack.c.h.b16 %v2133
        %v2518 = vunpack.c.l.b16 %v2134
        %v2519 = vunpack.c.h.b16 %v2134
        %v2520 = vunpack.c.l.b16 %v2135
        %v2521 = vunpack.c.h.b16 %v2135
        %v2522 = vunpack.c.l.b16 %v2136
        %v2523 = vunpack.c.h.b16 %v2136
        %v2524 = vunpack.c.l.b16 %v2137
        %v2525 = vunpack.c.h.b16 %v2137
        %v2526 = vunpack.c.l.b16 %v2138
        %v2527 = vunpack.c.h.b16 %v2138
        %v2528 = vunpack.c.l.b16 %v2139
        %v2529 = vunpack.c.h.b16 %v2139
        %v2530 = vunpack.c.l.b16 %v2140
        %v2531 = vunpack.c.h.b16 %v2140
        %v2532 = vunpack.c.l.b16 %v2141
        %v2533 = vunpack.c.h.b16 %v2141
        %v2534 = vunpack.c.l.b16 %v2142
        %v2535 = vunpack.c.h.b16 %v2142
        %v2536 = vunpack.c.l.b16 %v2143
        %v2537 = vunpack.c.h.b16 %v2143
        %v2538 = vunpack.c.l.b16 %v2144
        %v2539 = vunpack.c.h.b16 %v2144
        %v2540 = vunpack.c.l.b16 %v2145
        %v2541 = vunpack.c.h.b16 %v2145
        %v2542 = vunpack.c.l.b16 %v2146
        %v2543 = vunpack.c.h.b16 %v2146
        %v2544 = vunpack.c.l.b16 %v2147
        %v2545 = vunpack.c.h.b16 %v2147
        %v2546 = vunpack.c.l.b16 %v2148
        %v2547 = vunpack.c.h.b16 %v2148
        %v2548 = vunpack.c.l.b16 %v2149
        %v2549 = vunpack.c.h.b16 %v2149
        %v2550 = vunpack.c.l.b16 %v2150
        %v2551 = vunpack.c.h.b16 %v2150
        %v2552 = vunpack.c.l.b16 %v2151
        %v2553 = vunpack.c.h.b16 %v2151
        %v2554 = vunpack.c.l.b16 %v2152
        %v2555 = vunpack.c.h.b16 %v2152
        %v2556 = vunpack.c.l.b16 %v2153
        %v2557 = vunpack.c.h.b16 %v2153
        %v2558 = vunpack.c.l.b16 %v2154
        %v2559 = vunpack.c.h.b16 %v2154
        %v2560 = vunpack.c.l.b16 %v2155
        %v2561 = vunpack.c.h.b16 %v2155
        %v2562 = vunpack.c.l.b16 %v2156
        %v2563 = vunpack.c.h.b16 %v2156
        %v2564 = vunpack.c.l.b16 %v2157
        %v2565 = vunpack.c.h.b16 %v2157
        %v2566 = vunpack.c.l.b16 %v2158
        %v2567 = vunpack.c.h.b16 %v2158
        %v2568 = vunpack.c.l.b16 %v2159
        %v2569 = vunpack.c.h.b16 %v2159
        %v2570 = vunpack.c.l.b16 %v2160
        %v2571 = vunpack.c.h.b16 %v2160
        %v2572 = vunpack.c.l.b16 %v2161
        %v2573 = vunpack.c.h.b16 %v2161
        %v2574 = vunpack.c.l.b16 %v2162
        %v2575 = vunpack.c.h.b16 %v2162
        %v2576 = vunpack.c.l.b16 %v2163
        %v2577 = vunpack.c.h.b16 %v2163
        %v2578 = vunpack.c.l.b16 %v2164
        %v2579 = vunpack.c.h.b16 %v2164
        %v2580 = vunpack.c.l.b16 %v2165
        %v2581 = vunpack.c.h.b16 %v2165
        %v2582 = vunpack.c.l.b16 %v2166
        %v2583 = vunpack.c.h.b16 %v2166
        %v2584 = vunpack.c.l.b16 %v2167
        %v2585 = vunpack.c.h.b16 %v2167
        %v2586 = vunpack.c.l.b16 %v2168
        %v2587 = vunpack.c.h.b16 %v2168
        %v2588 = vunpack.c.l.b16 %v2169
        %v2589 = vunpack.c.h.b16 %v2169
        %v2590 = vunpack.c.l.b16 %v2170
        %v2591 = vunpack.c.h.b16 %v2170
        %v2592 = vunpack.c.l.b16 %v2171
        %v2593 = vunpack.c.h.b16 %v2171
        %v2594 = vunpack.c.l.b16 %v2172
        %v2595 = vunpack.c.h.b16 %v2172
        %v2596 = vunpack.c.l.b16 %v2173
        %v2597 = vunpack.c.h.b16 %v2173
        %v2598 = vunpack.c.l.b16 %v2174
        %v2599 = vunpack.c.h.b16 %v2174
        %v2600 = vunpack.c.l.b16 %v2175
        %v2601 = vunpack.c.h.b16 %v2175
        %v2602 = vunpack.c.l.b16 %v2176
        %v2603 = vunpack.c.h.b16 %v2176
        %v2604 = vunpack.c.l.b16 %v2177
        %v2605 = vunpack.c.h.b16 %v2177
        %v2606 = vunpack.c.l.b16 %v2178
        %v2607 = vunpack.c.h.b16 %v2178
        %v2608 = vunpack.c.l.b16 %v2179
        %v2609 = vunpack.c.h.b16 %v2179
        %v2610 = vunpack.c.l.b16 %v2180
        %v2611 = vunpack.c.h.b16 %v2180
        %v2612 = vunpack.c.l.b16 %v2181
        %v2613 = vunpack.c.h.b16 %v2181
        %v2614 = vunpack.c.l.b16 %v2182
        %v2615 = vunpack.c.h.b16 %v2182
        %v2616 = vunpack.c.l.b16 %v2183
        %v2617 = vunpack.c.h.b16 %v2183
        %v2618 = vunpack.c.l.b16 %v2184
        %v2619 = vunpack.c.h.b16 %v2184
        %v2620 = vunpack.c.l.b16 %v2185
        %v2621 = vunpack.c.h.b16 %v2185
        %v2622 = vunpack.c.l.b16 %v2186
        %v2623 = vunpack.c.h.b16 %v2186
        %v2624 = vunpack.c.l.b16 %v2187
        %v2625 = vunpack.c.h.b16 %v2187
        %v2626 = vunpack.c.l.b16 %v2188
        %v2627 = vunpack.c.h.b16 %v2188
        %v2628 = vunpack.c.l.b16 %v2189
        %v2629 = vunpack.c.h.b16 %v2189
        %v2630 = vunpack.c.l.b16 %v2190
        %v2631 = vunpack.c.h.b16 %v2190
        %v2632 = vunpack.c.l.b16 %v2191
        %v2633 = vunpack.c.h.b16 %v2191
        %v2634 = vunpack.c.l.b16 %v2192
        %v2635 = vunpack.c.h.b16 %v2192
        %v2636 = vunpack.c.l.b16 %v2193
        %v2637 = vunpack.c.h.b16 %v2193
        %v2638 = vunpack.c.l.b16 %v2194
        %v2639 = vunpack.c.h.b16 %v2194
        %v2640 = vunpack.c.l.b16 %v2195
        %v2641 = vunpack.c.h.b16 %v2195
        %v2642 = vunpack.c.l.b16 %v2196
        %v2643 = vunpack.c.h.b16 %v2196
        %v2644 = vunpack.c.l.b16 %v2197
        %v2645 = vunpack.c.h.b16 %v2197
        %v2646 = vunpack.c.l.b16 %v2198
        %v2647 = vunpack.c.h.b16 %v2198
        %v2648 = vunpack.c.l.b16 %v2199
        %v2649 = vunpack.c.h.b16 %v2199
        %v2650 = vunpack.c.l.b16 %v2200
        %v2651 = vunpack.c.h.b16 %v2200
        %v2652 = vunpack.c.l.b16 %v2201
        %v2653 = vunpack.c.h.b16 %v2201
        %v2654 = vunpack.c.l.b16 %v2202
        %v2655 = vunpack.c.h.b16 %v2202
        %v2656 = vunpack.c.l.b16 %v2203
        %v2657 = vunpack.c.h.b16 %v2203
        %v2658 = vunpack.c.l.b16 %v2204
        %v2659 = vunpack.c.h.b16 %v2204
        %v2660 = vunpack.c.l.b16 %v2205
        %v2661 = vunpack.c.h.b16 %v2205
        %v2662 = vunpack.c.l.b16 %v2206
        %v2663 = vunpack.c.h.b16 %v2206
        %v2664 = vunpack.c.l.b16 %v2207
        %v2665 = vunpack.c.h.b16 %v2207
        %v2666 = vunpack.c.l.b16 %v2208
        %v2667 = vunpack.c.h.b16 %v2208
        %v2668 = vunpack.c.l.b16 %v2209
        %v2669 = vunpack.c.h.b16 %v2209
        %v2670 = vlaneseq
        %v2671 = vand.u32 %v2670, 127
        %v2672 = vlaneseq
        %v2673 = vshrl.u32 %v2672, 7
        %v2674 = vsub.s32 %v2671, %v2673
        %v2675 = vrot.slane %v2486, %v2674
        %v2676 = vadd.s32 %v2671, 4294967288
        %v2677 = vlaneseq
        %v2678 = vshrl.u32 %v2677, 7
        %v2679 = vsub.s32 %v2676, %v2678
        %v2680 = vrot.slane %v2487, %v2679
        %vm2681 = vcmask 130112
        %v2682 = vsel %vm2681, %v2680, %v2675
        %v2683 = vadd.s32 %v2671, 4294967280
        %v2684 = vlaneseq
        %v2685 = vshrl.u32 %v2684, 7
        %v2686 = vsub.s32 %v2683, %v2685
        %v2687 = vrot.slane %v2488, %v2686
        %vm2688 = vcmask 195712
        %v2689 = vsel %vm2688, %v2687, %v2682
        %v2690 = vadd.s32 %v2671, 4294967272
        %v2691 = vlaneseq
        %v2692 = vshrl.u32 %v2691, 7
        %v2693 = vsub.s32 %v2690, %v2692
        %v2694 = vrot.slane %v2489, %v2693
        %vm2695 = vcmask 261312
        %v2696 = vsel %vm2695, %v2694, %v2689
        %v2697 = vadd.s32 %v2671, 4294967264
        %v2698 = vlaneseq
        %v2699 = vshrl.u32 %v2698, 7
        %v2700 = vsub.s32 %v2697, %v2699
        %v2701 = vrot.slane %v2490, %v2700
        %vm2702 = vcmask 326912
        %v2703 = vsel %vm2702, %v2701, %v2696
        %v2704 = vadd.s32 %v2671, 4294967256
        %v2705 = vlaneseq
        %v2706 = vshrl.u32 %v2705, 7
        %v2707 = vsub.s32 %v2704, %v2706
        %v2708 = vrot.slane %v2491, %v2707
        %vm2709 = vcmask 392512
        %v2710 = vsel %vm2709, %v2708, %v2703
        %v2711 = vadd.s32 %v2671, 4294967248
        %v2712 = vlaneseq
        %v2713 = vshrl.u32 %v2712, 7
        %v2714 = vsub.s32 %v2711, %v2713
        %v2715 = vrot.slane %v2492, %v2714
        %vm2716 = vcmask 458112
        %v2717 = vsel %vm2716, %v2715, %v2710
        %v2718 = vadd.s32 %v2671, 4294967240
        %v2719 = vlaneseq
        %v2720 = vshrl.u32 %v2719, 7
        %v2721 = vsub.s32 %v2718, %v2720
        %v2722 = vrot.slane %v2493, %v2721
        %vm2723 = vcmask 523712
        %v2724 = vsel %vm2723, %v2722, %v2717
        %v2725 = vadd.s32 %v2671, 4294967232
        %v2726 = vlaneseq
        %v2727 = vshrl.u32 %v2726, 7
        %v2728 = vsub.s32 %v2725, %v2727
        %v2729 = vrot.slane %v2494, %v2728
        %vm2730 = vcmask 589312
        %v2731 = vsel %vm2730, %v2729, %v2724
        %v2732 = vadd.s32 %v2671, 4294967224
        %v2733 = vlaneseq
        %v2734 = vshrl.u32 %v2733, 7
        %v2735 = vsub.s32 %v2732, %v2734
        %v2736 = vrot.slane %v2495, %v2735
        %vm2737 = vcmask 654912
        %v2738 = vsel %vm2737, %v2736, %v2731
        %v2739 = vadd.s32 %v2671, 4294967216
        %v2740 = vlaneseq
        %v2741 = vshrl.u32 %v2740, 7
        %v2742 = vsub.s32 %v2739, %v2741
        %v2743 = vrot.slane %v2496, %v2742
        %vm2744 = vcmask 720512
        %v2745 = vsel %vm2744, %v2743, %v2738
        %v2746 = vadd.s32 %v2671, 4294967208
        %v2747 = vlaneseq
        %v2748 = vshrl.u32 %v2747, 7
        %v2749 = vsub.s32 %v2746, %v2748
        %v2750 = vrot.slane %v2497, %v2749
        %vm2751 = vcmask 786112
        %v2752 = vsel %vm2751, %v2750, %v2745
        %v2753 = vadd.s32 %v2671, 4294967200
        %v2754 = vlaneseq
        %v2755 = vshrl.u32 %v2754, 7
        %v2756 = vsub.s32 %v2753, %v2755
        %v2757 = vrot.slane %v2498, %v2756
        %vm2758 = vcmask 851712
        %v2759 = vsel %vm2758, %v2757, %v2752
        %v2760 = vadd.s32 %v2671, 4294967192
        %v2761 = vlaneseq
        %v2762 = vshrl.u32 %v2761, 7
        %v2763 = vsub.s32 %v2760, %v2762
        %v2764 = vrot.slane %v2499, %v2763
        %vm2765 = vcmask 917312
        %v2766 = vsel %vm2765, %v2764, %v2759
        %v2767 = vadd.s32 %v2671, 4294967184
        %v2768 = vlaneseq
        %v2769 = vshrl.u32 %v2768, 7
        %v2770 = vsub.s32 %v2767, %v2769
        %v2771 = vrot.slane %v2500, %v2770
        %vm2772 = vcmask 982912
        %v2773 = vsel %vm2772, %v2771, %v2766
        %v2774 = vadd.s32 %v2671, 4294967176
        %v2775 = vlaneseq
        %v2776 = vshrl.u32 %v2775, 7
        %v2777 = vsub.s32 %v2774, %v2776
        %v2778 = vrot.slane %v2501, %v2777
        %vm2779 = vcmask 1048512
        %v2780 = vsel %vm2779, %v2778, %v2773
        %v2781 = vlaneseq
        %v2782 = vshrl.u32 %v2781, 7
        %v2783 = vsub.s32 %v2671, %v2782
        %v2784 = vrot.slane %v2502, %v2783
        %v2785 = vlaneseq
        %v2786 = vshrl.u32 %v2785, 7
        %v2787 = vsub.s32 %v2676, %v2786
        %v2788 = vrot.slane %v2503, %v2787
        %v2789 = vsel %vm2681, %v2788, %v2784
        %v2790 = vlaneseq
        %v2791 = vshrl.u32 %v2790, 7
        %v2792 = vsub.s32 %v2683, %v2791
        %v2793 = vrot.slane %v2504, %v2792
        %v2794 = vsel %vm2688, %v2793, %v2789
        %v2795 = vlaneseq
        %v2796 = vshrl.u32 %v2795, 7
        %v2797 = vsub.s32 %v2690, %v2796
        %v2798 = vrot.slane %v2505, %v2797
        %v2799 = vsel %vm2695, %v2798, %v2794
        %v2800 = vlaneseq
        %v2801 = vshrl.u32 %v2800, 7
        %v2802 = vsub.s32 %v2697, %v2801
        %v2803 = vrot.slane %v2506, %v2802
        %v2804 = vsel %vm2702, %v2803, %v2799
        %v2805 = vlaneseq
        %v2806 = vshrl.u32 %v2805, 7
        %v2807 = vsub.s32 %v2704, %v2806
        %v2808 = vrot.slane %v2507, %v2807
        %v2809 = vsel %vm2709, %v2808, %v2804
        %v2810 = vlaneseq
        %v2811 = vshrl.u32 %v2810, 7
        %v2812 = vsub.s32 %v2711, %v2811
        %v2813 = vrot.slane %v2508, %v2812
        %v2814 = vsel %vm2716, %v2813, %v2809
        %v2815 = vlaneseq
        %v2816 = vshrl.u32 %v2815, 7
        %v2817 = vsub.s32 %v2718, %v2816
        %v2818 = vrot.slane %v2509, %v2817
        %v2819 = vsel %vm2723, %v2818, %v2814
        %v2820 = vlaneseq
        %v2821 = vshrl.u32 %v2820, 7
        %v2822 = vsub.s32 %v2725, %v2821
        %v2823 = vrot.slane %v2510, %v2822
        %v2824 = vsel %vm2730, %v2823, %v2819
        %v2825 = vlaneseq
        %v2826 = vshrl.u32 %v2825, 7
        %v2827 = vsub.s32 %v2732, %v2826
        %v2828 = vrot.slane %v2511, %v2827
        %v2829 = vsel %vm2737, %v2828, %v2824
        %v2830 = vlaneseq
        %v2831 = vshrl.u32 %v2830, 7
        %v2832 = vsub.s32 %v2739, %v2831
        %v2833 = vrot.slane %v2512, %v2832
        %v2834 = vsel %vm2744, %v2833, %v2829
        %v2835 = vlaneseq
        %v2836 = vshrl.u32 %v2835, 7
        %v2837 = vsub.s32 %v2746, %v2836
        %v2838 = vrot.slane %v2513, %v2837
        %v2839 = vsel %vm2751, %v2838, %v2834
        %v2840 = vlaneseq
        %v2841 = vshrl.u32 %v2840, 7
        %v2842 = vsub.s32 %v2753, %v2841
        %v2843 = vrot.slane %v2514, %v2842
        %v2844 = vsel %vm2758, %v2843, %v2839
        %v2845 = vlaneseq
        %v2846 = vshrl.u32 %v2845, 7
        %v2847 = vsub.s32 %v2760, %v2846
        %v2848 = vrot.slane %v2515, %v2847
        %v2849 = vsel %vm2765, %v2848, %v2844
        %v2850 = vlaneseq
        %v2851 = vshrl.u32 %v2850, 7
        %v2852 = vsub.s32 %v2767, %v2851
        %v2853 = vrot.slane %v2516, %v2852
        %v2854 = vsel %vm2772, %v2853, %v2849
        %v2855 = vlaneseq
        %v2856 = vshrl.u32 %v2855, 7
        %v2857 = vsub.s32 %v2774, %v2856
        %v2858 = vrot.slane %v2517, %v2857
        %v2859 = vsel %vm2779, %v2858, %v2854
        %v2860 = vlaneseq
        %v2861 = vshrl.u32 %v2860, 7
        %v2862 = vsub.s32 %v2671, %v2861
        %v2863 = vrot.slane %v2518, %v2862
        %v2864 = vlaneseq
        %v2865 = vshrl.u32 %v2864, 7
        %v2866 = vsub.s32 %v2676, %v2865
        %v2867 = vrot.slane %v2519, %v2866
        %v2868 = vsel %vm2681, %v2867, %v2863
        %v2869 = vlaneseq
        %v2870 = vshrl.u32 %v2869, 7
        %v2871 = vsub.s32 %v2683, %v2870
        %v2872 = vrot.slane %v2520, %v2871
        %v2873 = vsel %vm2688, %v2872, %v2868
        %v2874 = vlaneseq
        %v2875 = vshrl.u32 %v2874, 7
        %v2876 = vsub.s32 %v2690, %v2875
        %v2877 = vrot.slane %v2521, %v2876
        %v2878 = vsel %vm2695, %v2877, %v2873
        %v2879 = vlaneseq
        %v2880 = vshrl.u32 %v2879, 7
        %v2881 = vsub.s32 %v2697, %v2880
        %v2882 = vrot.slane %v2522, %v2881
        %v2883 = vsel %vm2702, %v2882, %v2878
        %v2884 = vlaneseq
        %v2885 = vshrl.u32 %v2884, 7
        %v2886 = vsub.s32 %v2704, %v2885
        %v2887 = vrot.slane %v2523, %v2886
        %v2888 = vsel %vm2709, %v2887, %v2883
        %v2889 = vlaneseq
        %v2890 = vshrl.u32 %v2889, 7
        %v2891 = vsub.s32 %v2711, %v2890
        %v2892 = vrot.slane %v2524, %v2891
        %v2893 = vsel %vm2716, %v2892, %v2888
        %v2894 = vlaneseq
        %v2895 = vshrl.u32 %v2894, 7
        %v2896 = vsub.s32 %v2718, %v2895
        %v2897 = vrot.slane %v2525, %v2896
        %v2898 = vsel %vm2723, %v2897, %v2893
        %v2899 = vlaneseq
        %v2900 = vshrl.u32 %v2899, 7
        %v2901 = vsub.s32 %v2725, %v2900
        %v2902 = vrot.slane %v2526, %v2901
        %v2903 = vsel %vm2730, %v2902, %v2898
        %v2904 = vlaneseq
        %v2905 = vshrl.u32 %v2904, 7
        %v2906 = vsub.s32 %v2732, %v2905
        %v2907 = vrot.slane %v2527, %v2906
        %v2908 = vsel %vm2737, %v2907, %v2903
        %v2909 = vlaneseq
        %v2910 = vshrl.u32 %v2909, 7
        %v2911 = vsub.s32 %v2739, %v2910
        %v2912 = vrot.slane %v2528, %v2911
        %v2913 = vsel %vm2744, %v2912, %v2908
        %v2914 = vlaneseq
        %v2915 = vshrl.u32 %v2914, 7
        %v2916 = vsub.s32 %v2746, %v2915
        %v2917 = vrot.slane %v2529, %v2916
        %v2918 = vsel %vm2751, %v2917, %v2913
        %v2919 = vlaneseq
        %v2920 = vshrl.u32 %v2919, 7
        %v2921 = vsub.s32 %v2753, %v2920
        %v2922 = vrot.slane %v2530, %v2921
        %v2923 = vsel %vm2758, %v2922, %v2918
        %v2924 = vlaneseq
        %v2925 = vshrl.u32 %v2924, 7
        %v2926 = vsub.s32 %v2760, %v2925
        %v2927 = vrot.slane %v2531, %v2926
        %v2928 = vsel %vm2765, %v2927, %v2923
        %v2929 = vlaneseq
        %v2930 = vshrl.u32 %v2929, 7
        %v2931 = vsub.s32 %v2767, %v2930
        %v2932 = vrot.slane %v2532, %v2931
        %v2933 = vsel %vm2772, %v2932, %v2928
        %v2934 = vlaneseq
        %v2935 = vshrl.u32 %v2934, 7
        %v2936 = vsub.s32 %v2774, %v2935
        %v2937 = vrot.slane %v2533, %v2936
        %v2938 = vsel %vm2779, %v2937, %v2933
        %v2939 = vlaneseq
        %v2940 = vshrl.u32 %v2939, 7
        %v2941 = vsub.s32 %v2671, %v2940
        %v2942 = vrot.slane %v2534, %v2941
        %v2943 = vlaneseq
        %v2944 = vshrl.u32 %v2943, 7
        %v2945 = vsub.s32 %v2676, %v2944
        %v2946 = vrot.slane %v2535, %v2945
        %v2947 = vsel %vm2681, %v2946, %v2942
        %v2948 = vlaneseq
        %v2949 = vshrl.u32 %v2948, 7
        %v2950 = vsub.s32 %v2683, %v2949
        %v2951 = vrot.slane %v2536, %v2950
        %v2952 = vsel %vm2688, %v2951, %v2947
        %v2953 = vlaneseq
        %v2954 = vshrl.u32 %v2953, 7
        %v2955 = vsub.s32 %v2690, %v2954
        %v2956 = vrot.slane %v2537, %v2955
        %v2957 = vsel %vm2695, %v2956, %v2952
        %v2958 = vlaneseq
        %v2959 = vshrl.u32 %v2958, 7
        %v2960 = vsub.s32 %v2697, %v2959
        %v2961 = vrot.slane %v2538, %v2960
        %v2962 = vsel %vm2702, %v2961, %v2957
        %v2963 = vlaneseq
        %v2964 = vshrl.u32 %v2963, 7
        %v2965 = vsub.s32 %v2704, %v2964
        %v2966 = vrot.slane %v2539, %v2965
        %v2967 = vsel %vm2709, %v2966, %v2962
        %v2968 = vlaneseq
        %v2969 = vshrl.u32 %v2968, 7
        %v2970 = vsub.s32 %v2711, %v2969
        %v2971 = vrot.slane %v2540, %v2970
        %v2972 = vsel %vm2716, %v2971, %v2967
        %v2973 = vlaneseq
        %v2974 = vshrl.u32 %v2973, 7
        %v2975 = vsub.s32 %v2718, %v2974
        %v2976 = vrot.slane %v2541, %v2975
        %v2977 = vsel %vm2723, %v2976, %v2972
        %v2978 = vlaneseq
        %v2979 = vshrl.u32 %v2978, 7
        %v2980 = vsub.s32 %v2725, %v2979
        %v2981 = vrot.slane %v2542, %v2980
        %v2982 = vsel %vm2730, %v2981, %v2977
        %v2983 = vlaneseq
        %v2984 = vshrl.u32 %v2983, 7
        %v2985 = vsub.s32 %v2732, %v2984
        %v2986 = vrot.slane %v2543, %v2985
        %v2987 = vsel %vm2737, %v2986, %v2982
        %v2988 = vlaneseq
        %v2989 = vshrl.u32 %v2988, 7
        %v2990 = vsub.s32 %v2739, %v2989
        %v2991 = vrot.slane %v2544, %v2990
        %v2992 = vsel %vm2744, %v2991, %v2987
        %v2993 = vlaneseq
        %v2994 = vshrl.u32 %v2993, 7
        %v2995 = vsub.s32 %v2746, %v2994
        %v2996 = vrot.slane %v2545, %v2995
        %v2997 = vsel %vm2751, %v2996, %v2992
        %v2998 = vlaneseq
        %v2999 = vshrl.u32 %v2998, 7
        %v3000 = vsub.s32 %v2753, %v2999
        %v3001 = vrot.slane %v2546, %v3000
        %v3002 = vsel %vm2758, %v3001, %v2997
        %v3003 = vlaneseq
        %v3004 = vshrl.u32 %v3003, 7
        %v3005 = vsub.s32 %v2760, %v3004
        %v3006 = vrot.slane %v2547, %v3005
        %v3007 = vsel %vm2765, %v3006, %v3002
        %v3008 = vlaneseq
        %v3009 = vshrl.u32 %v3008, 7
        %v3010 = vsub.s32 %v2767, %v3009
        %v3011 = vrot.slane %v2548, %v3010
        %v3012 = vsel %vm2772, %v3011, %v3007
        %v3013 = vlaneseq
        %v3014 = vshrl.u32 %v3013, 7
        %v3015 = vsub.s32 %v2774, %v3014
        %v3016 = vrot.slane %v2549, %v3015
        %v3017 = vsel %vm2779, %v3016, %v3012
        %v3018 = vlaneseq
        %v3019 = vshrl.u32 %v3018, 7
        %v3020 = vsub.s32 %v2671, %v3019
        %v3021 = vrot.slane %v2550, %v3020
        %v3022 = vlaneseq
        %v3023 = vshrl.u32 %v3022, 7
        %v3024 = vsub.s32 %v2676, %v3023
        %v3025 = vrot.slane %v2551, %v3024
        %v3026 = vsel %vm2681, %v3025, %v3021
        %v3027 = vlaneseq
        %v3028 = vshrl.u32 %v3027, 7
        %v3029 = vsub.s32 %v2683, %v3028
        %v3030 = vrot.slane %v2552, %v3029
        %v3031 = vsel %vm2688, %v3030, %v3026
        %v3032 = vlaneseq
        %v3033 = vshrl.u32 %v3032, 7
        %v3034 = vsub.s32 %v2690, %v3033
        %v3035 = vrot.slane %v2553, %v3034
        %v3036 = vsel %vm2695, %v3035, %v3031
        %v3037 = vlaneseq
        %v3038 = vshrl.u32 %v3037, 7
        %v3039 = vsub.s32 %v2697, %v3038
        %v3040 = vrot.slane %v2554, %v3039
        %v3041 = vsel %vm2702, %v3040, %v3036
        %v3042 = vlaneseq
        %v3043 = vshrl.u32 %v3042, 7
        %v3044 = vsub.s32 %v2704, %v3043
        %v3045 = vrot.slane %v2555, %v3044
        %v3046 = vsel %vm2709, %v3045, %v3041
        %v3047 = vlaneseq
        %v3048 = vshrl.u32 %v3047, 7
        %v3049 = vsub.s32 %v2711, %v3048
        %v3050 = vrot.slane %v2556, %v3049
        %v3051 = vsel %vm2716, %v3050, %v3046
        %v3052 = vlaneseq
        %v3053 = vshrl.u32 %v3052, 7
        %v3054 = vsub.s32 %v2718, %v3053
        %v3055 = vrot.slane %v2557, %v3054
        %v3056 = vsel %vm2723, %v3055, %v3051
        %v3057 = vlaneseq
        %v3058 = vshrl.u32 %v3057, 7
        %v3059 = vsub.s32 %v2725, %v3058
        %v3060 = vrot.slane %v2558, %v3059
        %v3061 = vsel %vm2730, %v3060, %v3056
        %v3062 = vlaneseq
        %v3063 = vshrl.u32 %v3062, 7
        %v3064 = vsub.s32 %v2732, %v3063
        %v3065 = vrot.slane %v2559, %v3064
        %v3066 = vsel %vm2737, %v3065, %v3061
        %v3067 = vlaneseq
        %v3068 = vshrl.u32 %v3067, 7
        %v3069 = vsub.s32 %v2739, %v3068
        %v3070 = vrot.slane %v2560, %v3069
        %v3071 = vsel %vm2744, %v3070, %v3066
        %v3072 = vlaneseq
        %v3073 = vshrl.u32 %v3072, 7
        %v3074 = vsub.s32 %v2746, %v3073
        %v3075 = vrot.slane %v2561, %v3074
        %v3076 = vsel %vm2751, %v3075, %v3071
        %v3077 = vlaneseq
        %v3078 = vshrl.u32 %v3077, 7
        %v3079 = vsub.s32 %v2753, %v3078
        %v3080 = vrot.slane %v2562, %v3079
        %v3081 = vsel %vm2758, %v3080, %v3076
        %v3082 = vlaneseq
        %v3083 = vshrl.u32 %v3082, 7
        %v3084 = vsub.s32 %v2760, %v3083
        %v3085 = vrot.slane %v2563, %v3084
        %v3086 = vsel %vm2765, %v3085, %v3081
        %v3087 = vlaneseq
        %v3088 = vshrl.u32 %v3087, 7
        %v3089 = vsub.s32 %v2767, %v3088
        %v3090 = vrot.slane %v2564, %v3089
        %v3091 = vsel %vm2772, %v3090, %v3086
        %v3092 = vlaneseq
        %v3093 = vshrl.u32 %v3092, 7
        %v3094 = vsub.s32 %v2774, %v3093
        %v3095 = vrot.slane %v2565, %v3094
        %v3096 = vsel %vm2779, %v3095, %v3091
        %v3097 = vlaneseq
        %v3098 = vshrl.u32 %v3097, 7
        %v3099 = vsub.s32 %v2671, %v3098
        %v3100 = vrot.slane %v2566, %v3099
        %v3101 = vlaneseq
        %v3102 = vshrl.u32 %v3101, 7
        %v3103 = vsub.s32 %v2676, %v3102
        %v3104 = vrot.slane %v2567, %v3103
        %v3105 = vsel %vm2681, %v3104, %v3100
        %v3106 = vlaneseq
        %v3107 = vshrl.u32 %v3106, 7
        %v3108 = vsub.s32 %v2683, %v3107
        %v3109 = vrot.slane %v2568, %v3108
        %v3110 = vsel %vm2688, %v3109, %v3105
        %v3111 = vlaneseq
        %v3112 = vshrl.u32 %v3111, 7
        %v3113 = vsub.s32 %v2690, %v3112
        %v3114 = vrot.slane %v2569, %v3113
        %v3115 = vsel %vm2695, %v3114, %v3110
        %v3116 = vlaneseq
        %v3117 = vshrl.u32 %v3116, 7
        %v3118 = vsub.s32 %v2697, %v3117
        %v3119 = vrot.slane %v2570, %v3118
        %v3120 = vsel %vm2702, %v3119, %v3115
        %v3121 = vlaneseq
        %v3122 = vshrl.u32 %v3121, 7
        %v3123 = vsub.s32 %v2704, %v3122
        %v3124 = vrot.slane %v2571, %v3123
        %v3125 = vsel %vm2709, %v3124, %v3120
        %v3126 = vlaneseq
        %v3127 = vshrl.u32 %v3126, 7
        %v3128 = vsub.s32 %v2711, %v3127
        %v3129 = vrot.slane %v2572, %v3128
        %v3130 = vsel %vm2716, %v3129, %v3125
        %v3131 = vlaneseq
        %v3132 = vshrl.u32 %v3131, 7
        %v3133 = vsub.s32 %v2718, %v3132
        %v3134 = vrot.slane %v2573, %v3133
        %v3135 = vsel %vm2723, %v3134, %v3130
        %v3136 = vlaneseq
        %v3137 = vshrl.u32 %v3136, 7
        %v3138 = vsub.s32 %v2725, %v3137
        %v3139 = vrot.slane %v2574, %v3138
        %v3140 = vsel %vm2730, %v3139, %v3135
        %v3141 = vlaneseq
        %v3142 = vshrl.u32 %v3141, 7
        %v3143 = vsub.s32 %v2732, %v3142
        %v3144 = vrot.slane %v2575, %v3143
        %v3145 = vsel %vm2737, %v3144, %v3140
        %v3146 = vlaneseq
        %v3147 = vshrl.u32 %v3146, 7
        %v3148 = vsub.s32 %v2739, %v3147
        %v3149 = vrot.slane %v2576, %v3148
        %v3150 = vsel %vm2744, %v3149, %v3145
        %v3151 = vlaneseq
        %v3152 = vshrl.u32 %v3151, 7
        %v3153 = vsub.s32 %v2746, %v3152
        %v3154 = vrot.slane %v2577, %v3153
        %v3155 = vsel %vm2751, %v3154, %v3150
        %v3156 = vlaneseq
        %v3157 = vshrl.u32 %v3156, 7
        %v3158 = vsub.s32 %v2671, %v3157
        %v3159 = vrot.slane %v2578, %v3158
        %v3160 = vlaneseq
        %v3161 = vshrl.u32 %v3160, 7
        %v3162 = vsub.s32 %v2676, %v3161
        %v3163 = vrot.slane %v2579, %v3162
        %v3164 = vsel %vm2681, %v3163, %v3159
        %v3165 = vlaneseq
        %v3166 = vshrl.u32 %v3165, 7
        %v3167 = vsub.s32 %v2683, %v3166
        %v3168 = vrot.slane %v2580, %v3167
        %v3169 = vsel %vm2688, %v3168, %v3164
        %v3170 = vlaneseq
        %v3171 = vshrl.u32 %v3170, 7
        %v3172 = vsub.s32 %v2690, %v3171
        %v3173 = vrot.slane %v2581, %v3172
        %v3174 = vsel %vm2695, %v3173, %v3169
        %v3175 = vlaneseq
        %v3176 = vshrl.u32 %v3175, 7
        %v3177 = vsub.s32 %v2697, %v3176
        %v3178 = vrot.slane %v2582, %v3177
        %v3179 = vsel %vm2702, %v3178, %v3174
        %v3180 = vlaneseq
        %v3181 = vshrl.u32 %v3180, 7
        %v3182 = vsub.s32 %v2704, %v3181
        %v3183 = vrot.slane %v2583, %v3182
        %v3184 = vsel %vm2709, %v3183, %v3179
        %v3185 = vlaneseq
        %v3186 = vshrl.u32 %v3185, 7
        %v3187 = vsub.s32 %v2711, %v3186
        %v3188 = vrot.slane %v2584, %v3187
        %v3189 = vsel %vm2716, %v3188, %v3184
        %v3190 = vlaneseq
        %v3191 = vshrl.u32 %v3190, 7
        %v3192 = vsub.s32 %v2718, %v3191
        %v3193 = vrot.slane %v2585, %v3192
        %v3194 = vsel %vm2723, %v3193, %v3189
        %v3195 = vlaneseq
        %v3196 = vshrl.u32 %v3195, 7
        %v3197 = vsub.s32 %v2725, %v3196
        %v3198 = vrot.slane %v2586, %v3197
        %v3199 = vsel %vm2730, %v3198, %v3194
        %v3200 = vlaneseq
        %v3201 = vshrl.u32 %v3200, 7
        %v3202 = vsub.s32 %v2732, %v3201
        %v3203 = vrot.slane %v2587, %v3202
        %v3204 = vsel %vm2737, %v3203, %v3199
        %v3205 = vlaneseq
        %v3206 = vshrl.u32 %v3205, 7
        %v3207 = vsub.s32 %v2739, %v3206
        %v3208 = vrot.slane %v2588, %v3207
        %v3209 = vsel %vm2744, %v3208, %v3204
        %v3210 = vlaneseq
        %v3211 = vshrl.u32 %v3210, 7
        %v3212 = vsub.s32 %v2746, %v3211
        %v3213 = vrot.slane %v2589, %v3212
        %v3214 = vsel %vm2751, %v3213, %v3209
        %v3215 = vlaneseq
        %v3216 = vshrl.u32 %v3215, 7
        %v3217 = vsub.s32 %v2753, %v3216
        %v3218 = vrot.slane %v2590, %v3217
        %v3219 = vsel %vm2758, %v3218, %v3214
        %v3220 = vlaneseq
        %v3221 = vshrl.u32 %v3220, 7
        %v3222 = vsub.s32 %v2760, %v3221
        %v3223 = vrot.slane %v2591, %v3222
        %v3224 = vsel %vm2765, %v3223, %v3219
        %v3225 = vlaneseq
        %v3226 = vshrl.u32 %v3225, 7
        %v3227 = vsub.s32 %v2767, %v3226
        %v3228 = vrot.slane %v2592, %v3227
        %v3229 = vsel %vm2772, %v3228, %v3224
        %v3230 = vlaneseq
        %v3231 = vshrl.u32 %v3230, 7
        %v3232 = vsub.s32 %v2774, %v3231
        %v3233 = vrot.slane %v2593, %v3232
        %v3234 = vsel %vm2779, %v3233, %v3229
        %v3235 = vlaneseq
        %v3236 = vshrl.u32 %v3235, 7
        %v3237 = vsub.s32 %v2671, %v3236
        %v3238 = vrot.slane %v2594, %v3237
        %v3239 = vlaneseq
        %v3240 = vshrl.u32 %v3239, 7
        %v3241 = vsub.s32 %v2676, %v3240
        %v3242 = vrot.slane %v2595, %v3241
        %v3243 = vsel %vm2681, %v3242, %v3238
        %v3244 = vlaneseq
        %v3245 = vshrl.u32 %v3244, 7
        %v3246 = vsub.s32 %v2683, %v3245
        %v3247 = vrot.slane %v2596, %v3246
        %v3248 = vsel %vm2688, %v3247, %v3243
        %v3249 = vlaneseq
        %v3250 = vshrl.u32 %v3249, 7
        %v3251 = vsub.s32 %v2690, %v3250
        %v3252 = vrot.slane %v2597, %v3251
        %v3253 = vsel %vm2695, %v3252, %v3248
        %v3254 = vlaneseq
        %v3255 = vshrl.u32 %v3254, 7
        %v3256 = vsub.s32 %v2697, %v3255
        %v3257 = vrot.slane %v2598, %v3256
        %v3258 = vsel %vm2702, %v3257, %v3253
        %v3259 = vlaneseq
        %v3260 = vshrl.u32 %v3259, 7
        %v3261 = vsub.s32 %v2704, %v3260
        %v3262 = vrot.slane %v2599, %v3261
        %v3263 = vsel %vm2709, %v3262, %v3258
        %v3264 = vlaneseq
        %v3265 = vshrl.u32 %v3264, 7
        %v3266 = vsub.s32 %v2711, %v3265
        %v3267 = vrot.slane %v2600, %v3266
        %v3268 = vsel %vm2716, %v3267, %v3263
        %v3269 = vlaneseq
        %v3270 = vshrl.u32 %v3269, 7
        %v3271 = vsub.s32 %v2718, %v3270
        %v3272 = vrot.slane %v2601, %v3271
        %v3273 = vsel %vm2723, %v3272, %v3268
        %v3274 = vlaneseq
        %v3275 = vshrl.u32 %v3274, 7
        %v3276 = vsub.s32 %v2725, %v3275
        %v3277 = vrot.slane %v2602, %v3276
        %v3278 = vsel %vm2730, %v3277, %v3273
        %v3279 = vlaneseq
        %v3280 = vshrl.u32 %v3279, 7
        %v3281 = vsub.s32 %v2732, %v3280
        %v3282 = vrot.slane %v2603, %v3281
        %v3283 = vsel %vm2737, %v3282, %v3278
        %v3284 = vlaneseq
        %v3285 = vshrl.u32 %v3284, 7
        %v3286 = vsub.s32 %v2739, %v3285
        %v3287 = vrot.slane %v2604, %v3286
        %v3288 = vsel %vm2744, %v3287, %v3283
        %v3289 = vlaneseq
        %v3290 = vshrl.u32 %v3289, 7
        %v3291 = vsub.s32 %v2746, %v3290
        %v3292 = vrot.slane %v2605, %v3291
        %v3293 = vsel %vm2751, %v3292, %v3288
        %v3294 = vlaneseq
        %v3295 = vshrl.u32 %v3294, 7
        %v3296 = vsub.s32 %v2753, %v3295
        %v3297 = vrot.slane %v2606, %v3296
        %v3298 = vsel %vm2758, %v3297, %v3293
        %v3299 = vlaneseq
        %v3300 = vshrl.u32 %v3299, 7
        %v3301 = vsub.s32 %v2760, %v3300
        %v3302 = vrot.slane %v2607, %v3301
        %v3303 = vsel %vm2765, %v3302, %v3298
        %v3304 = vlaneseq
        %v3305 = vshrl.u32 %v3304, 7
        %v3306 = vsub.s32 %v2767, %v3305
        %v3307 = vrot.slane %v2608, %v3306
        %v3308 = vsel %vm2772, %v3307, %v3303
        %v3309 = vlaneseq
        %v3310 = vshrl.u32 %v3309, 7
        %v3311 = vsub.s32 %v2774, %v3310
        %v3312 = vrot.slane %v2609, %v3311
        %v3313 = vsel %vm2779, %v3312, %v3308
        %v3314 = vlaneseq
        %v3315 = vshrl.u32 %v3314, 7
        %v3316 = vsub.s32 %v2671, %v3315
        %v3317 = vrot.slane %v2610, %v3316
        %v3318 = vlaneseq
        %v3319 = vshrl.u32 %v3318, 7
        %v3320 = vsub.s32 %v2676, %v3319
        %v3321 = vrot.slane %v2611, %v3320
        %v3322 = vsel %vm2681, %v3321, %v3317
        %v3323 = vlaneseq
        %v3324 = vshrl.u32 %v3323, 7
        %v3325 = vsub.s32 %v2683, %v3324
        %v3326 = vrot.slane %v2612, %v3325
        %v3327 = vsel %vm2688, %v3326, %v3322
        %v3328 = vlaneseq
        %v3329 = vshrl.u32 %v3328, 7
        %v3330 = vsub.s32 %v2690, %v3329
        %v3331 = vrot.slane %v2613, %v3330
        %v3332 = vsel %vm2695, %v3331, %v3327
        %v3333 = vlaneseq
        %v3334 = vshrl.u32 %v3333, 7
        %v3335 = vsub.s32 %v2697, %v3334
        %v3336 = vrot.slane %v2614, %v3335
        %v3337 = vsel %vm2702, %v3336, %v3332
        %v3338 = vlaneseq
        %v3339 = vshrl.u32 %v3338, 7
        %v3340 = vsub.s32 %v2704, %v3339
        %v3341 = vrot.slane %v2615, %v3340
        %v3342 = vsel %vm2709, %v3341, %v3337
        %v3343 = vlaneseq
        %v3344 = vshrl.u32 %v3343, 7
        %v3345 = vsub.s32 %v2711, %v3344
        %v3346 = vrot.slane %v2616, %v3345
        %v3347 = vsel %vm2716, %v3346, %v3342
        %v3348 = vlaneseq
        %v3349 = vshrl.u32 %v3348, 7
        %v3350 = vsub.s32 %v2718, %v3349
        %v3351 = vrot.slane %v2617, %v3350
        %v3352 = vsel %vm2723, %v3351, %v3347
        %v3353 = vlaneseq
        %v3354 = vshrl.u32 %v3353, 7
        %v3355 = vsub.s32 %v2725, %v3354
        %v3356 = vrot.slane %v2618, %v3355
        %v3357 = vsel %vm2730, %v3356, %v3352
        %v3358 = vlaneseq
        %v3359 = vshrl.u32 %v3358, 7
        %v3360 = vsub.s32 %v2732, %v3359
        %v3361 = vrot.slane %v2619, %v3360
        %v3362 = vsel %vm2737, %v3361, %v3357
        %v3363 = vlaneseq
        %v3364 = vshrl.u32 %v3363, 7
        %v3365 = vsub.s32 %v2739, %v3364
        %v3366 = vrot.slane %v2620, %v3365
        %v3367 = vsel %vm2744, %v3366, %v3362
        %v3368 = vlaneseq
        %v3369 = vshrl.u32 %v3368, 7
        %v3370 = vsub.s32 %v2746, %v3369
        %v3371 = vrot.slane %v2621, %v3370
        %v3372 = vsel %vm2751, %v3371, %v3367
        %v3373 = vlaneseq
        %v3374 = vshrl.u32 %v3373, 7
        %v3375 = vsub.s32 %v2753, %v3374
        %v3376 = vrot.slane %v2622, %v3375
        %v3377 = vsel %vm2758, %v3376, %v3372
        %v3378 = vlaneseq
        %v3379 = vshrl.u32 %v3378, 7
        %v3380 = vsub.s32 %v2760, %v3379
        %v3381 = vrot.slane %v2623, %v3380
        %v3382 = vsel %vm2765, %v3381, %v3377
        %v3383 = vlaneseq
        %v3384 = vshrl.u32 %v3383, 7
        %v3385 = vsub.s32 %v2767, %v3384
        %v3386 = vrot.slane %v2624, %v3385
        %v3387 = vsel %vm2772, %v3386, %v3382
        %v3388 = vlaneseq
        %v3389 = vshrl.u32 %v3388, 7
        %v3390 = vsub.s32 %v2774, %v3389
        %v3391 = vrot.slane %v2625, %v3390
        %v3392 = vsel %vm2779, %v3391, %v3387
        %v3393 = vlaneseq
        %v3394 = vshrl.u32 %v3393, 7
        %v3395 = vsub.s32 %v2671, %v3394
        %v3396 = vrot.slane %v2626, %v3395
        %v3397 = vlaneseq
        %v3398 = vshrl.u32 %v3397, 7
        %v3399 = vsub.s32 %v2676, %v3398
        %v3400 = vrot.slane %v2627, %v3399
        %v3401 = vsel %vm2681, %v3400, %v3396
        %v3402 = vlaneseq
        %v3403 = vshrl.u32 %v3402, 7
        %v3404 = vsub.s32 %v2683, %v3403
        %v3405 = vrot.slane %v2628, %v3404
        %v3406 = vsel %vm2688, %v3405, %v3401
        %v3407 = vlaneseq
        %v3408 = vshrl.u32 %v3407, 7
        %v3409 = vsub.s32 %v2690, %v3408
        %v3410 = vrot.slane %v2629, %v3409
        %v3411 = vsel %vm2695, %v3410, %v3406
        %v3412 = vlaneseq
        %v3413 = vshrl.u32 %v3412, 7
        %v3414 = vsub.s32 %v2697, %v3413
        %v3415 = vrot.slane %v2630, %v3414
        %v3416 = vsel %vm2702, %v3415, %v3411
        %v3417 = vlaneseq
        %v3418 = vshrl.u32 %v3417, 7
        %v3419 = vsub.s32 %v2704, %v3418
        %v3420 = vrot.slane %v2631, %v3419
        %v3421 = vsel %vm2709, %v3420, %v3416
        %v3422 = vlaneseq
        %v3423 = vshrl.u32 %v3422, 7
        %v3424 = vsub.s32 %v2711, %v3423
        %v3425 = vrot.slane %v2632, %v3424
        %v3426 = vsel %vm2716, %v3425, %v3421
        %v3427 = vlaneseq
        %v3428 = vshrl.u32 %v3427, 7
        %v3429 = vsub.s32 %v2718, %v3428
        %v3430 = vrot.slane %v2633, %v3429
        %v3431 = vsel %vm2723, %v3430, %v3426
        %v3432 = vlaneseq
        %v3433 = vshrl.u32 %v3432, 7
        %v3434 = vsub.s32 %v2725, %v3433
        %v3435 = vrot.slane %v2634, %v3434
        %v3436 = vsel %vm2730, %v3435, %v3431
        %v3437 = vlaneseq
        %v3438 = vshrl.u32 %v3437, 7
        %v3439 = vsub.s32 %v2732, %v3438
        %v3440 = vrot.slane %v2635, %v3439
        %v3441 = vsel %vm2737, %v3440, %v3436
        %v3442 = vlaneseq
        %v3443 = vshrl.u32 %v3442, 7
        %v3444 = vsub.s32 %v2739, %v3443
        %v3445 = vrot.slane %v2636, %v3444
        %v3446 = vsel %vm2744, %v3445, %v3441
        %v3447 = vlaneseq
        %v3448 = vshrl.u32 %v3447, 7
        %v3449 = vsub.s32 %v2746, %v3448
        %v3450 = vrot.slane %v2637, %v3449
        %v3451 = vsel %vm2751, %v3450, %v3446
        %v3452 = vlaneseq
        %v3453 = vshrl.u32 %v3452, 7
        %v3454 = vsub.s32 %v2753, %v3453
        %v3455 = vrot.slane %v2638, %v3454
        %v3456 = vsel %vm2758, %v3455, %v3451
        %v3457 = vlaneseq
        %v3458 = vshrl.u32 %v3457, 7
        %v3459 = vsub.s32 %v2760, %v3458
        %v3460 = vrot.slane %v2639, %v3459
        %v3461 = vsel %vm2765, %v3460, %v3456
        %v3462 = vlaneseq
        %v3463 = vshrl.u32 %v3462, 7
        %v3464 = vsub.s32 %v2767, %v3463
        %v3465 = vrot.slane %v2640, %v3464
        %v3466 = vsel %vm2772, %v3465, %v3461
        %v3467 = vlaneseq
        %v3468 = vshrl.u32 %v3467, 7
        %v3469 = vsub.s32 %v2774, %v3468
        %v3470 = vrot.slane %v2641, %v3469
        %v3471 = vsel %vm2779, %v3470, %v3466
        %v3472 = vlaneseq
        %v3473 = vshrl.u32 %v3472, 7
        %v3474 = vsub.s32 %v2671, %v3473
        %v3475 = vrot.slane %v2642, %v3474
        %v3476 = vlaneseq
        %v3477 = vshrl.u32 %v3476, 7
        %v3478 = vsub.s32 %v2676, %v3477
        %v3479 = vrot.slane %v2643, %v3478
        %v3480 = vsel %vm2681, %v3479, %v3475
        %v3481 = vlaneseq
        %v3482 = vshrl.u32 %v3481, 7
        %v3483 = vsub.s32 %v2683, %v3482
        %v3484 = vrot.slane %v2644, %v3483
        %v3485 = vsel %vm2688, %v3484, %v3480
        %v3486 = vlaneseq
        %v3487 = vshrl.u32 %v3486, 7
        %v3488 = vsub.s32 %v2690, %v3487
        %v3489 = vrot.slane %v2645, %v3488
        %v3490 = vsel %vm2695, %v3489, %v3485
        %v3491 = vlaneseq
        %v3492 = vshrl.u32 %v3491, 7
        %v3493 = vsub.s32 %v2697, %v3492
        %v3494 = vrot.slane %v2646, %v3493
        %v3495 = vsel %vm2702, %v3494, %v3490
        %v3496 = vlaneseq
        %v3497 = vshrl.u32 %v3496, 7
        %v3498 = vsub.s32 %v2704, %v3497
        %v3499 = vrot.slane %v2647, %v3498
        %v3500 = vsel %vm2709, %v3499, %v3495
        %v3501 = vlaneseq
        %v3502 = vshrl.u32 %v3501, 7
        %v3503 = vsub.s32 %v2711, %v3502
        %v3504 = vrot.slane %v2648, %v3503
        %v3505 = vsel %vm2716, %v3504, %v3500
        %v3506 = vlaneseq
        %v3507 = vshrl.u32 %v3506, 7
        %v3508 = vsub.s32 %v2718, %v3507
        %v3509 = vrot.slane %v2649, %v3508
        %v3510 = vsel %vm2723, %v3509, %v3505
        %v3511 = vlaneseq
        %v3512 = vshrl.u32 %v3511, 7
        %v3513 = vsub.s32 %v2725, %v3512
        %v3514 = vrot.slane %v2650, %v3513
        %v3515 = vsel %vm2730, %v3514, %v3510
        %v3516 = vlaneseq
        %v3517 = vshrl.u32 %v3516, 7
        %v3518 = vsub.s32 %v2732, %v3517
        %v3519 = vrot.slane %v2651, %v3518
        %v3520 = vsel %vm2737, %v3519, %v3515
        %v3521 = vlaneseq
        %v3522 = vshrl.u32 %v3521, 7
        %v3523 = vsub.s32 %v2739, %v3522
        %v3524 = vrot.slane %v2652, %v3523
        %v3525 = vsel %vm2744, %v3524, %v3520
        %v3526 = vlaneseq
        %v3527 = vshrl.u32 %v3526, 7
        %v3528 = vsub.s32 %v2746, %v3527
        %v3529 = vrot.slane %v2653, %v3528
        %v3530 = vsel %vm2751, %v3529, %v3525
        %v3531 = vlaneseq
        %v3532 = vshrl.u32 %v3531, 7
        %v3533 = vsub.s32 %v2753, %v3532
        %v3534 = vrot.slane %v2654, %v3533
        %v3535 = vsel %vm2758, %v3534, %v3530
        %v3536 = vlaneseq
        %v3537 = vshrl.u32 %v3536, 7
        %v3538 = vsub.s32 %v2760, %v3537
        %v3539 = vrot.slane %v2655, %v3538
        %v3540 = vsel %vm2765, %v3539, %v3535
        %v3541 = vlaneseq
        %v3542 = vshrl.u32 %v3541, 7
        %v3543 = vsub.s32 %v2767, %v3542
        %v3544 = vrot.slane %v2656, %v3543
        %v3545 = vsel %vm2772, %v3544, %v3540
        %v3546 = vlaneseq
        %v3547 = vshrl.u32 %v3546, 7
        %v3548 = vsub.s32 %v2774, %v3547
        %v3549 = vrot.slane %v2657, %v3548
        %v3550 = vsel %vm2779, %v3549, %v3545
        %v3551 = vlaneseq
        %v3552 = vshrl.u32 %v3551, 7
        %v3553 = vsub.s32 %v2671, %v3552
        %v3554 = vrot.slane %v2658, %v3553
        %v3555 = vlaneseq
        %v3556 = vshrl.u32 %v3555, 7
        %v3557 = vsub.s32 %v2676, %v3556
        %v3558 = vrot.slane %v2659, %v3557
        %v3559 = vsel %vm2681, %v3558, %v3554
        %v3560 = vlaneseq
        %v3561 = vshrl.u32 %v3560, 7
        %v3562 = vsub.s32 %v2683, %v3561
        %v3563 = vrot.slane %v2660, %v3562
        %v3564 = vsel %vm2688, %v3563, %v3559
        %v3565 = vlaneseq
        %v3566 = vshrl.u32 %v3565, 7
        %v3567 = vsub.s32 %v2690, %v3566
        %v3568 = vrot.slane %v2661, %v3567
        %v3569 = vsel %vm2695, %v3568, %v3564
        %v3570 = vlaneseq
        %v3571 = vshrl.u32 %v3570, 7
        %v3572 = vsub.s32 %v2697, %v3571
        %v3573 = vrot.slane %v2662, %v3572
        %v3574 = vsel %vm2702, %v3573, %v3569
        %v3575 = vlaneseq
        %v3576 = vshrl.u32 %v3575, 7
        %v3577 = vsub.s32 %v2704, %v3576
        %v3578 = vrot.slane %v2663, %v3577
        %v3579 = vsel %vm2709, %v3578, %v3574
        %v3580 = vlaneseq
        %v3581 = vshrl.u32 %v3580, 7
        %v3582 = vsub.s32 %v2711, %v3581
        %v3583 = vrot.slane %v2664, %v3582
        %v3584 = vsel %vm2716, %v3583, %v3579
        %v3585 = vlaneseq
        %v3586 = vshrl.u32 %v3585, 7
        %v3587 = vsub.s32 %v2718, %v3586
        %v3588 = vrot.slane %v2665, %v3587
        %v3589 = vsel %vm2723, %v3588, %v3584
        %v3590 = vlaneseq
        %v3591 = vshrl.u32 %v3590, 7
        %v3592 = vsub.s32 %v2725, %v3591
        %v3593 = vrot.slane %v2666, %v3592
        %v3594 = vsel %vm2730, %v3593, %v3589
        %v3595 = vlaneseq
        %v3596 = vshrl.u32 %v3595, 7
        %v3597 = vsub.s32 %v2732, %v3596
        %v3598 = vrot.slane %v2667, %v3597
        %v3599 = vsel %vm2737, %v3598, %v3594
        %v3600 = vlaneseq
        %v3601 = vshrl.u32 %v3600, 7
        %v3602 = vsub.s32 %v2739, %v3601
        %v3603 = vrot.slane %v2668, %v3602
        %v3604 = vsel %vm2744, %v3603, %v3599
        %v3605 = vlaneseq
        %v3606 = vshrl.u32 %v3605, 7
        %v3607 = vsub.s32 %v2746, %v3606
        %v3608 = vrot.slane %v2669, %v3607
        %v3609 = vsel %vm2751, %v3608, %v3604
        %vm3610 = vcmask 1041409
        %v3611 = vsel %vm3610, %v3234, %v2780
        %v3612 = vsel %vm3610, %v3313, %v2859
        %v3613 = vsel %vm3610, %v3392, %v2938
        %v3614 = vsel %vm3610, %v3471, %v3017
        %v3615 = vsel %vm3610, %v3550, %v3096
        %v3616 = vsel %vm3610, %v3609, %v3155
        %v3617 = vpack.c.b16 %v3611, %v3611
        %v3618 = vpack.c.b16 %v3612, %v3612
        %v3619 = vpack.c.b16 %v3613, %v3613
        %v3620 = vpack.c.b16 %v3614, %v3614
        %v3621 = vpack.c.b16 %v3615, %v3615
        %v3622 = vpack.c.b16 %v3616, %v3616
        %v3812 = vunpack.c.l.b16 %v2210
        %v3813 = vunpack.c.h.b16 %v2210
        %v3814 = vunpack.c.l.b16 %v2211
        %v3815 = vunpack.c.h.b16 %v2211
        %v3816 = vunpack.c.l.b16 %v2212
        %v3817 = vunpack.c.h.b16 %v2212
        %v3818 = vunpack.c.l.b16 %v2213
        %v3819 = vunpack.c.h.b16 %v2213
        %v3820 = vunpack.c.l.b16 %v2214
        %v3821 = vunpack.c.h.b16 %v2214
        %v3822 = vunpack.c.l.b16 %v2215
        %v3823 = vunpack.c.h.b16 %v2215
        %v3824 = vunpack.c.l.b16 %v2216
        %v3825 = vunpack.c.h.b16 %v2216
        %v3826 = vunpack.c.l.b16 %v2217
        %v3827 = vunpack.c.h.b16 %v2217
        %v3828 = vunpack.c.l.b16 %v2218
        %v3829 = vunpack.c.h.b16 %v2218
        %v3830 = vunpack.c.l.b16 %v2219
        %v3831 = vunpack.c.h.b16 %v2219
        %v3832 = vunpack.c.l.b16 %v2220
        %v3833 = vunpack.c.h.b16 %v2220
        %v3834 = vunpack.c.l.b16 %v2221
        %v3835 = vunpack.c.h.b16 %v2221
        %v3836 = vunpack.c.l.b16 %v2222
        %v3837 = vunpack.c.h.b16 %v2222
        %v3838 = vunpack.c.l.b16 %v2223
        %v3839 = vunpack.c.h.b16 %v2223
        %v3840 = vunpack.c.l.b16 %v2224
        %v3841 = vunpack.c.h.b16 %v2224
        %v3842 = vunpack.c.l.b16 %v2225
        %v3843 = vunpack.c.h.b16 %v2225
        %v3844 = vunpack.c.l.b16 %v2226
        %v3845 = vunpack.c.h.b16 %v2226
        %v3846 = vunpack.c.l.b16 %v2227
        %v3847 = vunpack.c.h.b16 %v2227
        %v3848 = vunpack.c.l.b16 %v2228
        %v3849 = vunpack.c.h.b16 %v2228
        %v3850 = vunpack.c.l.b16 %v2229
        %v3851 = vunpack.c.h.b16 %v2229
        %v3852 = vunpack.c.l.b16 %v2230
        %v3853 = vunpack.c.h.b16 %v2230
        %v3854 = vunpack.c.l.b16 %v2231
        %v3855 = vunpack.c.h.b16 %v2231
        %v3856 = vunpack.c.l.b16 %v2232
        %v3857 = vunpack.c.h.b16 %v2232
        %v3858 = vunpack.c.l.b16 %v2233
        %v3859 = vunpack.c.h.b16 %v2233
        %v3860 = vunpack.c.l.b16 %v2234
        %v3861 = vunpack.c.h.b16 %v2234
        %v3862 = vunpack.c.l.b16 %v2235
        %v3863 = vunpack.c.h.b16 %v2235
        %v3864 = vunpack.c.l.b16 %v2236
        %v3865 = vunpack.c.h.b16 %v2236
        %v3866 = vunpack.c.l.b16 %v2237
        %v3867 = vunpack.c.h.b16 %v2237
        %v3868 = vunpack.c.l.b16 %v2238
        %v3869 = vunpack.c.h.b16 %v2238
        %v3870 = vunpack.c.l.b16 %v2239
        %v3871 = vunpack.c.h.b16 %v2239
        %v3872 = vunpack.c.l.b16 %v2240
        %v3873 = vunpack.c.h.b16 %v2240
        %v3874 = vunpack.c.l.b16 %v2241
        %v3875 = vunpack.c.h.b16 %v2241
        %v3876 = vunpack.c.l.b16 %v2242
        %v3877 = vunpack.c.h.b16 %v2242
        %v3878 = vunpack.c.l.b16 %v2243
        %v3879 = vunpack.c.h.b16 %v2243
        %v3880 = vunpack.c.l.b16 %v2244
        %v3881 = vunpack.c.h.b16 %v2244
        %v3882 = vunpack.c.l.b16 %v2245
        %v3883 = vunpack.c.h.b16 %v2245
        %v3884 = vunpack.c.l.b16 %v2246
        %v3885 = vunpack.c.h.b16 %v2246
        %v3886 = vunpack.c.l.b16 %v2247
        %v3887 = vunpack.c.h.b16 %v2247
        %v3888 = vunpack.c.l.b16 %v2248
        %v3889 = vunpack.c.h.b16 %v2248
        %v3890 = vunpack.c.l.b16 %v2249
        %v3891 = vunpack.c.h.b16 %v2249
        %v3892 = vunpack.c.l.b16 %v2250
        %v3893 = vunpack.c.h.b16 %v2250
        %v3894 = vunpack.c.l.b16 %v2251
        %v3895 = vunpack.c.h.b16 %v2251
        %v3896 = vunpack.c.l.b16 %v2252
        %v3897 = vunpack.c.h.b16 %v2252
        %v3898 = vunpack.c.l.b16 %v2253
        %v3899 = vunpack.c.h.b16 %v2253
        %v3900 = vunpack.c.l.b16 %v2254
        %v3901 = vunpack.c.h.b16 %v2254
        %v3902 = vunpack.c.l.b16 %v2255
        %v3903 = vunpack.c.h.b16 %v2255
        %v3904 = vunpack.c.l.b16 %v2256
        %v3905 = vunpack.c.h.b16 %v2256
        %v3906 = vunpack.c.l.b16 %v2257
        %v3907 = vunpack.c.h.b16 %v2257
        %v3908 = vunpack.c.l.b16 %v2258
        %v3909 = vunpack.c.h.b16 %v2258
        %v3910 = vunpack.c.l.b16 %v2259
        %v3911 = vunpack.c.h.b16 %v2259
        %v3912 = vunpack.c.l.b16 %v2260
        %v3913 = vunpack.c.h.b16 %v2260
        %v3914 = vunpack.c.l.b16 %v2261
        %v3915 = vunpack.c.h.b16 %v2261
        %v3916 = vunpack.c.l.b16 %v2262
        %v3917 = vunpack.c.h.b16 %v2262
        %v3918 = vunpack.c.l.b16 %v2263
        %v3919 = vunpack.c.h.b16 %v2263
        %v3920 = vunpack.c.l.b16 %v2264
        %v3921 = vunpack.c.h.b16 %v2264
        %v3922 = vunpack.c.l.b16 %v2265
        %v3923 = vunpack.c.h.b16 %v2265
        %v3924 = vunpack.c.l.b16 %v2266
        %v3925 = vunpack.c.h.b16 %v2266
        %v3926 = vunpack.c.l.b16 %v2267
        %v3927 = vunpack.c.h.b16 %v2267
        %v3928 = vunpack.c.l.b16 %v2268
        %v3929 = vunpack.c.h.b16 %v2268
        %v3930 = vunpack.c.l.b16 %v2269
        %v3931 = vunpack.c.h.b16 %v2269
        %v3932 = vunpack.c.l.b16 %v2270
        %v3933 = vunpack.c.h.b16 %v2270
        %v3934 = vunpack.c.l.b16 %v2271
        %v3935 = vunpack.c.h.b16 %v2271
        %v3936 = vunpack.c.l.b16 %v2272
        %v3937 = vunpack.c.h.b16 %v2272
        %v3938 = vunpack.c.l.b16 %v2273
        %v3939 = vunpack.c.h.b16 %v2273
        %v3940 = vunpack.c.l.b16 %v2274
        %v3941 = vunpack.c.h.b16 %v2274
        %v3942 = vunpack.c.l.b16 %v2275
        %v3943 = vunpack.c.h.b16 %v2275
        %v3944 = vunpack.c.l.b16 %v2276
        %v3945 = vunpack.c.h.b16 %v2276
        %v3946 = vunpack.c.l.b16 %v2277
        %v3947 = vunpack.c.h.b16 %v2277
        %v3948 = vunpack.c.l.b16 %v2278
        %v3949 = vunpack.c.h.b16 %v2278
        %v3950 = vunpack.c.l.b16 %v2279
        %v3951 = vunpack.c.h.b16 %v2279
        %v3952 = vunpack.c.l.b16 %v2280
        %v3953 = vunpack.c.h.b16 %v2280
        %v3954 = vunpack.c.l.b16 %v2281
        %v3955 = vunpack.c.h.b16 %v2281
        %v3956 = vunpack.c.l.b16 %v2282
        %v3957 = vunpack.c.h.b16 %v2282
        %v3958 = vunpack.c.l.b16 %v2283
        %v3959 = vunpack.c.h.b16 %v2283
        %v3960 = vunpack.c.l.b16 %v2284
        %v3961 = vunpack.c.h.b16 %v2284
        %v3962 = vunpack.c.l.b16 %v2285
        %v3963 = vunpack.c.h.b16 %v2285
        %v3964 = vunpack.c.l.b16 %v2286
        %v3965 = vunpack.c.h.b16 %v2286
        %v3966 = vunpack.c.l.b16 %v2287
        %v3967 = vunpack.c.h.b16 %v2287
        %v3968 = vunpack.c.l.b16 %v2288
        %v3969 = vunpack.c.h.b16 %v2288
        %v3970 = vunpack.c.l.b16 %v2289
        %v3971 = vunpack.c.h.b16 %v2289
        %v3972 = vunpack.c.l.b16 %v2290
        %v3973 = vunpack.c.h.b16 %v2290
        %v3974 = vunpack.c.l.b16 %v2291
        %v3975 = vunpack.c.h.b16 %v2291
        %v3976 = vunpack.c.l.b16 %v2292
        %v3977 = vunpack.c.h.b16 %v2292
        %v3978 = vunpack.c.l.b16 %v2293
        %v3979 = vunpack.c.h.b16 %v2293
        %v3980 = vunpack.c.l.b16 %v2294
        %v3981 = vunpack.c.h.b16 %v2294
        %v3982 = vunpack.c.l.b16 %v2295
        %v3983 = vunpack.c.h.b16 %v2295
        %v3984 = vunpack.c.l.b16 %v2296
        %v3985 = vunpack.c.h.b16 %v2296
        %v3986 = vunpack.c.l.b16 %v2297
        %v3987 = vunpack.c.h.b16 %v2297
        %v3988 = vunpack.c.l.b16 %v2298
        %v3989 = vunpack.c.h.b16 %v2298
        %v3990 = vunpack.c.l.b16 %v2299
        %v3991 = vunpack.c.h.b16 %v2299
        %v3992 = vunpack.c.l.b16 %v2300
        %v3993 = vunpack.c.h.b16 %v2300
        %v3994 = vunpack.c.l.b16 %v2301
        %v3995 = vunpack.c.h.b16 %v2301
        %v3996 = vunpack.c.l.b16 %v2302
        %v3997 = vunpack.c.h.b16 %v2302
        %v3998 = vunpack.c.l.b16 %v2303
        %v3999 = vunpack.c.h.b16 %v2303
        %v4000 = vunpack.c.l.b16 %v2304
        %v4001 = vunpack.c.h.b16 %v2304
        %v4002 = vunpack.c.l.b16 %v2305
        %v4003 = vunpack.c.h.b16 %v2305
        %v4004 = vunpack.c.l.b16 %v2306
        %v4005 = vunpack.c.h.b16 %v2306
        %v4006 = vunpack.c.l.b16 %v2307
        %v4007 = vunpack.c.h.b16 %v2307
        %v4008 = vunpack.c.l.b16 %v2308
        %v4009 = vunpack.c.h.b16 %v2308
        %v4010 = vunpack.c.l.b16 %v2309
        %v4011 = vunpack.c.h.b16 %v2309
        %v4012 = vunpack.c.l.b16 %v2310
        %v4013 = vunpack.c.h.b16 %v2310
        %v4014 = vunpack.c.l.b16 %v2311
        %v4015 = vunpack.c.h.b16 %v2311
        %v4016 = vunpack.c.l.b16 %v2312
        %v4017 = vunpack.c.h.b16 %v2312
        %v4018 = vunpack.c.l.b16 %v2313
        %v4019 = vunpack.c.h.b16 %v2313
        %v4020 = vunpack.c.l.b16 %v2314
        %v4021 = vunpack.c.h.b16 %v2314
        %v4022 = vunpack.c.l.b16 %v2315
        %v4023 = vunpack.c.h.b16 %v2315
        %v4024 = vunpack.c.l.b16 %v2316
        %v4025 = vunpack.c.h.b16 %v2316
        %v4026 = vunpack.c.l.b16 %v2317
        %v4027 = vunpack.c.h.b16 %v2317
        %v4028 = vunpack.c.l.b16 %v2318
        %v4029 = vunpack.c.h.b16 %v2318
        %v4030 = vunpack.c.l.b16 %v2319
        %v4031 = vunpack.c.h.b16 %v2319
        %v4032 = vunpack.c.l.b16 %v2320
        %v4033 = vunpack.c.h.b16 %v2320
        %v4034 = vunpack.c.l.b16 %v2321
        %v4035 = vunpack.c.h.b16 %v2321
        %v4036 = vunpack.c.l.b16 %v2322
        %v4037 = vunpack.c.h.b16 %v2322
        %v4038 = vunpack.c.l.b16 %v2323
        %v4039 = vunpack.c.h.b16 %v2323
        %v4040 = vunpack.c.l.b16 %v2324
        %v4041 = vunpack.c.h.b16 %v2324
        %v4042 = vunpack.c.l.b16 %v2325
        %v4043 = vunpack.c.h.b16 %v2325
        %v4044 = vunpack.c.l.b16 %v2326
        %v4045 = vunpack.c.h.b16 %v2326
        %v4046 = vunpack.c.l.b16 %v2327
        %v4047 = vunpack.c.h.b16 %v2327
        %v4048 = vunpack.c.l.b16 %v2328
        %v4049 = vunpack.c.h.b16 %v2328
        %v4050 = vunpack.c.l.b16 %v2329
        %v4051 = vunpack.c.h.b16 %v2329
        %v4052 = vunpack.c.l.b16 %v2330
        %v4053 = vunpack.c.h.b16 %v2330
        %v4054 = vunpack.c.l.b16 %v2331
        %v4055 = vunpack.c.h.b16 %v2331
        %v4056 = vunpack.c.l.b16 %v2332
        %v4057 = vunpack.c.h.b16 %v2332
        %v4058 = vunpack.c.l.b16 %v2333
        %v4059 = vunpack.c.h.b16 %v2333
        %v4060 = vunpack.c.l.b16 %v2334
        %v4061 = vunpack.c.h.b16 %v2334
        %v4062 = vunpack.c.l.b16 %v2335
        %v4063 = vunpack.c.h.b16 %v2335
        %v4064 = vunpack.c.l.b16 %v2336
        %v4065 = vunpack.c.h.b16 %v2336
        %v4066 = vunpack.c.l.b16 %v2337
        %v4067 = vunpack.c.h.b16 %v2337
        %v4068 = vunpack.c.l.b16 %v2338
        %v4069 = vunpack.c.h.b16 %v2338
        %v4070 = vunpack.c.l.b16 %v2339
        %v4071 = vunpack.c.h.b16 %v2339
        %v4072 = vunpack.c.l.b16 %v2340
        %v4073 = vunpack.c.h.b16 %v2340
        %v4074 = vunpack.c.l.b16 %v2341
        %v4075 = vunpack.c.h.b16 %v2341
        %v4076 = vunpack.c.l.b16 %v2342
        %v4077 = vunpack.c.h.b16 %v2342
        %v4078 = vunpack.c.l.b16 %v2343
        %v4079 = vunpack.c.h.b16 %v2343
        %v4080 = vunpack.c.l.b16 %v2344
        %v4081 = vunpack.c.h.b16 %v2344
        %v4082 = vunpack.c.l.b16 %v2345
        %v4083 = vunpack.c.h.b16 %v2345
        %v4084 = vunpack.c.l.b16 %v2346
        %v4085 = vunpack.c.h.b16 %v2346
        %v4086 = vunpack.c.l.b16 %v2347
        %v4087 = vunpack.c.h.b16 %v2347
        %v4088 = vunpack.c.l.b16 %v2348
        %v4089 = vunpack.c.h.b16 %v2348
        %v4090 = vunpack.c.l.b16 %v2349
        %v4091 = vunpack.c.h.b16 %v2349
        %v4092 = vunpack.c.l.b16 %v2350
        %v4093 = vunpack.c.h.b16 %v2350
        %v4094 = vunpack.c.l.b16 %v2351
        %v4095 = vunpack.c.h.b16 %v2351
        %v4096 = vunpack.c.l.b16 %v2352
        %v4097 = vunpack.c.h.b16 %v2352
        %v4098 = vunpack.c.l.b16 %v2353
        %v4099 = vunpack.c.h.b16 %v2353
        %v4100 = vunpack.c.l.b16 %v2354
        %v4101 = vunpack.c.h.b16 %v2354
        %v4102 = vunpack.c.l.b16 %v2355
        %v4103 = vunpack.c.h.b16 %v2355
        %v4104 = vunpack.c.l.b16 %v2356
        %v4105 = vunpack.c.h.b16 %v2356
        %v4106 = vunpack.c.l.b16 %v2357
        %v4107 = vunpack.c.h.b16 %v2357
        %v4108 = vunpack.c.l.b16 %v2358
        %v4109 = vunpack.c.h.b16 %v2358
        %v4110 = vunpack.c.l.b16 %v2359
        %v4111 = vunpack.c.h.b16 %v2359
        %v4112 = vunpack.c.l.b16 %v2360
        %v4113 = vunpack.c.h.b16 %v2360
        %v4114 = vunpack.c.l.b16 %v2361
        %v4115 = vunpack.c.h.b16 %v2361
        %v4116 = vunpack.c.l.b16 %v2362
        %v4117 = vunpack.c.h.b16 %v2362
        %v4118 = vunpack.c.l.b16 %v2363
        %v4119 = vunpack.c.h.b16 %v2363
        %v4120 = vunpack.c.l.b16 %v2364
        %v4121 = vunpack.c.h.b16 %v2364
        %v4122 = vunpack.c.l.b16 %v2365
        %v4123 = vunpack.c.h.b16 %v2365
        %v4124 = vunpack.c.l.b16 %v2366
        %v4125 = vunpack.c.h.b16 %v2366
        %v4126 = vunpack.c.l.b16 %v2367
        %v4127 = vunpack.c.h.b16 %v2367
        %v4128 = vunpack.c.l.b16 %v2368
        %v4129 = vunpack.c.h.b16 %v2368
        %v4130 = vunpack.c.l.b16 %v2369
        %v4131 = vunpack.c.h.b16 %v2369
        %v4132 = vunpack.c.l.b16 %v2370
        %v4133 = vunpack.c.h.b16 %v2370
        %v4134 = vunpack.c.l.b16 %v2371
        %v4135 = vunpack.c.h.b16 %v2371
        %v4136 = vunpack.c.l.b16 %v2372
        %v4137 = vunpack.c.h.b16 %v2372
        %v4138 = vunpack.c.l.b16 %v2373
        %v4139 = vunpack.c.h.b16 %v2373
        %v4140 = vunpack.c.l.b16 %v2374
        %v4141 = vunpack.c.h.b16 %v2374
        %v4142 = vunpack.c.l.b16 %v2375
        %v4143 = vunpack.c.h.b16 %v2375
        %v4144 = vunpack.c.l.b16 %v2376
        %v4145 = vunpack.c.h.b16 %v2376
        %v4146 = vunpack.c.l.b16 %v2377
        %v4147 = vunpack.c.h.b16 %v2377
        %v4148 = vunpack.c.l.b16 %v2378
        %v4149 = vunpack.c.h.b16 %v2378
        %v4150 = vunpack.c.l.b16 %v2379
        %v4151 = vunpack.c.h.b16 %v2379
        %v4152 = vunpack.c.l.b16 %v2380
        %v4153 = vunpack.c.h.b16 %v2380
        %v4154 = vunpack.c.l.b16 %v2381
        %v4155 = vunpack.c.h.b16 %v2381
        %v4156 = vunpack.c.l.b16 %v2382
        %v4157 = vunpack.c.h.b16 %v2382
        %v4158 = vunpack.c.l.b16 %v2383
        %v4159 = vunpack.c.h.b16 %v2383
        %v4160 = vunpack.c.l.b16 %v2384
        %v4161 = vunpack.c.h.b16 %v2384
        %v4162 = vunpack.c.l.b16 %v2385
        %v4163 = vunpack.c.h.b16 %v2385
        %v4164 = vunpack.c.l.b16 %v2386
        %v4165 = vunpack.c.h.b16 %v2386
        %v4166 = vunpack.c.l.b16 %v2387
        %v4167 = vunpack.c.h.b16 %v2387
        %v4168 = vunpack.c.l.b16 %v2388
        %v4169 = vunpack.c.h.b16 %v2388
        %v4170 = vunpack.c.l.b16 %v2389
        %v4171 = vunpack.c.h.b16 %v2389
        %v4172 = vunpack.c.l.b16 %v2390
        %v4173 = vunpack.c.h.b16 %v2390
        %v4174 = vunpack.c.l.b16 %v2391
        %v4175 = vunpack.c.h.b16 %v2391
        %v4176 = vunpack.c.l.b16 %v2392
        %v4177 = vunpack.c.h.b16 %v2392
        %v4178 = vunpack.c.l.b16 %v2393
        %v4179 = vunpack.c.h.b16 %v2393
        %v4180 = vpack.c.b16 %v3816, %v3812
        %v4181 = vpack.c.b16 %v3817, %v3813
        %v4182 = vpack.c.b16 %v3818, %v3814
        %v4183 = vpack.c.b16 %v3819, %v3815
        %v4184 = vpack.c.b16 %v3824, %v3820
        %v4185 = vpack.c.b16 %v3825, %v3821
        %v4186 = vpack.c.b16 %v3826, %v3822
        %v4187 = vpack.c.b16 %v3827, %v3823
        %v4188 = vpack.c.b16 %v3832, %v3828
        %v4189 = vpack.c.b16 %v3833, %v3829
        %v4190 = vpack.c.b16 %v3834, %v3830
        %v4191 = vpack.c.b16 %v3835, %v3831
        %v4192 = vpack.c.b16 %v3840, %v3836
        %v4193 = vpack.c.b16 %v3841, %v3837
        %v4194 = vpack.c.b16 %v3842, %v3838
        %v4195 = vpack.c.b16 %v3843, %v3839
        %v4196 = vpack.c.b16 %v3848, %v3844
        %v4197 = vpack.c.b16 %v3849, %v3845
        %v4198 = vpack.c.b16 %v3850, %v3846
        %v4199 = vpack.c.b16 %v3851, %v3847
        %v4200 = vpack.c.b16 %v3856, %v3852
        %v4201 = vpack.c.b16 %v3857, %v3853
        %v4202 = vpack.c.b16 %v3858, %v3854
        %v4203 = vpack.c.b16 %v3859, %v3855
        %v4204 = vpack.c.b16 %v3864, %v3860
        %v4205 = vpack.c.b16 %v3865, %v3861
        %v4206 = vpack.c.b16 %v3866, %v3862
        %v4207 = vpack.c.b16 %v3867, %v3863
        %v4208 = vpack.c.b16 %v3872, %v3868
        %v4209 = vpack.c.b16 %v3873, %v3869
        %v4210 = vpack.c.b16 %v3874, %v3870
        %v4211 = vpack.c.b16 %v3875, %v3871
        %v4212 = vpack.c.b16 %v3880, %v3876
        %v4213 = vpack.c.b16 %v3881, %v3877
        %v4214 = vpack.c.b16 %v3882, %v3878
        %v4215 = vpack.c.b16 %v3883, %v3879
        %v4216 = vpack.c.b16 %v3888, %v3884
        %v4217 = vpack.c.b16 %v3889, %v3885
        %v4218 = vpack.c.b16 %v3890, %v3886
        %v4219 = vpack.c.b16 %v3891, %v3887
        %v4220 = vpack.c.b16 %v3896, %v3892
        %v4221 = vpack.c.b16 %v3897, %v3893
        %v4222 = vpack.c.b16 %v3898, %v3894
        %v4223 = vpack.c.b16 %v3899, %v3895
        %v4224 = vpack.c.b16 %v3904, %v3900
        %v4225 = vpack.c.b16 %v3905, %v3901
        %v4226 = vpack.c.b16 %v3906, %v3902
        %v4227 = vpack.c.b16 %v3907, %v3903
        %v4228 = vpack.c.b16 %v3912, %v3908
        %v4229 = vpack.c.b16 %v3913, %v3909
        %v4230 = vpack.c.b16 %v3914, %v3910
        %v4231 = vpack.c.b16 %v3915, %v3911
        %v4232 = vpack.c.b16 %v3920, %v3916
        %v4233 = vpack.c.b16 %v3921, %v3917
        %v4234 = vpack.c.b16 %v3922, %v3918
        %v4235 = vpack.c.b16 %v3923, %v3919
        %v4236 = vpack.c.b16 %v3928, %v3924
        %v4237 = vpack.c.b16 %v3929, %v3925
        %v4238 = vpack.c.b16 %v3930, %v3926
        %v4239 = vpack.c.b16 %v3931, %v3927
        %v4240 = vpack.c.b16 %v3936, %v3932
        %v4241 = vpack.c.b16 %v3937, %v3933
        %v4242 = vpack.c.b16 %v3938, %v3934
        %v4243 = vpack.c.b16 %v3939, %v3935
        %v4244 = vpack.c.b16 %v3944, %v3940
        %v4245 = vpack.c.b16 %v3945, %v3941
        %v4246 = vpack.c.b16 %v3946, %v3942
        %v4247 = vpack.c.b16 %v3947, %v3943
        %v4248 = vpack.c.b16 %v3952, %v3948
        %v4249 = vpack.c.b16 %v3953, %v3949
        %v4250 = vpack.c.b16 %v3954, %v3950
        %v4251 = vpack.c.b16 %v3955, %v3951
        %v4252 = vpack.c.b16 %v3960, %v3956
        %v4253 = vpack.c.b16 %v3961, %v3957
        %v4254 = vpack.c.b16 %v3962, %v3958
        %v4255 = vpack.c.b16 %v3963, %v3959
        %v4256 = vpack.c.b16 %v3968, %v3964
        %v4257 = vpack.c.b16 %v3969, %v3965
        %v4258 = vpack.c.b16 %v3970, %v3966
        %v4259 = vpack.c.b16 %v3971, %v3967
        %v4260 = vpack.c.b16 %v3976, %v3972
        %v4261 = vpack.c.b16 %v3977, %v3973
        %v4262 = vpack.c.b16 %v3978, %v3974
        %v4263 = vpack.c.b16 %v3979, %v3975
        %v4264 = vpack.c.b16 %v3984, %v3980
        %v4265 = vpack.c.b16 %v3985, %v3981
        %v4266 = vpack.c.b16 %v3986, %v3982
        %v4267 = vpack.c.b16 %v3987, %v3983
        %v4268 = vpack.c.b16 %v3992, %v3988
        %v4269 = vpack.c.b16 %v3993, %v3989
        %v4270 = vpack.c.b16 %v3994, %v3990
        %v4271 = vpack.c.b16 %v3995, %v3991
        %v4272 = vpack.c.b16 %v4000, %v3996
        %v4273 = vpack.c.b16 %v4001, %v3997
        %v4274 = vpack.c.b16 %v4002, %v3998
        %v4275 = vpack.c.b16 %v4003, %v3999
        %v4276 = vpack.c.b16 %v4008, %v4004
        %v4277 = vpack.c.b16 %v4009, %v4005
        %v4278 = vpack.c.b16 %v4010, %v4006
        %v4279 = vpack.c.b16 %v4011, %v4007
        %v4280 = vpack.c.b16 %v4016, %v4012
        %v4281 = vpack.c.b16 %v4017, %v4013
        %v4282 = vpack.c.b16 %v4018, %v4014
        %v4283 = vpack.c.b16 %v4019, %v4015
        %v4284 = vpack.c.b16 %v4024, %v4020
        %v4285 = vpack.c.b16 %v4025, %v4021
        %v4286 = vpack.c.b16 %v4026, %v4022
        %v4287 = vpack.c.b16 %v4027, %v4023
        %v4288 = vpack.c.b16 %v4032, %v4028
        %v4289 = vpack.c.b16 %v4033, %v4029
        %v4290 = vpack.c.b16 %v4034, %v4030
        %v4291 = vpack.c.b16 %v4035, %v4031
        %v4292 = vpack.c.b16 %v4040, %v4036
        %v4293 = vpack.c.b16 %v4041, %v4037
        %v4294 = vpack.c.b16 %v4042, %v4038
        %v4295 = vpack.c.b16 %v4043, %v4039
        %v4296 = vpack.c.b16 %v4048, %v4044
        %v4297 = vpack.c.b16 %v4049, %v4045
        %v4298 = vpack.c.b16 %v4050, %v4046
        %v4299 = vpack.c.b16 %v4051, %v4047
        %v4300 = vpack.c.b16 %v4056, %v4052
        %v4301 = vpack.c.b16 %v4057, %v4053
        %v4302 = vpack.c.b16 %v4058, %v4054
        %v4303 = vpack.c.b16 %v4059, %v4055
        %v4304 = vpack.c.b16 %v4064, %v4060
        %v4305 = vpack.c.b16 %v4065, %v4061
        %v4306 = vpack.c.b16 %v4066, %v4062
        %v4307 = vpack.c.b16 %v4067, %v4063
        %v4308 = vpack.c.b16 %v4072, %v4068
        %v4309 = vpack.c.b16 %v4073, %v4069
        %v4310 = vpack.c.b16 %v4074, %v4070
        %v4311 = vpack.c.b16 %v4075, %v4071
        %v4312 = vpack.c.b16 %v4080, %v4076
        %v4313 = vpack.c.b16 %v4081, %v4077
        %v4314 = vpack.c.b16 %v4082, %v4078
        %v4315 = vpack.c.b16 %v4083, %v4079
        %v4316 = vpack.c.b16 %v4088, %v4084
        %v4317 = vpack.c.b16 %v4089, %v4085
        %v4318 = vpack.c.b16 %v4090, %v4086
        %v4319 = vpack.c.b16 %v4091, %v4087
        %v4320 = vpack.c.b16 %v4096, %v4092
        %v4321 = vpack.c.b16 %v4097, %v4093
        %v4322 = vpack.c.b16 %v4098, %v4094
        %v4323 = vpack.c.b16 %v4099, %v4095
        %v4324 = vpack.c.b16 %v4104, %v4100
        %v4325 = vpack.c.b16 %v4105, %v4101
        %v4326 = vpack.c.b16 %v4106, %v4102
        %v4327 = vpack.c.b16 %v4107, %v4103
        %v4328 = vpack.c.b16 %v4112, %v4108
        %v4329 = vpack.c.b16 %v4113, %v4109
        %v4330 = vpack.c.b16 %v4114, %v4110
        %v4331 = vpack.c.b16 %v4115, %v4111
        %v4332 = vpack.c.b16 %v4120, %v4116
        %v4333 = vpack.c.b16 %v4121, %v4117
        %v4334 = vpack.c.b16 %v4122, %v4118
        %v4335 = vpack.c.b16 %v4123, %v4119
        %v4336 = vpack.c.b16 %v4128, %v4124
        %v4337 = vpack.c.b16 %v4129, %v4125
        %v4338 = vpack.c.b16 %v4130, %v4126
        %v4339 = vpack.c.b16 %v4131, %v4127
        %v4340 = vpack.c.b16 %v4136, %v4132
        %v4341 = vpack.c.b16 %v4137, %v4133
        %v4342 = vpack.c.b16 %v4138, %v4134
        %v4343 = vpack.c.b16 %v4139, %v4135
        %v4344 = vpack.c.b16 %v4144, %v4140
        %v4345 = vpack.c.b16 %v4145, %v4141
        %v4346 = vpack.c.b16 %v4146, %v4142
        %v4347 = vpack.c.b16 %v4147, %v4143
        %v4348 = vpack.c.b16 %v4152, %v4148
        %v4349 = vpack.c.b16 %v4153, %v4149
        %v4350 = vpack.c.b16 %v4154, %v4150
        %v4351 = vpack.c.b16 %v4155, %v4151
        %v4352 = vpack.c.b16 %v4160, %v4156
        %v4353 = vpack.c.b16 %v4161, %v4157
        %v4354 = vpack.c.b16 %v4162, %v4158
        %v4355 = vpack.c.b16 %v4163, %v4159
        %v4356 = vpack.c.b16 %v4168, %v4164
        %v4357 = vpack.c.b16 %v4169, %v4165
        %v4358 = vpack.c.b16 %v4170, %v4166
        %v4359 = vpack.c.b16 %v4171, %v4167
        %v4360 = vpack.c.b16 %v4176, %v4172
        %v4361 = vpack.c.b16 %v4177, %v4173
        %v4362 = vpack.c.b16 %v4178, %v4174
        %v4363 = vpack.c.b16 %v4179, %v4175
        %vm4548 = vcmask 785408
        %v4550 = vsel %vm4548, %v3622, 0
        %4552 = vmatprep.subr.bf16.mxu0 %v4209
        %4553 = vmatpush1.bf16.msra.mxu0 %v4208
        %4554 = vmatprep.subr.bf16.mxu0 %v4205
        %4555 = vmatpush1.bf16.msra.mxu0 %v4204
        %4556 = vmatprep.subr.bf16.mxu0 %v4201
        %4557 = vmatpush1.bf16.msra.mxu0 %v4200
        %4558 = vmatprep.subr.bf16.mxu0 %v4197
        %4559 = vmatpush1.bf16.msra.mxu0 %v4196
        %4560 = vmatprep.subr.bf16.mxu0 %v4193
        %4561 = vmatpush1.bf16.msra.mxu0 %v4192
        %4562 = vmatprep.subr.bf16.mxu0 %v4189
        %4563 = vmatpush1.bf16.msra.mxu0 %v4188
        %4564 = vmatprep.subr.bf16.mxu0 %v4185
        %4565 = vmatpush1.bf16.msra.mxu0 %v4184
        %4566 = vmatprep.subr.bf16.mxu0 %v4181
        %4567 = vmatpush1.bf16.msra.mxu0 %v4180
        %4568 = vmatprep.subr.bf16.mxu0 %v4241
        %4569 = vmatpush2.bf16.msra.mxu0 %v4240
        %4570 = vmatprep.subr.bf16.mxu0 %v4237
        %4571 = vmatpush2.bf16.msra.mxu0 %v4236
        %4572 = vmatprep.subr.bf16.mxu0 %v4233
        %4573 = vmatpush2.bf16.msra.mxu0 %v4232
        %4574 = vmatprep.subr.bf16.mxu0 %v4229
        %4575 = vmatpush2.bf16.msra.mxu0 %v4228
        %4576 = vmatprep.subr.bf16.mxu0 %v4225
        %4577 = vmatpush2.bf16.msra.mxu0 %v4224
        %4578 = vmatprep.subr.bf16.mxu0 %v4221
        %4579 = vmatpush2.bf16.msra.mxu0 %v4220
        %4580 = vmatprep.subr.bf16.mxu0 %v4217
        %4581 = vmatpush2.bf16.msra.mxu0 %v4216
        %4582 = vmatprep.subr.bf16.mxu0 %v4213
        %4583 = vmatpush2.bf16.msra.mxu0 %v4212
        %4584 = vmatprep.mubr.bf16.mxu0 %v3618
        %4585 = vmatmul.mubr.bf16.gmra.mxu0 %v3617
        %v4586 = vpop.f32.mrf.mxu0
        %v4587 = vadd.f32 0.0, %v4586
        %v4588 = vpop.f32.mrf.mxu0
        %v4589 = vadd.f32 0.0, %v4588
        %v4590 = vpop.f32.mrf.mxu0
        %v4591 = vpop.f32.mrf.mxu0
        %4592 = vdwg.mxu0
        %4593 = vmatprep.subr.bf16.mxu0 %v4273
        %4594 = vmatpush1.bf16.msra.mxu0 %v4272
        %4595 = vmatprep.subr.bf16.mxu0 %v4269
        %4596 = vmatpush1.bf16.msra.mxu0 %v4268
        %4597 = vmatprep.subr.bf16.mxu0 %v4265
        %4598 = vmatpush1.bf16.msra.mxu0 %v4264
        %4599 = vmatprep.subr.bf16.mxu0 %v4261
        %4600 = vmatpush1.bf16.msra.mxu0 %v4260
        %4601 = vmatprep.subr.bf16.mxu0 %v4257
        %4602 = vmatpush1.bf16.msra.mxu0 %v4256
        %4603 = vmatprep.subr.bf16.mxu0 %v4253
        %4604 = vmatpush1.bf16.msra.mxu0 %v4252
        %4605 = vmatprep.subr.bf16.mxu0 %v4249
        %4606 = vmatpush1.bf16.msra.mxu0 %v4248
        %4607 = vmatprep.subr.bf16.mxu0 %v4245
        %4608 = vmatpush1.bf16.msra.mxu0 %v4244
        %4609 = vmatprep.subr.bf16.mxu0 %v4305
        %4610 = vmatpush2.bf16.msra.mxu0 %v4304
        %4611 = vmatprep.subr.bf16.mxu0 %v4301
        %4612 = vmatpush2.bf16.msra.mxu0 %v4300
        %4613 = vmatprep.subr.bf16.mxu0 %v4297
        %4614 = vmatpush2.bf16.msra.mxu0 %v4296
        %4615 = vmatprep.subr.bf16.mxu0 %v4293
        %4616 = vmatpush2.bf16.msra.mxu0 %v4292
        %4617 = vmatprep.subr.bf16.mxu0 %v4289
        %4618 = vmatpush2.bf16.msra.mxu0 %v4288
        %4619 = vmatprep.subr.bf16.mxu0 %v4285
        %4620 = vmatpush2.bf16.msra.mxu0 %v4284
        %4621 = vmatprep.subr.bf16.mxu0 %v4281
        %4622 = vmatpush2.bf16.msra.mxu0 %v4280
        %4623 = vmatprep.subr.bf16.mxu0 %v4277
        %4624 = vmatpush2.bf16.msra.mxu0 %v4276
        %4625 = vmatprep.mubr.bf16.mxu0 %v3620
        %4626 = vmatmul.mubr.bf16.gmra.mxu0 %v3619
        %v4627 = vpop.f32.mrf.mxu0
        %v4628 = vadd.f32 %v4587, %v4627
        %v4629 = vpop.f32.mrf.mxu0
        %v4630 = vadd.f32 %v4589, %v4629
        %v4631 = vpop.f32.mrf.mxu0
        %v4632 = vpop.f32.mrf.mxu0
        %4633 = vdwg.mxu0
        %4634 = vmatprep.subr.bf16.mxu0 %v4337
        %4635 = vmatpush1.bf16.msra.mxu0 %v4336
        %4636 = vmatprep.subr.bf16.mxu0 %v4333
        %4637 = vmatpush1.bf16.msra.mxu0 %v4332
        %4638 = vmatprep.subr.bf16.mxu0 %v4329
        %4639 = vmatpush1.bf16.msra.mxu0 %v4328
        %4640 = vmatprep.subr.bf16.mxu0 %v4325
        %4641 = vmatpush1.bf16.msra.mxu0 %v4324
        %4642 = vmatprep.subr.bf16.mxu0 %v4321
        %4643 = vmatpush1.bf16.msra.mxu0 %v4320
        %4644 = vmatprep.subr.bf16.mxu0 %v4317
        %4645 = vmatpush1.bf16.msra.mxu0 %v4316
        %4646 = vmatprep.subr.bf16.mxu0 %v4313
        %4647 = vmatpush1.bf16.msra.mxu0 %v4312
        %4648 = vmatprep.subr.bf16.mxu0 %v4309
        %4649 = vmatpush1.bf16.msra.mxu0 %v4308
        %4650 = vmatprep.subr.bf16.mxu0 0
        %4651 = vmatpush2.bf16.msra.mxu0 0
        %4652 = vmatprep.subr.bf16.mxu0 0
        %4653 = vmatpush2.bf16.msra.mxu0 0
        %4654 = vmatprep.subr.bf16.mxu0 %v4361
        %4655 = vmatpush2.bf16.msra.mxu0 %v4360
        %4656 = vmatprep.subr.bf16.mxu0 %v4357
        %4657 = vmatpush2.bf16.msra.mxu0 %v4356
        %4658 = vmatprep.subr.bf16.mxu0 %v4353
        %4659 = vmatpush2.bf16.msra.mxu0 %v4352
        %4660 = vmatprep.subr.bf16.mxu0 %v4349
        %4661 = vmatpush2.bf16.msra.mxu0 %v4348
        %4662 = vmatprep.subr.bf16.mxu0 %v4345
        %4663 = vmatpush2.bf16.msra.mxu0 %v4344
        %4664 = vmatprep.subr.bf16.mxu0 %v4341
        %4665 = vmatpush2.bf16.msra.mxu0 %v4340
        %4666 = vmatprep.mubr.bf16.mxu0 %v4550
        %4667 = vmatmul.mubr.bf16.gmra.mxu0 %v3621
        %v4668 = vpop.f32.mrf.mxu0
        %v4669 = vadd.f32 %v4628, %v4668
        %v4670 = vpop.f32.mrf.mxu0
        %v4671 = vadd.f32 %v4630, %v4670
        %v4672 = vpop.f32.mrf.mxu0
        %v4673 = vpop.f32.mrf.mxu0
        %4674 = vdwg.mxu0
        %4675 = vmatprep.subr.bf16.mxu0 %v4211
        %4676 = vmatpush1.bf16.msra.mxu0 %v4210
        %4677 = vmatprep.subr.bf16.mxu0 %v4207
        %4678 = vmatpush1.bf16.msra.mxu0 %v4206
        %4679 = vmatprep.subr.bf16.mxu0 %v4203
        %4680 = vmatpush1.bf16.msra.mxu0 %v4202
        %4681 = vmatprep.subr.bf16.mxu0 %v4199
        %4682 = vmatpush1.bf16.msra.mxu0 %v4198
        %4683 = vmatprep.subr.bf16.mxu0 %v4195
        %4684 = vmatpush1.bf16.msra.mxu0 %v4194
        %4685 = vmatprep.subr.bf16.mxu0 %v4191
        %4686 = vmatpush1.bf16.msra.mxu0 %v4190
        %4687 = vmatprep.subr.bf16.mxu0 %v4187
        %4688 = vmatpush1.bf16.msra.mxu0 %v4186
        %4689 = vmatprep.subr.bf16.mxu0 %v4183
        %4690 = vmatpush1.bf16.msra.mxu0 %v4182
        %4691 = vmatprep.subr.bf16.mxu0 %v4243
        %4692 = vmatpush2.bf16.msra.mxu0 %v4242
        %4693 = vmatprep.subr.bf16.mxu0 %v4239
        %4694 = vmatpush2.bf16.msra.mxu0 %v4238
        %4695 = vmatprep.subr.bf16.mxu0 %v4235
        %4696 = vmatpush2.bf16.msra.mxu0 %v4234
        %4697 = vmatprep.subr.bf16.mxu0 %v4231
        %4698 = vmatpush2.bf16.msra.mxu0 %v4230
        %4699 = vmatprep.subr.bf16.mxu0 %v4227
        %4700 = vmatpush2.bf16.msra.mxu0 %v4226
        %4701 = vmatprep.subr.bf16.mxu0 %v4223
        %4702 = vmatpush2.bf16.msra.mxu0 %v4222
        %4703 = vmatprep.subr.bf16.mxu0 %v4219
        %4704 = vmatpush2.bf16.msra.mxu0 %v4218
        %4705 = vmatprep.subr.bf16.mxu0 %v4215
        %4706 = vmatpush2.bf16.msra.mxu0 %v4214
        %4707 = vmatprep.mubr.bf16.mxu0 %v3618
        %4708 = vmatmul.mubr.bf16.gmra.mxu0 %v3617
        %v4709 = vpop.f32.mrf.mxu0
        %v4710 = vadd.f32 0.0, %v4709
        %v4711 = vpop.f32.mrf.mxu0
        %v4712 = vadd.f32 0.0, %v4711
        %v4713 = vpop.f32.mrf.mxu0
        %v4714 = vpop.f32.mrf.mxu0
        %4715 = vdwg.mxu0
        %4716 = vmatprep.subr.bf16.mxu0 %v4275
        %4717 = vmatpush1.bf16.msra.mxu0 %v4274
        %4718 = vmatprep.subr.bf16.mxu0 %v4271
        %4719 = vmatpush1.bf16.msra.mxu0 %v4270
        %4720 = vmatprep.subr.bf16.mxu0 %v4267
        %4721 = vmatpush1.bf16.msra.mxu0 %v4266
        %4722 = vmatprep.subr.bf16.mxu0 %v4263
        %4723 = vmatpush1.bf16.msra.mxu0 %v4262
        %4724 = vmatprep.subr.bf16.mxu0 %v4259
        %4725 = vmatpush1.bf16.msra.mxu0 %v4258
        %4726 = vmatprep.subr.bf16.mxu0 %v4255
        %4727 = vmatpush1.bf16.msra.mxu0 %v4254
        %4728 = vmatprep.subr.bf16.mxu0 %v4251
        %4729 = vmatpush1.bf16.msra.mxu0 %v4250
        %4730 = vmatprep.subr.bf16.mxu0 %v4247
        %4731 = vmatpush1.bf16.msra.mxu0 %v4246
        %4732 = vmatprep.subr.bf16.mxu0 %v4307
        %4733 = vmatpush2.bf16.msra.mxu0 %v4306
        %4734 = vmatprep.subr.bf16.mxu0 %v4303
        %4735 = vmatpush2.bf16.msra.mxu0 %v4302
        %4736 = vmatprep.subr.bf16.mxu0 %v4299
        %4737 = vmatpush2.bf16.msra.mxu0 %v4298
        %4738 = vmatprep.subr.bf16.mxu0 %v4295
        %4739 = vmatpush2.bf16.msra.mxu0 %v4294
        %4740 = vmatprep.subr.bf16.mxu0 %v4291
        %4741 = vmatpush2.bf16.msra.mxu0 %v4290
        %4742 = vmatprep.subr.bf16.mxu0 %v4287
        %4743 = vmatpush2.bf16.msra.mxu0 %v4286
        %4744 = vmatprep.subr.bf16.mxu0 %v4283
        %4745 = vmatpush2.bf16.msra.mxu0 %v4282
        %4746 = vmatprep.subr.bf16.mxu0 %v4279
        %4747 = vmatpush2.bf16.msra.mxu0 %v4278
        %4748 = vmatprep.mubr.bf16.mxu0 %v3620
        %4749 = vmatmul.mubr.bf16.gmra.mxu0 %v3619
        %v4750 = vpop.f32.mrf.mxu0
        %v4751 = vadd.f32 %v4710, %v4750
        %v4752 = vpop.f32.mrf.mxu0
        %v4753 = vadd.f32 %v4712, %v4752
        %v4754 = vpop.f32.mrf.mxu0
        %v4755 = vpop.f32.mrf.mxu0
        %4756 = vdwg.mxu0
        %4757 = vmatprep.subr.bf16.mxu0 %v4339
        %4758 = vmatpush1.bf16.msra.mxu0 %v4338
        %4759 = vmatprep.subr.bf16.mxu0 %v4335
        %4760 = vmatpush1.bf16.msra.mxu0 %v4334
        %4761 = vmatprep.subr.bf16.mxu0 %v4331
        %4762 = vmatpush1.bf16.msra.mxu0 %v4330
        %4763 = vmatprep.subr.bf16.mxu0 %v4327
        %4764 = vmatpush1.bf16.msra.mxu0 %v4326
        %4765 = vmatprep.subr.bf16.mxu0 %v4323
        %4766 = vmatpush1.bf16.msra.mxu0 %v4322
        %4767 = vmatprep.subr.bf16.mxu0 %v4319
        %4768 = vmatpush1.bf16.msra.mxu0 %v4318
        %4769 = vmatprep.subr.bf16.mxu0 %v4315
        %4770 = vmatpush1.bf16.msra.mxu0 %v4314
        %4771 = vmatprep.subr.bf16.mxu0 %v4311
        %4772 = vmatpush1.bf16.msra.mxu0 %v4310
        %4773 = vmatprep.subr.bf16.mxu0 0
        %4774 = vmatpush2.bf16.msra.mxu0 0
        %4775 = vmatprep.subr.bf16.mxu0 0
        %4776 = vmatpush2.bf16.msra.mxu0 0
        %4777 = vmatprep.subr.bf16.mxu0 %v4363
        %4778 = vmatpush2.bf16.msra.mxu0 %v4362
        %4779 = vmatprep.subr.bf16.mxu0 %v4359
        %4780 = vmatpush2.bf16.msra.mxu0 %v4358
        %4781 = vmatprep.subr.bf16.mxu0 %v4355
        %4782 = vmatpush2.bf16.msra.mxu0 %v4354
        %4783 = vmatprep.subr.bf16.mxu0 %v4351
        %4784 = vmatpush2.bf16.msra.mxu0 %v4350
        %4785 = vmatprep.subr.bf16.mxu0 %v4347
        %4786 = vmatpush2.bf16.msra.mxu0 %v4346
        %4787 = vmatprep.subr.bf16.mxu0 %v4343
        %4788 = vmatpush2.bf16.msra.mxu0 %v4342
        %4789 = vmatprep.mubr.bf16.mxu0 %v4550
        %4790 = vmatmul.mubr.bf16.gmra.mxu0 %v3621
        %v4791 = vpop.f32.mrf.mxu0
        %v4792 = vadd.f32 %v4751, %v4791
        %v4793 = vpop.f32.mrf.mxu0
        %v4794 = vadd.f32 %v4753, %v4793
        %v4795 = vpop.f32.mrf.mxu0
        %v4796 = vpop.f32.mrf.mxu0
        %4797 = vdwg.mxu0
        %v4802 = vcombine.low %v4669, %v4671
        %v4803 = vcombine.low %v4792, %v4794
        %v4805 = vunpack.c.l.s4 1983009808
        %v4806 = vunpack.c.0.s8 %v4805
        %v4807 = vlaneseq
        %v4808 = vshrl.u32 %v4807, 7
        %v4809 = vsub.s32 %v4806, %v4808
        %v4810 = vrot.slane %v4802, %v4809
        %v4812 = vunpack.c.l.s4 1983009808
        %v4813 = vunpack.c.0.s8 %v4812
        %v4814 = vlaneseq
        %v4815 = vshrl.u32 %v4814, 7
        %v4816 = vsub.s32 %v4813, %v4815
        %v4817 = vrot.slane %v4803, %v4816
        %v4818 = vcombine.low %v4810, %v4817
        %v4820 = vadd.f32 %v2117, %v4818
        %4821 = vst [vmem:[#allocation2] sm:$0xff] %v4820
        %p4822 = scmp.eq.s32.totalorder %s17, 2
        // Predicated region
        $region83: #{net_head_forward.1} parent=73 // pred_check
          %p4823 = pneg %p4822
        $region84: #{net_head_forward.1} parent=73 // pred_check_branch
          %4825 = sbr.rel (%p4823) target = $region86
        $region85: #{net_head_forward.1} parent=73 // pred_region
          %v4826 = vld [vmem:[#allocation2] sm:$0xff]
          %v4827 = vld [vmem:[%s2] sm:$0xf]
          %v4829 = vlaneseq
          %v4830 = vshrl.u32 %v4829, 7
          %v4831 = vsub.s32 0, %v4830
          %v4832 = vrot.slane %v4827, %v4831
          %v4833 = vlaneseq
          %v4834 = vshrl.u32 %v4833, 7
          %v4835 = vsub.s32 1, %v4834
          %v4836 = vrot.slane %v4827, %v4835
          %v4837 = vlaneseq
          %v4838 = vshrl.u32 %v4837, 7
          %v4839 = vsub.s32 2, %v4838
          %v4840 = vrot.slane %v4827, %v4839
          %v4841 = vlaneseq
          %v4842 = vshrl.u32 %v4841, 7
          %v4843 = vsub.s32 3, %v4842
          %v4844 = vrot.slane %v4827, %v4843
          %v4845 = vcombine.low %v4832, %v4836
          %v4846 = vcombine.low %v4840, %v4844
          %v4848 = vunpack.c.l.s4 1983009808
          %v4849 = vunpack.c.0.s8 %v4848
          %v4850 = vlaneseq
          %v4851 = vshrl.u32 %v4850, 7
          %v4852 = vsub.s32 %v4849, %v4851
          %v4853 = vrot.slane %v4845, %v4852
          %v4855 = vunpack.c.l.s4 1983009808
          %v4856 = vunpack.c.0.s8 %v4855
          %v4857 = vlaneseq
          %v4858 = vshrl.u32 %v4857, 7
          %v4859 = vsub.s32 %v4856, %v4858
          %v4860 = vrot.slane %v4846, %v4859
          %v4861 = vcombine.low %v4853, %v4860
          %v4863 = vadd.f32 %v4826, %v4861
          %v4864 = vmax.f32 %v4863, 0.0
          %v4865 = vld [vmem:[%s3] sm:$0xff]
          %v4866 = vld [vmem:[%s3 + $0x8] sm:$0xff]
          %v4867 = vld [vmem:[%s3 + $0x10] sm:$0xff]
          %v4868 = vld [vmem:[%s3 + $0x18] sm:$0xff]
          %v4869 = vld [vmem:[%s3 + $0x20] sm:$0xff]
          %v4870 = vld [vmem:[%s3 + $0x28] sm:$0xff]
          %v4871 = vld [vmem:[%s3 + $0x30] sm:$0xff]
          %v4872 = vld [vmem:[%s3 + $0x38] sm:$0xff]
          %v4873 = vld [vmem:[%s3 + $0x40] sm:$0xff]
          %v4874 = vld [vmem:[%s3 + $0x48] sm:$0xff]
          %v4875 = vld [vmem:[%s3 + $0x50] sm:$0xff]
          %v4876 = vld [vmem:[%s3 + $0x58] sm:$0xff]
          %v4877 = vld [vmem:[%s3 + $0x60] sm:$0xff]
          %v4878 = vld [vmem:[%s3 + $0x68] sm:$0xff]
          %v4879 = vld [vmem:[%s3 + $0x70] sm:$0xff]
          %v4880 = vld [vmem:[%s3 + $0x78] sm:$0xff]
          %v4881 = vld [vmem:[%s3 + $0x80] sm:$0xff]
          %v4882 = vld [vmem:[%s3 + $0x88] sm:$0xff]
          %v4883 = vld [vmem:[%s3 + $0x90] sm:$0xff]
          %v4884 = vld [vmem:[%s3 + $0x98] sm:$0xff]
          %v4885 = vld [vmem:[%s3 + $0xa0] sm:$0xff]
          %v4886 = vld [vmem:[%s3 + $0xa8] sm:$0xff]
          %v4887 = vld [vmem:[%s3 + $0xb0] sm:$0xff]
          %v4888 = vld [vmem:[%s3 + $0xb8] sm:$0xff]
          %v4889 = vld [vmem:[%s3 + $0xc0] sm:$0xff]
          %v4890 = vld [vmem:[%s3 + $0xc8] sm:$0xff]
          %v4891 = vld [vmem:[%s3 + $0xd0] sm:$0xff]
          %v4892 = vld [vmem:[%s3 + $0xd8] sm:$0xff]
          %v4893 = vld [vmem:[%s3 + $0xe0] sm:$0xff]
          %v4894 = vld [vmem:[%s3 + $0xe8] sm:$0xff]
          %v4895 = vld [vmem:[%s3 + $0xf0] sm:$0xff]
          %v4896 = vld [vmem:[%s3 + $0xf8] sm:$0xff]
          %v4897 = vld [vmem:[%s3 + $0x100] sm:$0xff]
          %v4898 = vld [vmem:[%s3 + $0x108] sm:$0xff]
          %v4899 = vld [vmem:[%s3 + $0x110] sm:$0xff]
          %v4900 = vld [vmem:[%s3 + $0x118] sm:$0xff]
          %v4901 = vld [vmem:[%s3 + $0x120] sm:$0xff]
          %v4902 = vld [vmem:[%s3 + $0x128] sm:$0xff]
          %v4903 = vld [vmem:[%s3 + $0x130] sm:$0xff]
          %v4904 = vld [vmem:[%s3 + $0x138] sm:$0xff]
          %v4905 = vld [vmem:[%s3 + $0x140] sm:$0xff]
          %v4906 = vld [vmem:[%s3 + $0x148] sm:$0xff]
          %v4907 = vld [vmem:[%s3 + $0x150] sm:$0xff]
          %v4908 = vld [vmem:[%s3 + $0x158] sm:$0xff]
          %v4909 = vld [vmem:[%s3 + $0x160] sm:$0xff]
          %v4910 = vld [vmem:[%s3 + $0x168] sm:$0xff]
          %v4911 = vld [vmem:[%s3 + $0x170] sm:$0xff]
          %v4912 = vld [vmem:[%s3 + $0x178] sm:$0xff]
          %v4913 = vld [vmem:[%s3 + $0x180] sm:$0xff]
          %v4914 = vld [vmem:[%s3 + $0x188] sm:$0xff]
          %v4915 = vld [vmem:[%s3 + $0x190] sm:$0xff]
          %v4916 = vld [vmem:[%s3 + $0x198] sm:$0xff]
          %v4917 = vld [vmem:[%s3 + $0x1a0] sm:$0xff]
          %v4918 = vld [vmem:[%s3 + $0x1a8] sm:$0xff]
          %v4919 = vld [vmem:[%s3 + $0x1b0] sm:$0xff]
          %v4920 = vld [vmem:[%s3 + $0x1b8] sm:$0xff]
          %v4921 = vld [vmem:[%s3 + $0x1c0] sm:$0xff]
          %v4922 = vld [vmem:[%s3 + $0x1c8] sm:$0xff]
          %v4923 = vld [vmem:[%s3 + $0x1d0] sm:$0xff]
          %v4924 = vld [vmem:[%s3 + $0x1d8] sm:$0xff]
          %v4925 = vld [vmem:[%s3 + $0x1e0] sm:$0xff]
          %v4926 = vld [vmem:[%s3 + $0x1e8] sm:$0xff]
          %v4927 = vld [vmem:[%s3 + $0x1f0] sm:$0xff]
          %v4928 = vld [vmem:[%s3 + $0x1f8] sm:$0xff]
          %v4929 = vld [vmem:[%s4] sm:$0x1]
          %v4931 = vlaneseq
          %v4932 = vshrl.u32 %v4931, 7
          %v4933 = vsub.s32 0, %v4932
          %v4934 = vrot.slane %v4929, %v4933
          %v4937 = vcombine.high %v4864, %v4864
          %v4939 = vunpack.c.l.s4 1983009808
          %v4940 = vunpack.c.0.s8 %v4939
          %v4941 = vlaneseq
          %v4942 = vshrl.u32 %v4941, 7
          %v4943 = vsub.s32 %v4940, %v4942
          %v4944 = vrot.slane %v4864, %v4943
          %v4946 = vunpack.c.l.s4 1983009808
          %v4947 = vunpack.c.0.s8 %v4946
          %v4948 = vlaneseq
          %v4949 = vshrl.u32 %v4948, 7
          %v4950 = vsub.s32 %v4947, %v4949
          %v4951 = vrot.slane %v4937, %v4950
          %v4952 = vcombine.high %v4944, %v4944
          %v4953 = vcombine.high %v4951, %v4951
          %4958 = vmatprep.subr.mxu0 0.0
          %4959 = vmatpush1.msra.mxu0 %v4880
          %4960 = vmatprep.subr.mxu0 0.0
          %4961 = vmatpush1.msra.mxu0 %v4879
          %4962 = vmatprep.subr.mxu0 0.0
          %4963 = vmatpush1.msra.mxu0 %v4878
          %4964 = vmatprep.subr.mxu0 0.0
          %4965 = vmatpush1.msra.mxu0 %v4877
          %4966 = vmatprep.subr.mxu0 0.0
          %4967 = vmatpush1.msra.mxu0 %v4876
          %4968 = vmatprep.subr.mxu0 0.0
          %4969 = vmatpush1.msra.mxu0 %v4875
          %4970 = vmatprep.subr.mxu0 0.0
          %4971 = vmatpush1.msra.mxu0 %v4874
          %4972 = vmatprep.subr.mxu0 0.0
          %4973 = vmatpush1.msra.mxu0 %v4873
          %4974 = vmatprep.subr.mxu0 0.0
          %4975 = vmatpush1.msra.mxu0 %v4872
          %4976 = vmatprep.subr.mxu0 0.0
          %4977 = vmatpush1.msra.mxu0 %v4871
          %4978 = vmatprep.subr.mxu0 0.0
          %4979 = vmatpush1.msra.mxu0 %v4870
          %4980 = vmatprep.subr.mxu0 0.0
          %4981 = vmatpush1.msra.mxu0 %v4869
          %4982 = vmatprep.subr.mxu0 0.0
          %4983 = vmatpush1.msra.mxu0 %v4868
          %4984 = vmatprep.subr.mxu0 0.0
          %4985 = vmatpush1.msra.mxu0 %v4867
          %4986 = vmatprep.subr.mxu0 0.0
          %4987 = vmatpush1.msra.mxu0 %v4866
          %4988 = vmatprep.subr.mxu0 0.0
          %4989 = vmatpush1.msra.mxu0 %v4865
          %4990 = vmatprep.subr.mxu0 0.0
          %4991 = vmatpush2.msra.mxu0 %v4896
          %4992 = vmatprep.subr.mxu0 0.0
          %4993 = vmatpush2.msra.mxu0 %v4895
          %4994 = vmatprep.subr.mxu0 0.0
          %4995 = vmatpush2.msra.mxu0 %v4894
          %4996 = vmatprep.subr.mxu0 0.0
          %4997 = vmatpush2.msra.mxu0 %v4893
          %4998 = vmatprep.subr.mxu0 0.0
          %4999 = vmatpush2.msra.mxu0 %v4892
          %5000 = vmatprep.subr.mxu0 0.0
          %5001 = vmatpush2.msra.mxu0 %v4891
          %5002 = vmatprep.subr.mxu0 0.0
          %5003 = vmatpush2.msra.mxu0 %v4890
          %5004 = vmatprep.subr.mxu0 0.0
          %5005 = vmatpush2.msra.mxu0 %v4889
          %5006 = vmatprep.subr.mxu0 0.0
          %5007 = vmatpush2.msra.mxu0 %v4888
          %5008 = vmatprep.subr.mxu0 0.0
          %5009 = vmatpush2.msra.mxu0 %v4887
          %5010 = vmatprep.subr.mxu0 0.0
          %5011 = vmatpush2.msra.mxu0 %v4886
          %5012 = vmatprep.subr.mxu0 0.0
          %5013 = vmatpush2.msra.mxu0 %v4885
          %5014 = vmatprep.subr.mxu0 0.0
          %5015 = vmatpush2.msra.mxu0 %v4884
          %5016 = vmatprep.subr.mxu0 0.0
          %5017 = vmatpush2.msra.mxu0 %v4883
          %5018 = vmatprep.subr.mxu0 0.0
          %5019 = vmatpush2.msra.mxu0 %v4882
          %5020 = vmatprep.subr.mxu0 0.0
          %5021 = vmatpush2.msra.mxu0 %v4881
          %5022 = vmatprep.mubr.f32.mxu0 %v4952
          %5023 = vmatmul.mubr.f32.gmra.mxu0 %v4944
          %v5024 = vpop.f32.mrf.mxu0
          %v5025 = vadd.f32 %v4934, %v5024
          %v5026 = vpop.f32.mrf.mxu0
          %5027 = vdwg.mxu0
          %5028 = vmatprep.subr.mxu0 0.0
          %5029 = vmatpush1.msra.mxu0 %v4912
          %5030 = vmatprep.subr.mxu0 0.0
          %5031 = vmatpush1.msra.mxu0 %v4911
          %5032 = vmatprep.subr.mxu0 0.0
          %5033 = vmatpush1.msra.mxu0 %v4910
          %5034 = vmatprep.subr.mxu0 0.0
          %5035 = vmatpush1.msra.mxu0 %v4909
          %5036 = vmatprep.subr.mxu0 0.0
          %5037 = vmatpush1.msra.mxu0 %v4908
          %5038 = vmatprep.subr.mxu0 0.0
          %5039 = vmatpush1.msra.mxu0 %v4907
          %5040 = vmatprep.subr.mxu0 0.0
          %5041 = vmatpush1.msra.mxu0 %v4906
          %5042 = vmatprep.subr.mxu0 0.0
          %5043 = vmatpush1.msra.mxu0 %v4905
          %5044 = vmatprep.subr.mxu0 0.0
          %5045 = vmatpush1.msra.mxu0 %v4904
          %5046 = vmatprep.subr.mxu0 0.0
          %5047 = vmatpush1.msra.mxu0 %v4903
          %5048 = vmatprep.subr.mxu0 0.0
          %5049 = vmatpush1.msra.mxu0 %v4902
          %5050 = vmatprep.subr.mxu0 0.0
          %5051 = vmatpush1.msra.mxu0 %v4901
          %5052 = vmatprep.subr.mxu0 0.0
          %5053 = vmatpush1.msra.mxu0 %v4900
          %5054 = vmatprep.subr.mxu0 0.0
          %5055 = vmatpush1.msra.mxu0 %v4899
          %5056 = vmatprep.subr.mxu0 0.0
          %5057 = vmatpush1.msra.mxu0 %v4898
          %5058 = vmatprep.subr.mxu0 0.0
          %5059 = vmatpush1.msra.mxu0 %v4897
          %5060 = vmatprep.subr.mxu0 0.0
          %5061 = vmatpush2.msra.mxu0 %v4928
          %5062 = vmatprep.subr.mxu0 0.0
          %5063 = vmatpush2.msra.mxu0 %v4927
          %5064 = vmatprep.subr.mxu0 0.0
          %5065 = vmatpush2.msra.mxu0 %v4926
          %5066 = vmatprep.subr.mxu0 0.0
          %5067 = vmatpush2.msra.mxu0 %v4925
          %5068 = vmatprep.subr.mxu0 0.0
          %5069 = vmatpush2.msra.mxu0 %v4924
          %5070 = vmatprep.subr.mxu0 0.0
          %5071 = vmatpush2.msra.mxu0 %v4923
          %5072 = vmatprep.subr.mxu0 0.0
          %5073 = vmatpush2.msra.mxu0 %v4922
          %5074 = vmatprep.subr.mxu0 0.0
          %5075 = vmatpush2.msra.mxu0 %v4921
          %5076 = vmatprep.subr.mxu0 0.0
          %5077 = vmatpush2.msra.mxu0 %v4920
          %5078 = vmatprep.subr.mxu0 0.0
          %5079 = vmatpush2.msra.mxu0 %v4919
          %5080 = vmatprep.subr.mxu0 0.0
          %5081 = vmatpush2.msra.mxu0 %v4918
          %5082 = vmatprep.subr.mxu0 0.0
          %5083 = vmatpush2.msra.mxu0 %v4917
          %5084 = vmatprep.subr.mxu0 0.0
          %5085 = vmatpush2.msra.mxu0 %v4916
          %5086 = vmatprep.subr.mxu0 0.0
          %5087 = vmatpush2.msra.mxu0 %v4915
          %5088 = vmatprep.subr.mxu0 0.0
          %5089 = vmatpush2.msra.mxu0 %v4914
          %5090 = vmatprep.subr.mxu0 0.0
          %5091 = vmatpush2.msra.mxu0 %v4913
          %5092 = vmatprep.mubr.f32.mxu0 %v4953
          %5093 = vmatmul.mubr.f32.gmra.mxu0 %v4951
          %v5094 = vpop.f32.mrf.mxu0
          %v5095 = vadd.f32 %v5025, %v5094
          %v5096 = vpop.f32.mrf.mxu0
          %5097 = vdwg.mxu0
          %v5098 = vxor.u32 %v5095, 2147483648
          %v5099 = vmul.f32 %v5098, 1.442695
          %v5100 = vpow.pop %v5099
          %v5101 = vadd.f32 %v5100, 1.0
          %v5102 = vrcp.pop %v5101
          %v5103 = vmul.f32 1.0, %v5102
          %vm5104 = vcmask 123904
          %5105 = vst.msk [vmem:[#allocation4] sm:$0x3] %vm5104, %v5103
        $region86: #{net_head_forward.1} parent=73 // pred_fallthru
          _
        // Predicated region
        $region87: #{net_head_forward.1} parent=73 // pred_check
          %p5106 = pneg %p145
        $region88: #{net_head_forward.1} parent=73 // pred_check_branch
          %5108 = sbr.rel (%p5106) target = $region90
        $region89: #{net_head_forward.1} parent=73 // pred_region
          %s5110 = ssub.s32 32, 32
          %5111 = vsyncadd [#allocation5], %s5110
          %s5113 = sshll.u32 [#allocation4], 4
          %s5114 = int_to_ptr.vmem [resolvable:$true] %s5113
          %5116 = dma.vmem_to_hbm [thread:$0]  %s5114, 32, %s5, [#allocation5]
        $region90: #{net_head_forward.1} parent=73 // pred_fallthru
          _
        // Predicated region
        $region91: #{net_head_forward.1} parent=73 // pred_check
          %p5117 = pneg %p145
        $region92: #{net_head_forward.1} parent=73 // pred_check_branch
          %5119 = sbr.rel (%p5117) target = $region94
        $region93: #{net_head_forward.1} parent=73 // pred_region
          %5120 = dma.done [#allocation5], 32
        $region94: #{net_head_forward.1} parent=73 // pred_fallthru
          _
      $region74: #{net_head_forward.1} parent=5 // pred_fallthru
        _
      %p5121 = scmp.le.s32.totalorder 2, %s12
      // Predicated region
      $region95: #{net_head_forward.1} parent=5 // pred_check
        %p5122 = pneg %p5121
      $region96: #{net_head_forward.1} parent=5 // pred_check_branch
        %5124 = sbr.rel (%p5122) target = $region98
      $region97: #{net_head_forward.1} parent=5 // pred_region
        %s5125 = ssub.s32 %s12, 2
      $region98: #{net_head_forward.1} parent=5 // pred_fallthru
        _
    $region6: #{net_head_forward.1} parent=1 // loop_footer
      %s16 = sadd.s32 1, %s12
    $region7: #{net_head_forward.1} parent=1 // loop_footer_branch
      %11 = sbr.rel target = $region3
    $region8: #{net_head_forward.1} parent=1 // loop_exit
      _
    %5126 = vsyncpa [#allocation5], 1
    %s5127 = scalar_lea.sflag [#allocation5], 1
    %5128 = vsyncpa %s5127, 1

</llo_original>
